<compile_context>
chip_gen: v5e
topology: v5e:2x2
jax: 0.10.0
libtpu: 0.0.40
codegen_flags: <defaults>
</compile_context>

<pallas_src>
import functools

import numpy as np
import jax
import jax.numpy as jnp
from jax import lax
from jax.experimental import pallas as pl
from jax.experimental.pallas import tpu as pltpu

# ----------------------------- config ---------------------------------------
CONFIG = dict(
    n_embd=32,
    n_head=4,
    n_layer=2,
    block_size=8,
)
VOCAB_SIZE = 65
LN_EPS = 1e-5
LANE = 128


def _round_up(x, m):
    return (x + m - 1) // m * m


# ----------------------------- Pallas kernel --------------------------------
def gpt_kernel(x_ref, mask_ref,
               ln1w_ref, ln1b_ref,
               wqkv_ref,
               wproj_ref, bproj_ref,
               ln2w_ref, ln2b_ref,
               w1_ref, b1_ref, w2_ref, b2_ref,
               lnfw_ref, lnfb_ref,
               wlm_ref, blm_ref,
               out_ref,
               *, n_embd, head_size):
    f32 = jnp.float32
    bf16 = jnp.bfloat16

    x = x_ref[...]                          # (N, CPAD) f32; cols >= n_embd are exactly 0
    N, CPAD = x.shape
    n_layer = wqkv_ref.shape[0]
    n_head = wproj_ref.shape[1]
    inv_c = 1.0 / float(n_embd)
    scale = 1.0 / (float(head_size) ** 0.5)
    mask_bias = mask_ref[...]               # (N, N): 0 where attend, -1e30 where masked

    # lane mask selecting the real channels (keeps padded cols exactly zero)
    col = lax.broadcasted_iota(jnp.int32, (1, CPAD), 1)
    cmask = (col < n_embd).astype(f32)

    def layer_norm(v, w, b):
        # v has zeros in padded cols -> sums over full 128 lanes equal sums over C
        mu = jnp.sum(v, axis=-1, keepdims=True) * inv_c
        d = (v - mu) * cmask
        var = jnp.sum(d * d, axis=-1, keepdims=True) * inv_c
        return d * lax.rsqrt(var + LN_EPS) * w + b

    nt = (((1,), (1,)), ((), ()))           # q @ k^T (contract last dims)

    for l in range(n_layer):
        # ---- self-attention sublayer: x = x + MHA(LN1(x)) ----
        xln = layer_norm(x, ln1w_ref[l], ln1b_ref[l])
        # single fused QKV matmul, head-major 128-lane slabs:
        # (N, 128) @ (128, 3*H*128) -> (N, 3*H*128)
        qkv = jnp.dot(xln.astype(bf16), wqkv_ref[l],
                      preferred_element_type=f32)

        attn = jnp.zeros((N, CPAD), f32)
        for h in range(n_head):
            # 128-lane-aligned slices -> pure vreg selection, no relayout
            qh = qkv[:, h * LANE:(h + 1) * LANE]
            kh = qkv[:, (n_head + h) * LANE:(n_head + h + 1) * LANE]
            vh = qkv[:, (2 * n_head + h) * LANE:(2 * n_head + h + 1) * LANE]
            s = lax.dot_general(qh.astype(bf16), kh.astype(bf16), nt,
                                preferred_element_type=f32) * scale + mask_bias
            p = jnp.exp(s - jnp.max(s, axis=-1, keepdims=True))
            p = p * pl.reciprocal(jnp.sum(p, axis=-1, keepdims=True), approx=True)
            o = jnp.dot(p.astype(bf16), vh.astype(bf16),
                        preferred_element_type=f32)          # (N, 128)
            # sum_h o_h @ Wproj_h  ==  concat(heads) @ Wproj (no concat needed)
            attn = attn + jnp.dot(o.astype(bf16), wproj_ref[l, h],
                                  preferred_element_type=f32)
        x = x + attn + bproj_ref[l]

        # ---- feed-forward sublayer: x = x + MLP(LN2(x)) ----
        xln2 = layer_norm(x, ln2w_ref[l], ln2b_ref[l])
        h1 = jnp.dot(xln2.astype(bf16), w1_ref[l],
                     preferred_element_type=f32) + b1_ref[l]
        h1 = jnp.maximum(h1, 0.0)                             # ReLU
        x = x + jnp.dot(h1.astype(bf16), w2_ref[l],
                        preferred_element_type=f32) + b2_ref[l]

    # ---- final LayerNorm + lm_head (lane-dense, padded vocab) ----
    xf = layer_norm(x, lnfw_ref[...], lnfb_ref[...])
    out_ref[...] = jnp.dot(xf.astype(bf16), wlm_ref[...],
                           preferred_element_type=f32) + blm_ref[...]


# ----------------------------- one-time parameter prep ----------------------
def prepare_params(params):
    """Fuse / pad / cast all matmul weights once (hoisted out of the forward)."""
    f32 = jnp.float32
    bf16 = jnp.bfloat16
    L, H, C, hs = params['wq'].shape
    V = params['wlm'].shape[1]
    HID = params['w1'].shape[2]
    CPAD = max(LANE, _round_up(C, LANE))
    HPAD = max(LANE, _round_up(HID, LANE))
    VPAD = max(LANE, _round_up(V, LANE))

    def head_block(w):  # (L, H, C, hs) -> (L, CPAD, H*LANE): each head in its own 128-lane slab
        out = jnp.zeros((L, CPAD, H * LANE), f32)
        for h in range(H):
            out = out.at[:, :C, h * LANE:h * LANE + hs].set(w[:, h])
        return out

    wqkv = jnp.concatenate([head_block(params['wq']),
                            head_block(params['wk']),
                            head_block(params['wv'])], axis=-1).astype(bf16)

    wproj = jnp.zeros((L, H, CPAD, CPAD), f32)
    wproj = wproj.at[:, :, :hs, :C].set(params['wproj']).astype(bf16)

    def pad_mat(w, r, c):   # (L, a, b) -> (L, r, c), zero pad
        return jnp.pad(w, ((0, 0), (0, r - w.shape[1]), (0, c - w.shape[2])))

    def pad_vec(v, c):      # (L, b) -> (L, 1, c), zero pad
        return jnp.pad(v, ((0, 0), (0, c - v.shape[1])))[:, None, :]

    return dict(
        dims=dict(C=C, hs=hs, H=H, L=L, V=V, CPAD=CPAD, HPAD=HPAD, VPAD=VPAD),
        tok_emb=params['tok_emb'].astype(f32),
        pos_emb=params['pos_emb'].astype(f32),
        ln1w=pad_vec(params['ln1_w'], CPAD), ln1b=pad_vec(params['ln1_b'], CPAD),
        wqkv=wqkv,
        wproj=wproj, bproj=pad_vec(params['bproj'], CPAD),
        ln2w=pad_vec(params['ln2_w'], CPAD), ln2b=pad_vec(params['ln2_b'], CPAD),
        w1=pad_mat(params['w1'], CPAD, HPAD).astype(bf16),
        b1=pad_vec(params['b1'], HPAD),
        w2=pad_mat(params['w2'], HPAD, CPAD).astype(bf16),
        b2=pad_vec(params['b2'], CPAD),
        lnfw=jnp.pad(params['lnf_w'], ((0, 0), (0, CPAD - C))),
        lnfb=jnp.pad(params['lnf_b'], ((0, 0), (0, CPAD - C))),
        wlm=jnp.pad(params['wlm'], ((0, CPAD - C), (0, VPAD - V))).astype(bf16),
        blm=jnp.pad(params['blm'], ((0, 0), (0, VPAD - V))),
    )


# ----------------------------- wrapper ---------------------------------------
def gpt_forward(prepped, idx):
    """idx: (B, T) int32 token ids. Returns logits (B, T, vocab)."""
    dims = prepped['dims']
    C, hs, V = dims['C'], dims['hs'], dims['V']
    CPAD, VPAD = dims['CPAD'], dims['VPAD']
    B, T = idx.shape
    N = B * T

    # glue: embedding gathers in plain JAX, flatten (B,T,C) -> lane-dense (N, CPAD)
    x = prepped['tok_emb'][idx] + prepped['pos_emb'][:T]       # (B, T, C)
    x = x.reshape(N, C).astype(jnp.float32)
    x = jnp.pad(x, ((0, 0), (0, CPAD - C)))                    # padded cols exactly 0

    # block-diagonal causal additive mask over the flattened token axis
    r = np.arange(N)
    ok = ((r[:, None] // T) == (r[None, :] // T)) & (r[None, :] <= r[:, None])
    mask_bias = jnp.asarray(np.where(ok, 0.0, -1e30).astype(np.float32))

    args = (x, mask_bias,
            prepped['ln1w'], prepped['ln1b'],
            prepped['wqkv'],
            prepped['wproj'], prepped['bproj'],
            prepped['ln2w'], prepped['ln2b'],
            prepped['w1'], prepped['b1'], prepped['w2'], prepped['b2'],
            prepped['lnfw'], prepped['lnfb'],
            prepped['wlm'], prepped['blm'])

    vmem = pl.BlockSpec(memory_space=pltpu.MemorySpace.VMEM)   # whole-array, VMEM resident
    kernel = functools.partial(gpt_kernel, n_embd=C, head_size=hs)

    # single grid step: whole forward in one kernel invocation
    logits_pad = pl.pallas_call(
        kernel,
        out_shape=jax.ShapeDtypeStruct((N, VPAD), jnp.float32),
        in_specs=[vmem] * len(args),
        out_specs=vmem,
    )(*args)
    # padded vocab columns are exactly 0 and sliced off here (must be masked if
    # a softmax/loss is ever fused into the kernel).
    return logits_pad[:, :V].reshape(B, T, V)


# ----------------------------- param init ------------------------------------
def init_params(key, vocab_size, n_embd, n_head, n_layer, block_size):
    head_size = n_embd // n_head
    ks = jax.random.split(key, 16)
    std = 0.02
    f32 = jnp.float32

    def nrm(k, shape):
        return (std * jax.random.normal(k, shape)).astype(f32)

    params = dict(
        tok_emb=nrm(ks[0], (vocab_size, n_embd)),
        pos_emb=nrm(ks[1], (block_size, n_embd)),
        # per-layer, per-head attention projections (no bias, like nanoGPT Head)
        wq=nrm(ks[2], (n_layer, n_head, n_embd, head_size)),
        wk=nrm(ks[3], (n_layer, n_head, n_embd, head_size)),
        wv=nrm(ks[4], (n_layer, n_head, n_embd, head_size)),
        # output projection split per-head: concat(heads) @ Wproj
        wproj=nrm(ks[5], (n_layer, n_head, head_size, n_embd)),
        bproj=jnp.zeros((n_layer, n_embd), f32),
        ln1_w=jnp.ones((n_layer, n_embd), f32),
        ln1_b=jnp.zeros((n_layer, n_embd), f32),
        ln2_w=jnp.ones((n_layer, n_embd), f32),
        ln2_b=jnp.zeros((n_layer, n_embd), f32),
        w1=nrm(ks[6], (n_layer, n_embd, 4 * n_embd)),
        b1=jnp.zeros((n_layer, 4 * n_embd), f32),
        w2=nrm(ks[7], (n_layer, 4 * n_embd, n_embd)),
        b2=jnp.zeros((n_layer, n_embd), f32),
        lnf_w=jnp.ones((1, n_embd), f32),
        lnf_b=jnp.zeros((1, n_embd), f32),
        wlm=nrm(ks[8], (n_embd, vocab_size)),
        blm=jnp.zeros((1, vocab_size), f32),
    )
    return params


# ----------------------------- pure-JAX reference -----------------------------
def gpt_reference(params, idx):
    B, T = idx.shape
    x = params['tok_emb'][idx] + params['pos_emb'][:T]
    n_layer, n_head = params['wq'].shape[0], params['wq'].shape[1]
    hs = params['wq'].shape[3]

    def ln(v, w, b):
        mu = v.mean(-1, keepdims=True)
        var = ((v - mu) ** 2).mean(-1, keepdims=True)
        return (v - mu) / jnp.sqrt(var + LN_EPS) * w + b

    mask = jnp.tril(jnp.ones((T, T), bool))
    for l in range(n_layer):
        xln = ln(x, params['ln1_w'][l], params['ln1_b'][l])
        attn = jnp.zeros_like(x)
        for h in range(n_head):
            q = xln @ params['wq'][l, h]
            k = xln @ params['wk'][l, h]
            v = xln @ params['wv'][l, h]
            s = jnp.einsum('bth,bsh->bts', q, k) / jnp.sqrt(hs)
            s = jnp.where(mask, s, -jnp.inf)
            p = jax.nn.softmax(s, axis=-1)
            attn = attn + jnp.einsum('bts,bsh->bth', p, v) @ params['wproj'][l, h]
        x = x + attn + params['bproj'][l]
        xln2 = ln(x, params['ln2_w'][l], params['ln2_b'][l])
        x = x + jnp.maximum(xln2 @ params['w1'][l] + params['b1'][l], 0.0) @ params['w2'][l] + params['b2'][l]
    xf = ln(x, params['lnf_w'][0], params['lnf_b'][0])
    return xf @ params['wlm'] + params['blm'][0]


# ----------------------------- main -------------------------------------------
if __name__ == "__main__":
    key = jax.random.PRNGKey(0)
    pkey, dkey = jax.random.split(key)

    params = init_params(pkey, VOCAB_SIZE, CONFIG['n_embd'], CONFIG['n_head'],
                         CONFIG['n_layer'], CONFIG['block_size'])
    prepped = prepare_params(params)          # one-time weight fusion / padding

    B, T = 2, CONFIG['block_size']
    idx = jax.random.randint(dkey, (B, T), 0, VOCAB_SIZE, dtype=jnp.int32)

    logits = gpt_forward(prepped, idx)
    logits = jax.block_until_ready(logits)

    ref = gpt_reference(params, idx)
    assert logits.shape == (B, T, VOCAB_SIZE)
    assert jnp.allclose(logits, ref, atol=2e-2, rtol=2e-2), "mismatch vs reference"

    print("KERNEL_OK")
</pallas_src>

<mosaic_0001>
module attributes {stable_mosaic.version = 11 : i64} {
  func.func @gpt_kernel(%arg0: memref<16x128xf32, #tpu.memory_space<vmem>>, %arg1: memref<16x16xf32, #tpu.memory_space<vmem>>, %arg2: memref<2x1x128xf32, #tpu.memory_space<vmem>>, %arg3: memref<2x1x128xf32, #tpu.memory_space<vmem>>, %arg4: memref<2x128x1536xbf16, #tpu.memory_space<vmem>>, %arg5: memref<2x4x128x128xbf16, #tpu.memory_space<vmem>>, %arg6: memref<2x1x128xf32, #tpu.memory_space<vmem>>, %arg7: memref<2x1x128xf32, #tpu.memory_space<vmem>>, %arg8: memref<2x1x128xf32, #tpu.memory_space<vmem>>, %arg9: memref<2x128x128xbf16, #tpu.memory_space<vmem>>, %arg10: memref<2x1x128xf32, #tpu.memory_space<vmem>>, %arg11: memref<2x128x128xbf16, #tpu.memory_space<vmem>>, %arg12: memref<2x1x128xf32, #tpu.memory_space<vmem>>, %arg13: memref<1x128xf32, #tpu.memory_space<vmem>>, %arg14: memref<1x128xf32, #tpu.memory_space<vmem>>, %arg15: memref<128x128xbf16, #tpu.memory_space<vmem>>, %arg16: memref<1x128xf32, #tpu.memory_space<vmem>>, %arg17: memref<16x128xf32, #tpu.memory_space<vmem>>) attributes {dimension_semantics = [], scalar_prefetch = 0 : i64, scratch_operands = 0 : i64, tpu.core_type = #tpu.core_type<tc>} {
    %c0 = arith.constant 0 : index
    %c0_0 = arith.constant 0 : index
    %0 = vector.load %arg0[%c0, %c0_0] : memref<16x128xf32, #tpu.memory_space<vmem>>, vector<16x128xf32>
    %c0_1 = arith.constant 0 : index
    %c0_2 = arith.constant 0 : index
    %1 = vector.load %arg1[%c0_1, %c0_2] : memref<16x16xf32, #tpu.memory_space<vmem>>, vector<16x16xf32>
    %2 = tpu.iota {dimensions = array<i32: 1>} : vector<1x128xi32>
    %c32_i32 = arith.constant 32 : i32
    %3 = vector.broadcast %c32_i32 : i32 to vector<1x128xi32>
    %4 = arith.cmpi slt, %2, %3 : vector<1x128xi32>
    %5 = arith.extui %4 : vector<1x128xi1> to vector<1x128xi32>
    %6 = arith.sitofp %5 : vector<1x128xi32> to vector<1x128xf32>
    %c0_3 = arith.constant 0 : index
    %c0_4 = arith.constant 0 : index
    %c0_5 = arith.constant 0 : index
    %7 = vector.load %arg2[%c0_3, %c0_4, %c0_5] : memref<2x1x128xf32, #tpu.memory_space<vmem>>, vector<1x1x128xf32>
    %8 = vector.shape_cast %7 : vector<1x1x128xf32> to vector<1x128xf32>
    %c0_6 = arith.constant 0 : index
    %c0_7 = arith.constant 0 : index
    %c0_8 = arith.constant 0 : index
    %9 = vector.load %arg3[%c0_6, %c0_7, %c0_8] : memref<2x1x128xf32, #tpu.memory_space<vmem>>, vector<1x1x128xf32>
    %10 = vector.shape_cast %9 : vector<1x1x128xf32> to vector<1x128xf32>
    %cst = arith.constant dense<0.000000e+00> : vector<16xf32>
    %11 = vector.multi_reduction <add>, %0, %cst [1] : vector<16x128xf32> to vector<16xf32>
    %12 = vector.shape_cast %11 : vector<16xf32> to vector<16x1xf32>
    %cst_9 = arith.constant 3.125000e-02 : f32
    %13 = vector.broadcast %cst_9 : f32 to vector<16x1xf32>
    %14 = arith.mulf %12, %13 : vector<16x1xf32>
    %15 = vector.broadcast %14 : vector<16x1xf32> to vector<16x128xf32>
    %16 = arith.subf %0, %15 : vector<16x128xf32>
    %17 = vector.broadcast %6 : vector<1x128xf32> to vector<16x128xf32>
    %18 = arith.mulf %16, %17 : vector<16x128xf32>
    %19 = arith.mulf %18, %18 : vector<16x128xf32>
    %cst_10 = arith.constant dense<0.000000e+00> : vector<16xf32>
    %20 = vector.multi_reduction <add>, %19, %cst_10 [1] : vector<16x128xf32> to vector<16xf32>
    %21 = vector.shape_cast %20 : vector<16xf32> to vector<16x1xf32>
    %cst_11 = arith.constant 3.125000e-02 : f32
    %22 = vector.broadcast %cst_11 : f32 to vector<16x1xf32>
    %23 = arith.mulf %21, %22 : vector<16x1xf32>
    %cst_12 = arith.constant 9.99999974E-6 : f32
    %24 = vector.broadcast %cst_12 : f32 to vector<16x1xf32>
    %25 = arith.addf %23, %24 : vector<16x1xf32>
    %26 = math.rsqrt %25 : vector<16x1xf32>
    %27 = vector.broadcast %26 : vector<16x1xf32> to vector<16x128xf32>
    %28 = arith.mulf %18, %27 : vector<16x128xf32>
    %29 = vector.broadcast %8 : vector<1x128xf32> to vector<16x128xf32>
    %30 = arith.mulf %28, %29 : vector<16x128xf32>
    %31 = vector.broadcast %10 : vector<1x128xf32> to vector<16x128xf32>
    %32 = arith.addf %30, %31 : vector<16x128xf32>
    %33 = arith.truncf %32 : vector<16x128xf32> to vector<16x128xbf16>
    %c0_13 = arith.constant 0 : index
    %c0_14 = arith.constant 0 : index
    %c0_15 = arith.constant 0 : index
    %34 = vector.load %arg4[%c0_13, %c0_14, %c0_15] : memref<2x128x1536xbf16, #tpu.memory_space<vmem>>, vector<1x128x1536xbf16>
    %35 = vector.shape_cast %34 : vector<1x128x1536xbf16> to vector<128x1536xbf16>
    %cst_16 = arith.constant dense<0.000000e+00> : vector<16x1536xf32>
    %36 = tpu.matmul %33, %35, %cst_16 {dimension_numbers = #tpu.dot_dimension_numbers<[1], [0], [0], [1], [0, 0, 1, 1], [], []>} : vector<16x128xbf16>, vector<128x1536xbf16>, vector<16x1536xf32> -> vector<16x1536xf32>
    %cst_17 = arith.constant 0.000000e+00 : f32
    %37 = vector.broadcast %cst_17 : f32 to vector<16x128xf32>
    %38 = vector.extract_strided_slice %36 {offsets = [0, 0], sizes = [16, 128], strides = [1, 1]} : vector<16x1536xf32> to vector<16x128xf32>
    %39 = vector.extract_strided_slice %36 {offsets = [0, 512], sizes = [16, 128], strides = [1, 1]} : vector<16x1536xf32> to vector<16x128xf32>
    %40 = vector.extract_strided_slice %36 {offsets = [0, 1024], sizes = [16, 128], strides = [1, 1]} : vector<16x1536xf32> to vector<16x128xf32>
    %41 = arith.truncf %38 : vector<16x128xf32> to vector<16x128xbf16>
    %42 = arith.truncf %39 : vector<16x128xf32> to vector<16x128xbf16>
    %cst_18 = arith.constant dense<0.000000e+00> : vector<16x16xf32>
    %43 = tpu.matmul %41, %42, %cst_18 {dimension_numbers = #tpu.dot_dimension_numbers<[1], [1], [0], [0], [0, 0, 1, 0], [], []>} : vector<16x128xbf16>, vector<16x128xbf16>, vector<16x16xf32> -> vector<16x16xf32>
    %cst_19 = arith.constant 0.353553385 : f32
    %44 = vector.broadcast %cst_19 : f32 to vector<16x16xf32>
    %45 = arith.mulf %43, %44 : vector<16x16xf32>
    %46 = arith.addf %45, %1 : vector<16x16xf32>
    %cst_20 = arith.constant dense<0xFF800000> : vector<16xf32>
    %47 = vector.multi_reduction <maximumf>, %46, %cst_20 [1] : vector<16x16xf32> to vector<16xf32>
    %48 = vector.shape_cast %47 : vector<16xf32> to vector<16x1xf32>
    %49 = vector.broadcast %48 : vector<16x1xf32> to vector<16x16xf32>
    %50 = arith.subf %46, %49 : vector<16x16xf32>
    %51 = math.exp %50 : vector<16x16xf32>
    %cst_21 = arith.constant dense<0.000000e+00> : vector<16xf32>
    %52 = vector.multi_reduction <add>, %51, %cst_21 [1] : vector<16x16xf32> to vector<16xf32>
    %53 = vector.shape_cast %52 : vector<16xf32> to vector<16x1xf32>
    %54 = tpu.reciprocal %53 {approx = true} : vector<16x1xf32> -> vector<16x1xf32>
    %55 = vector.broadcast %54 : vector<16x1xf32> to vector<16x16xf32>
    %56 = arith.mulf %51, %55 : vector<16x16xf32>
    %57 = arith.truncf %56 : vector<16x16xf32> to vector<16x16xbf16>
    %58 = arith.truncf %40 : vector<16x128xf32> to vector<16x128xbf16>
    %cst_22 = arith.constant dense<0.000000e+00> : vector<16x128xf32>
    %59 = tpu.matmul %57, %58, %cst_22 {dimension_numbers = #tpu.dot_dimension_numbers<[1], [0], [0], [1], [0, 0, 1, 1], [], []>} : vector<16x16xbf16>, vector<16x128xbf16>, vector<16x128xf32> -> vector<16x128xf32>
    %60 = arith.truncf %59 : vector<16x128xf32> to vector<16x128xbf16>
    %c0_23 = arith.constant 0 : index
    %c0_24 = arith.constant 0 : index
    %c0_25 = arith.constant 0 : index
    %c0_26 = arith.constant 0 : index
    %61 = vector.load %arg5[%c0_23, %c0_24, %c0_25, %c0_26] : memref<2x4x128x128xbf16, #tpu.memory_space<vmem>>, vector<1x1x128x128xbf16>
    %62 = vector.shape_cast %61 : vector<1x1x128x128xbf16> to vector<128x128xbf16>
    %cst_27 = arith.constant dense<0.000000e+00> : vector<16x128xf32>
    %63 = tpu.matmul %60, %62, %cst_27 {dimension_numbers = #tpu.dot_dimension_numbers<[1], [0], [0], [1], [0, 0, 1, 1], [], []>} : vector<16x128xbf16>, vector<128x128xbf16>, vector<16x128xf32> -> vector<16x128xf32>
    %64 = arith.addf %37, %63 : vector<16x128xf32>
    %65 = vector.extract_strided_slice %36 {offsets = [0, 128], sizes = [16, 128], strides = [1, 1]} : vector<16x1536xf32> to vector<16x128xf32>
    %66 = vector.extract_strided_slice %36 {offsets = [0, 640], sizes = [16, 128], strides = [1, 1]} : vector<16x1536xf32> to vector<16x128xf32>
    %67 = vector.extract_strided_slice %36 {offsets = [0, 1152], sizes = [16, 128], strides = [1, 1]} : vector<16x1536xf32> to vector<16x128xf32>
    %68 = arith.truncf %65 : vector<16x128xf32> to vector<16x128xbf16>
    %69 = arith.truncf %66 : vector<16x128xf32> to vector<16x128xbf16>
    %cst_28 = arith.constant dense<0.000000e+00> : vector<16x16xf32>
    %70 = tpu.matmul %68, %69, %cst_28 {dimension_numbers = #tpu.dot_dimension_numbers<[1], [1], [0], [0], [0, 0, 1, 0], [], []>} : vector<16x128xbf16>, vector<16x128xbf16>, vector<16x16xf32> -> vector<16x16xf32>
    %cst_29 = arith.constant 0.353553385 : f32
    %71 = vector.broadcast %cst_29 : f32 to vector<16x16xf32>
    %72 = arith.mulf %70, %71 : vector<16x16xf32>
    %73 = arith.addf %72, %1 : vector<16x16xf32>
    %cst_30 = arith.constant dense<0xFF800000> : vector<16xf32>
    %74 = vector.multi_reduction <maximumf>, %73, %cst_30 [1] : vector<16x16xf32> to vector<16xf32>
    %75 = vector.shape_cast %74 : vector<16xf32> to vector<16x1xf32>
    %76 = vector.broadcast %75 : vector<16x1xf32> to vector<16x16xf32>
    %77 = arith.subf %73, %76 : vector<16x16xf32>
    %78 = math.exp %77 : vector<16x16xf32>
    %cst_31 = arith.constant dense<0.000000e+00> : vector<16xf32>
    %79 = vector.multi_reduction <add>, %78, %cst_31 [1] : vector<16x16xf32> to vector<16xf32>
    %80 = vector.shape_cast %79 : vector<16xf32> to vector<16x1xf32>
    %81 = tpu.reciprocal %80 {approx = true} : vector<16x1xf32> -> vector<16x1xf32>
    %82 = vector.broadcast %81 : vector<16x1xf32> to vector<16x16xf32>
    %83 = arith.mulf %78, %82 : vector<16x16xf32>
    %84 = arith.truncf %83 : vector<16x16xf32> to vector<16x16xbf16>
    %85 = arith.truncf %67 : vector<16x128xf32> to vector<16x128xbf16>
    %cst_32 = arith.constant dense<0.000000e+00> : vector<16x128xf32>
    %86 = tpu.matmul %84, %85, %cst_32 {dimension_numbers = #tpu.dot_dimension_numbers<[1], [0], [0], [1], [0, 0, 1, 1], [], []>} : vector<16x16xbf16>, vector<16x128xbf16>, vector<16x128xf32> -> vector<16x128xf32>
    %87 = arith.truncf %86 : vector<16x128xf32> to vector<16x128xbf16>
    %c0_33 = arith.constant 0 : index
    %c1 = arith.constant 1 : index
    %c0_34 = arith.constant 0 : index
    %c0_35 = arith.constant 0 : index
    %88 = vector.load %arg5[%c0_33, %c1, %c0_34, %c0_35] : memref<2x4x128x128xbf16, #tpu.memory_space<vmem>>, vector<1x1x128x128xbf16>
    %89 = vector.shape_cast %88 : vector<1x1x128x128xbf16> to vector<128x128xbf16>
    %cst_36 = arith.constant dense<0.000000e+00> : vector<16x128xf32>
    %90 = tpu.matmul %87, %89, %cst_36 {dimension_numbers = #tpu.dot_dimension_numbers<[1], [0], [0], [1], [0, 0, 1, 1], [], []>} : vector<16x128xbf16>, vector<128x128xbf16>, vector<16x128xf32> -> vector<16x128xf32>
    %91 = arith.addf %64, %90 : vector<16x128xf32>
    %92 = vector.extract_strided_slice %36 {offsets = [0, 256], sizes = [16, 128], strides = [1, 1]} : vector<16x1536xf32> to vector<16x128xf32>
    %93 = vector.extract_strided_slice %36 {offsets = [0, 768], sizes = [16, 128], strides = [1, 1]} : vector<16x1536xf32> to vector<16x128xf32>
    %94 = vector.extract_strided_slice %36 {offsets = [0, 1280], sizes = [16, 128], strides = [1, 1]} : vector<16x1536xf32> to vector<16x128xf32>
    %95 = arith.truncf %92 : vector<16x128xf32> to vector<16x128xbf16>
    %96 = arith.truncf %93 : vector<16x128xf32> to vector<16x128xbf16>
    %cst_37 = arith.constant dense<0.000000e+00> : vector<16x16xf32>
    %97 = tpu.matmul %95, %96, %cst_37 {dimension_numbers = #tpu.dot_dimension_numbers<[1], [1], [0], [0], [0, 0, 1, 0], [], []>} : vector<16x128xbf16>, vector<16x128xbf16>, vector<16x16xf32> -> vector<16x16xf32>
    %cst_38 = arith.constant 0.353553385 : f32
    %98 = vector.broadcast %cst_38 : f32 to vector<16x16xf32>
    %99 = arith.mulf %97, %98 : vector<16x16xf32>
    %100 = arith.addf %99, %1 : vector<16x16xf32>
    %cst_39 = arith.constant dense<0xFF800000> : vector<16xf32>
    %101 = vector.multi_reduction <maximumf>, %100, %cst_39 [1] : vector<16x16xf32> to vector<16xf32>
    %102 = vector.shape_cast %101 : vector<16xf32> to vector<16x1xf32>
    %103 = vector.broadcast %102 : vector<16x1xf32> to vector<16x16xf32>
    %104 = arith.subf %100, %103 : vector<16x16xf32>
    %105 = math.exp %104 : vector<16x16xf32>
    %cst_40 = arith.constant dense<0.000000e+00> : vector<16xf32>
    %106 = vector.multi_reduction <add>, %105, %cst_40 [1] : vector<16x16xf32> to vector<16xf32>
    %107 = vector.shape_cast %106 : vector<16xf32> to vector<16x1xf32>
    %108 = tpu.reciprocal %107 {approx = true} : vector<16x1xf32> -> vector<16x1xf32>
    %109 = vector.broadcast %108 : vector<16x1xf32> to vector<16x16xf32>
    %110 = arith.mulf %105, %109 : vector<16x16xf32>
    %111 = arith.truncf %110 : vector<16x16xf32> to vector<16x16xbf16>
    %112 = arith.truncf %94 : vector<16x128xf32> to vector<16x128xbf16>
    %cst_41 = arith.constant dense<0.000000e+00> : vector<16x128xf32>
    %113 = tpu.matmul %111, %112, %cst_41 {dimension_numbers = #tpu.dot_dimension_numbers<[1], [0], [0], [1], [0, 0, 1, 1], [], []>} : vector<16x16xbf16>, vector<16x128xbf16>, vector<16x128xf32> -> vector<16x128xf32>
    %114 = arith.truncf %113 : vector<16x128xf32> to vector<16x128xbf16>
    %c0_42 = arith.constant 0 : index
    %c2 = arith.constant 2 : index
    %c0_43 = arith.constant 0 : index
    %c0_44 = arith.constant 0 : index
    %115 = vector.load %arg5[%c0_42, %c2, %c0_43, %c0_44] : memref<2x4x128x128xbf16, #tpu.memory_space<vmem>>, vector<1x1x128x128xbf16>
    %116 = vector.shape_cast %115 : vector<1x1x128x128xbf16> to vector<128x128xbf16>
    %cst_45 = arith.constant dense<0.000000e+00> : vector<16x128xf32>
    %117 = tpu.matmul %114, %116, %cst_45 {dimension_numbers = #tpu.dot_dimension_numbers<[1], [0], [0], [1], [0, 0, 1, 1], [], []>} : vector<16x128xbf16>, vector<128x128xbf16>, vector<16x128xf32> -> vector<16x128xf32>
    %118 = arith.addf %91, %117 : vector<16x128xf32>
    %119 = vector.extract_strided_slice %36 {offsets = [0, 384], sizes = [16, 128], strides = [1, 1]} : vector<16x1536xf32> to vector<16x128xf32>
    %120 = vector.extract_strided_slice %36 {offsets = [0, 896], sizes = [16, 128], strides = [1, 1]} : vector<16x1536xf32> to vector<16x128xf32>
    %121 = vector.extract_strided_slice %36 {offsets = [0, 1408], sizes = [16, 128], strides = [1, 1]} : vector<16x1536xf32> to vector<16x128xf32>
    %122 = arith.truncf %119 : vector<16x128xf32> to vector<16x128xbf16>
    %123 = arith.truncf %120 : vector<16x128xf32> to vector<16x128xbf16>
    %cst_46 = arith.constant dense<0.000000e+00> : vector<16x16xf32>
    %124 = tpu.matmul %122, %123, %cst_46 {dimension_numbers = #tpu.dot_dimension_numbers<[1], [1], [0], [0], [0, 0, 1, 0], [], []>} : vector<16x128xbf16>, vector<16x128xbf16>, vector<16x16xf32> -> vector<16x16xf32>
    %cst_47 = arith.constant 0.353553385 : f32
    %125 = vector.broadcast %cst_47 : f32 to vector<16x16xf32>
    %126 = arith.mulf %124, %125 : vector<16x16xf32>
    %127 = arith.addf %126, %1 : vector<16x16xf32>
    %cst_48 = arith.constant dense<0xFF800000> : vector<16xf32>
    %128 = vector.multi_reduction <maximumf>, %127, %cst_48 [1] : vector<16x16xf32> to vector<16xf32>
    %129 = vector.shape_cast %128 : vector<16xf32> to vector<16x1xf32>
    %130 = vector.broadcast %129 : vector<16x1xf32> to vector<16x16xf32>
    %131 = arith.subf %127, %130 : vector<16x16xf32>
    %132 = math.exp %131 : vector<16x16xf32>
    %cst_49 = arith.constant dense<0.000000e+00> : vector<16xf32>
    %133 = vector.multi_reduction <add>, %132, %cst_49 [1] : vector<16x16xf32> to vector<16xf32>
    %134 = vector.shape_cast %133 : vector<16xf32> to vector<16x1xf32>
    %135 = tpu.reciprocal %134 {approx = true} : vector<16x1xf32> -> vector<16x1xf32>
    %136 = vector.broadcast %135 : vector<16x1xf32> to vector<16x16xf32>
    %137 = arith.mulf %132, %136 : vector<16x16xf32>
    %138 = arith.truncf %137 : vector<16x16xf32> to vector<16x16xbf16>
    %139 = arith.truncf %121 : vector<16x128xf32> to vector<16x128xbf16>
    %cst_50 = arith.constant dense<0.000000e+00> : vector<16x128xf32>
    %140 = tpu.matmul %138, %139, %cst_50 {dimension_numbers = #tpu.dot_dimension_numbers<[1], [0], [0], [1], [0, 0, 1, 1], [], []>} : vector<16x16xbf16>, vector<16x128xbf16>, vector<16x128xf32> -> vector<16x128xf32>
    %141 = arith.truncf %140 : vector<16x128xf32> to vector<16x128xbf16>
    %c0_51 = arith.constant 0 : index
    %c3 = arith.constant 3 : index
    %c0_52 = arith.constant 0 : index
    %c0_53 = arith.constant 0 : index
    %142 = vector.load %arg5[%c0_51, %c3, %c0_52, %c0_53] : memref<2x4x128x128xbf16, #tpu.memory_space<vmem>>, vector<1x1x128x128xbf16>
    %143 = vector.shape_cast %142 : vector<1x1x128x128xbf16> to vector<128x128xbf16>
    %cst_54 = arith.constant dense<0.000000e+00> : vector<16x128xf32>
    %144 = tpu.matmul %141, %143, %cst_54 {dimension_numbers = #tpu.dot_dimension_numbers<[1], [0], [0], [1], [0, 0, 1, 1], [], []>} : vector<16x128xbf16>, vector<128x128xbf16>, vector<16x128xf32> -> vector<16x128xf32>
    %145 = arith.addf %118, %144 : vector<16x128xf32>
    %146 = arith.addf %0, %145 : vector<16x128xf32>
    %c0_55 = arith.constant 0 : index
    %c0_56 = arith.constant 0 : index
    %c0_57 = arith.constant 0 : index
    %147 = vector.load %arg6[%c0_55, %c0_56, %c0_57] : memref<2x1x128xf32, #tpu.memory_space<vmem>>, vector<1x1x128xf32>
    %148 = vector.shape_cast %147 : vector<1x1x128xf32> to vector<1x128xf32>
    %149 = vector.broadcast %148 : vector<1x128xf32> to vector<16x128xf32>
    %150 = arith.addf %146, %149 : vector<16x128xf32>
    %c0_58 = arith.constant 0 : index
    %c0_59 = arith.constant 0 : index
    %c0_60 = arith.constant 0 : index
    %151 = vector.load %arg7[%c0_58, %c0_59, %c0_60] : memref<2x1x128xf32, #tpu.memory_space<vmem>>, vector<1x1x128xf32>
    %152 = vector.shape_cast %151 : vector<1x1x128xf32> to vector<1x128xf32>
    %c0_61 = arith.constant 0 : index
    %c0_62 = arith.constant 0 : index
    %c0_63 = arith.constant 0 : index
    %153 = vector.load %arg8[%c0_61, %c0_62, %c0_63] : memref<2x1x128xf32, #tpu.memory_space<vmem>>, vector<1x1x128xf32>
    %154 = vector.shape_cast %153 : vector<1x1x128xf32> to vector<1x128xf32>
    %cst_64 = arith.constant dense<0.000000e+00> : vector<16xf32>
    %155 = vector.multi_reduction <add>, %150, %cst_64 [1] : vector<16x128xf32> to vector<16xf32>
    %156 = vector.shape_cast %155 : vector<16xf32> to vector<16x1xf32>
    %cst_65 = arith.constant 3.125000e-02 : f32
    %157 = vector.broadcast %cst_65 : f32 to vector<16x1xf32>
    %158 = arith.mulf %156, %157 : vector<16x1xf32>
    %159 = vector.broadcast %158 : vector<16x1xf32> to vector<16x128xf32>
    %160 = arith.subf %150, %159 : vector<16x128xf32>
    %161 = vector.broadcast %6 : vector<1x128xf32> to vector<16x128xf32>
    %162 = arith.mulf %160, %161 : vector<16x128xf32>
    %163 = arith.mulf %162, %162 : vector<16x128xf32>
    %cst_66 = arith.constant dense<0.000000e+00> : vector<16xf32>
    %164 = vector.multi_reduction <add>, %163, %cst_66 [1] : vector<16x128xf32> to vector<16xf32>
    %165 = vector.shape_cast %164 : vector<16xf32> to vector<16x1xf32>
    %cst_67 = arith.constant 3.125000e-02 : f32
    %166 = vector.broadcast %cst_67 : f32 to vector<16x1xf32>
    %167 = arith.mulf %165, %166 : vector<16x1xf32>
    %cst_68 = arith.constant 9.99999974E-6 : f32
    %168 = vector.broadcast %cst_68 : f32 to vector<16x1xf32>
    %169 = arith.addf %167, %168 : vector<16x1xf32>
    %170 = math.rsqrt %169 : vector<16x1xf32>
    %171 = vector.broadcast %170 : vector<16x1xf32> to vector<16x128xf32>
    %172 = arith.mulf %162, %171 : vector<16x128xf32>
    %173 = vector.broadcast %152 : vector<1x128xf32> to vector<16x128xf32>
    %174 = arith.mulf %172, %173 : vector<16x128xf32>
    %175 = vector.broadcast %154 : vector<1x128xf32> to vector<16x128xf32>
    %176 = arith.addf %174, %175 : vector<16x128xf32>
    %177 = arith.truncf %176 : vector<16x128xf32> to vector<16x128xbf16>
    %c0_69 = arith.constant 0 : index
    %c0_70 = arith.constant 0 : index
    %c0_71 = arith.constant 0 : index
    %178 = vector.load %arg9[%c0_69, %c0_70, %c0_71] : memref<2x128x128xbf16, #tpu.memory_space<vmem>>, vector<1x128x128xbf16>
    %179 = vector.shape_cast %178 : vector<1x128x128xbf16> to vector<128x128xbf16>
    %cst_72 = arith.constant dense<0.000000e+00> : vector<16x128xf32>
    %180 = tpu.matmul %177, %179, %cst_72 {dimension_numbers = #tpu.dot_dimension_numbers<[1], [0], [0], [1], [0, 0, 1, 1], [], []>} : vector<16x128xbf16>, vector<128x128xbf16>, vector<16x128xf32> -> vector<16x128xf32>
    %c0_73 = arith.constant 0 : index
    %c0_74 = arith.constant 0 : index
    %c0_75 = arith.constant 0 : index
    %181 = vector.load %arg10[%c0_73, %c0_74, %c0_75] : memref<2x1x128xf32, #tpu.memory_space<vmem>>, vector<1x1x128xf32>
    %182 = vector.shape_cast %181 : vector<1x1x128xf32> to vector<1x128xf32>
    %183 = vector.broadcast %182 : vector<1x128xf32> to vector<16x128xf32>
    %184 = arith.addf %180, %183 : vector<16x128xf32>
    %cst_76 = arith.constant 0.000000e+00 : f32
    %185 = vector.broadcast %cst_76 : f32 to vector<16x128xf32>
    %186 = arith.maximumf %184, %185 : vector<16x128xf32>
    %187 = arith.truncf %186 : vector<16x128xf32> to vector<16x128xbf16>
    %c0_77 = arith.constant 0 : index
    %c0_78 = arith.constant 0 : index
    %c0_79 = arith.constant 0 : index
    %188 = vector.load %arg11[%c0_77, %c0_78, %c0_79] : memref<2x128x128xbf16, #tpu.memory_space<vmem>>, vector<1x128x128xbf16>
    %189 = vector.shape_cast %188 : vector<1x128x128xbf16> to vector<128x128xbf16>
    %cst_80 = arith.constant dense<0.000000e+00> : vector<16x128xf32>
    %190 = tpu.matmul %187, %189, %cst_80 {dimension_numbers = #tpu.dot_dimension_numbers<[1], [0], [0], [1], [0, 0, 1, 1], [], []>} : vector<16x128xbf16>, vector<128x128xbf16>, vector<16x128xf32> -> vector<16x128xf32>
    %191 = arith.addf %150, %190 : vector<16x128xf32>
    %c0_81 = arith.constant 0 : index
    %c0_82 = arith.constant 0 : index
    %c0_83 = arith.constant 0 : index
    %192 = vector.load %arg12[%c0_81, %c0_82, %c0_83] : memref<2x1x128xf32, #tpu.memory_space<vmem>>, vector<1x1x128xf32>
    %193 = vector.shape_cast %192 : vector<1x1x128xf32> to vector<1x128xf32>
    %194 = vector.broadcast %193 : vector<1x128xf32> to vector<16x128xf32>
    %195 = arith.addf %191, %194 : vector<16x128xf32>
    %c1_84 = arith.constant 1 : index
    %c0_85 = arith.constant 0 : index
    %c0_86 = arith.constant 0 : index
    %196 = vector.load %arg2[%c1_84, %c0_85, %c0_86] : memref<2x1x128xf32, #tpu.memory_space<vmem>>, vector<1x1x128xf32>
    %197 = vector.shape_cast %196 : vector<1x1x128xf32> to vector<1x128xf32>
    %c1_87 = arith.constant 1 : index
    %c0_88 = arith.constant 0 : index
    %c0_89 = arith.constant 0 : index
    %198 = vector.load %arg3[%c1_87, %c0_88, %c0_89] : memref<2x1x128xf32, #tpu.memory_space<vmem>>, vector<1x1x128xf32>
    %199 = vector.shape_cast %198 : vector<1x1x128xf32> to vector<1x128xf32>
    %cst_90 = arith.constant dense<0.000000e+00> : vector<16xf32>
    %200 = vector.multi_reduction <add>, %195, %cst_90 [1] : vector<16x128xf32> to vector<16xf32>
    %201 = vector.shape_cast %200 : vector<16xf32> to vector<16x1xf32>
    %cst_91 = arith.constant 3.125000e-02 : f32
    %202 = vector.broadcast %cst_91 : f32 to vector<16x1xf32>
    %203 = arith.mulf %201, %202 : vector<16x1xf32>
    %204 = vector.broadcast %203 : vector<16x1xf32> to vector<16x128xf32>
    %205 = arith.subf %195, %204 : vector<16x128xf32>
    %206 = vector.broadcast %6 : vector<1x128xf32> to vector<16x128xf32>
    %207 = arith.mulf %205, %206 : vector<16x128xf32>
    %208 = arith.mulf %207, %207 : vector<16x128xf32>
    %cst_92 = arith.constant dense<0.000000e+00> : vector<16xf32>
    %209 = vector.multi_reduction <add>, %208, %cst_92 [1] : vector<16x128xf32> to vector<16xf32>
    %210 = vector.shape_cast %209 : vector<16xf32> to vector<16x1xf32>
    %cst_93 = arith.constant 3.125000e-02 : f32
    %211 = vector.broadcast %cst_93 : f32 to vector<16x1xf32>
    %212 = arith.mulf %210, %211 : vector<16x1xf32>
    %cst_94 = arith.constant 9.99999974E-6 : f32
    %213 = vector.broadcast %cst_94 : f32 to vector<16x1xf32>
    %214 = arith.addf %212, %213 : vector<16x1xf32>
    %215 = math.rsqrt %214 : vector<16x1xf32>
    %216 = vector.broadcast %215 : vector<16x1xf32> to vector<16x128xf32>
    %217 = arith.mulf %207, %216 : vector<16x128xf32>
    %218 = vector.broadcast %197 : vector<1x128xf32> to vector<16x128xf32>
    %219 = arith.mulf %217, %218 : vector<16x128xf32>
    %220 = vector.broadcast %199 : vector<1x128xf32> to vector<16x128xf32>
    %221 = arith.addf %219, %220 : vector<16x128xf32>
    %222 = arith.truncf %221 : vector<16x128xf32> to vector<16x128xbf16>
    %c1_95 = arith.constant 1 : index
    %c0_96 = arith.constant 0 : index
    %c0_97 = arith.constant 0 : index
    %223 = vector.load %arg4[%c1_95, %c0_96, %c0_97] : memref<2x128x1536xbf16, #tpu.memory_space<vmem>>, vector<1x128x1536xbf16>
    %224 = vector.shape_cast %223 : vector<1x128x1536xbf16> to vector<128x1536xbf16>
    %cst_98 = arith.constant dense<0.000000e+00> : vector<16x1536xf32>
    %225 = tpu.matmul %222, %224, %cst_98 {dimension_numbers = #tpu.dot_dimension_numbers<[1], [0], [0], [1], [0, 0, 1, 1], [], []>} : vector<16x128xbf16>, vector<128x1536xbf16>, vector<16x1536xf32> -> vector<16x1536xf32>
    %cst_99 = arith.constant 0.000000e+00 : f32
    %226 = vector.broadcast %cst_99 : f32 to vector<16x128xf32>
    %227 = vector.extract_strided_slice %225 {offsets = [0, 0], sizes = [16, 128], strides = [1, 1]} : vector<16x1536xf32> to vector<16x128xf32>
    %228 = vector.extract_strided_slice %225 {offsets = [0, 512], sizes = [16, 128], strides = [1, 1]} : vector<16x1536xf32> to vector<16x128xf32>
    %229 = vector.extract_strided_slice %225 {offsets = [0, 1024], sizes = [16, 128], strides = [1, 1]} : vector<16x1536xf32> to vector<16x128xf32>
    %230 = arith.truncf %227 : vector<16x128xf32> to vector<16x128xbf16>
    %231 = arith.truncf %228 : vector<16x128xf32> to vector<16x128xbf16>
    %cst_100 = arith.constant dense<0.000000e+00> : vector<16x16xf32>
    %232 = tpu.matmul %230, %231, %cst_100 {dimension_numbers = #tpu.dot_dimension_numbers<[1], [1], [0], [0], [0, 0, 1, 0], [], []>} : vector<16x128xbf16>, vector<16x128xbf16>, vector<16x16xf32> -> vector<16x16xf32>
    %cst_101 = arith.constant 0.353553385 : f32
    %233 = vector.broadcast %cst_101 : f32 to vector<16x16xf32>
    %234 = arith.mulf %232, %233 : vector<16x16xf32>
    %235 = arith.addf %234, %1 : vector<16x16xf32>
    %cst_102 = arith.constant dense<0xFF800000> : vector<16xf32>
    %236 = vector.multi_reduction <maximumf>, %235, %cst_102 [1] : vector<16x16xf32> to vector<16xf32>
    %237 = vector.shape_cast %236 : vector<16xf32> to vector<16x1xf32>
    %238 = vector.broadcast %237 : vector<16x1xf32> to vector<16x16xf32>
    %239 = arith.subf %235, %238 : vector<16x16xf32>
    %240 = math.exp %239 : vector<16x16xf32>
    %cst_103 = arith.constant dense<0.000000e+00> : vector<16xf32>
    %241 = vector.multi_reduction <add>, %240, %cst_103 [1] : vector<16x16xf32> to vector<16xf32>
    %242 = vector.shape_cast %241 : vector<16xf32> to vector<16x1xf32>
    %243 = tpu.reciprocal %242 {approx = true} : vector<16x1xf32> -> vector<16x1xf32>
    %244 = vector.broadcast %243 : vector<16x1xf32> to vector<16x16xf32>
    %245 = arith.mulf %240, %244 : vector<16x16xf32>
    %246 = arith.truncf %245 : vector<16x16xf32> to vector<16x16xbf16>
    %247 = arith.truncf %229 : vector<16x128xf32> to vector<16x128xbf16>
    %cst_104 = arith.constant dense<0.000000e+00> : vector<16x128xf32>
    %248 = tpu.matmul %246, %247, %cst_104 {dimension_numbers = #tpu.dot_dimension_numbers<[1], [0], [0], [1], [0, 0, 1, 1], [], []>} : vector<16x16xbf16>, vector<16x128xbf16>, vector<16x128xf32> -> vector<16x128xf32>
    %249 = arith.truncf %248 : vector<16x128xf32> to vector<16x128xbf16>
    %c1_105 = arith.constant 1 : index
    %c0_106 = arith.constant 0 : index
    %c0_107 = arith.constant 0 : index
    %c0_108 = arith.constant 0 : index
    %250 = vector.load %arg5[%c1_105, %c0_106, %c0_107, %c0_108] : memref<2x4x128x128xbf16, #tpu.memory_space<vmem>>, vector<1x1x128x128xbf16>
    %251 = vector.shape_cast %250 : vector<1x1x128x128xbf16> to vector<128x128xbf16>
    %cst_109 = arith.constant dense<0.000000e+00> : vector<16x128xf32>
    %252 = tpu.matmul %249, %251, %cst_109 {dimension_numbers = #tpu.dot_dimension_numbers<[1], [0], [0], [1], [0, 0, 1, 1], [], []>} : vector<16x128xbf16>, vector<128x128xbf16>, vector<16x128xf32> -> vector<16x128xf32>
    %253 = arith.addf %226, %252 : vector<16x128xf32>
    %254 = vector.extract_strided_slice %225 {offsets = [0, 128], sizes = [16, 128], strides = [1, 1]} : vector<16x1536xf32> to vector<16x128xf32>
    %255 = vector.extract_strided_slice %225 {offsets = [0, 640], sizes = [16, 128], strides = [1, 1]} : vector<16x1536xf32> to vector<16x128xf32>
    %256 = vector.extract_strided_slice %225 {offsets = [0, 1152], sizes = [16, 128], strides = [1, 1]} : vector<16x1536xf32> to vector<16x128xf32>
    %257 = arith.truncf %254 : vector<16x128xf32> to vector<16x128xbf16>
    %258 = arith.truncf %255 : vector<16x128xf32> to vector<16x128xbf16>
    %cst_110 = arith.constant dense<0.000000e+00> : vector<16x16xf32>
    %259 = tpu.matmul %257, %258, %cst_110 {dimension_numbers = #tpu.dot_dimension_numbers<[1], [1], [0], [0], [0, 0, 1, 0], [], []>} : vector<16x128xbf16>, vector<16x128xbf16>, vector<16x16xf32> -> vector<16x16xf32>
    %cst_111 = arith.constant 0.353553385 : f32
    %260 = vector.broadcast %cst_111 : f32 to vector<16x16xf32>
    %261 = arith.mulf %259, %260 : vector<16x16xf32>
    %262 = arith.addf %261, %1 : vector<16x16xf32>
    %cst_112 = arith.constant dense<0xFF800000> : vector<16xf32>
    %263 = vector.multi_reduction <maximumf>, %262, %cst_112 [1] : vector<16x16xf32> to vector<16xf32>
    %264 = vector.shape_cast %263 : vector<16xf32> to vector<16x1xf32>
    %265 = vector.broadcast %264 : vector<16x1xf32> to vector<16x16xf32>
    %266 = arith.subf %262, %265 : vector<16x16xf32>
    %267 = math.exp %266 : vector<16x16xf32>
    %cst_113 = arith.constant dense<0.000000e+00> : vector<16xf32>
    %268 = vector.multi_reduction <add>, %267, %cst_113 [1] : vector<16x16xf32> to vector<16xf32>
    %269 = vector.shape_cast %268 : vector<16xf32> to vector<16x1xf32>
    %270 = tpu.reciprocal %269 {approx = true} : vector<16x1xf32> -> vector<16x1xf32>
    %271 = vector.broadcast %270 : vector<16x1xf32> to vector<16x16xf32>
    %272 = arith.mulf %267, %271 : vector<16x16xf32>
    %273 = arith.truncf %272 : vector<16x16xf32> to vector<16x16xbf16>
    %274 = arith.truncf %256 : vector<16x128xf32> to vector<16x128xbf16>
    %cst_114 = arith.constant dense<0.000000e+00> : vector<16x128xf32>
    %275 = tpu.matmul %273, %274, %cst_114 {dimension_numbers = #tpu.dot_dimension_numbers<[1], [0], [0], [1], [0, 0, 1, 1], [], []>} : vector<16x16xbf16>, vector<16x128xbf16>, vector<16x128xf32> -> vector<16x128xf32>
    %276 = arith.truncf %275 : vector<16x128xf32> to vector<16x128xbf16>
    %c1_115 = arith.constant 1 : index
    %c1_116 = arith.constant 1 : index
    %c0_117 = arith.constant 0 : index
    %c0_118 = arith.constant 0 : index
    %277 = vector.load %arg5[%c1_115, %c1_116, %c0_117, %c0_118] : memref<2x4x128x128xbf16, #tpu.memory_space<vmem>>, vector<1x1x128x128xbf16>
    %278 = vector.shape_cast %277 : vector<1x1x128x128xbf16> to vector<128x128xbf16>
    %cst_119 = arith.constant dense<0.000000e+00> : vector<16x128xf32>
    %279 = tpu.matmul %276, %278, %cst_119 {dimension_numbers = #tpu.dot_dimension_numbers<[1], [0], [0], [1], [0, 0, 1, 1], [], []>} : vector<16x128xbf16>, vector<128x128xbf16>, vector<16x128xf32> -> vector<16x128xf32>
    %280 = arith.addf %253, %279 : vector<16x128xf32>
    %281 = vector.extract_strided_slice %225 {offsets = [0, 256], sizes = [16, 128], strides = [1, 1]} : vector<16x1536xf32> to vector<16x128xf32>
    %282 = vector.extract_strided_slice %225 {offsets = [0, 768], sizes = [16, 128], strides = [1, 1]} : vector<16x1536xf32> to vector<16x128xf32>
    %283 = vector.extract_strided_slice %225 {offsets = [0, 1280], sizes = [16, 128], strides = [1, 1]} : vector<16x1536xf32> to vector<16x128xf32>
    %284 = arith.truncf %281 : vector<16x128xf32> to vector<16x128xbf16>
    %285 = arith.truncf %282 : vector<16x128xf32> to vector<16x128xbf16>
    %cst_120 = arith.constant dense<0.000000e+00> : vector<16x16xf32>
    %286 = tpu.matmul %284, %285, %cst_120 {dimension_numbers = #tpu.dot_dimension_numbers<[1], [1], [0], [0], [0, 0, 1, 0], [], []>} : vector<16x128xbf16>, vector<16x128xbf16>, vector<16x16xf32> -> vector<16x16xf32>
    %cst_121 = arith.constant 0.353553385 : f32
    %287 = vector.broadcast %cst_121 : f32 to vector<16x16xf32>
    %288 = arith.mulf %286, %287 : vector<16x16xf32>
    %289 = arith.addf %288, %1 : vector<16x16xf32>
    %cst_122 = arith.constant dense<0xFF800000> : vector<16xf32>
    %290 = vector.multi_reduction <maximumf>, %289, %cst_122 [1] : vector<16x16xf32> to vector<16xf32>
    %291 = vector.shape_cast %290 : vector<16xf32> to vector<16x1xf32>
    %292 = vector.broadcast %291 : vector<16x1xf32> to vector<16x16xf32>
    %293 = arith.subf %289, %292 : vector<16x16xf32>
    %294 = math.exp %293 : vector<16x16xf32>
    %cst_123 = arith.constant dense<0.000000e+00> : vector<16xf32>
    %295 = vector.multi_reduction <add>, %294, %cst_123 [1] : vector<16x16xf32> to vector<16xf32>
    %296 = vector.shape_cast %295 : vector<16xf32> to vector<16x1xf32>
    %297 = tpu.reciprocal %296 {approx = true} : vector<16x1xf32> -> vector<16x1xf32>
    %298 = vector.broadcast %297 : vector<16x1xf32> to vector<16x16xf32>
    %299 = arith.mulf %294, %298 : vector<16x16xf32>
    %300 = arith.truncf %299 : vector<16x16xf32> to vector<16x16xbf16>
    %301 = arith.truncf %283 : vector<16x128xf32> to vector<16x128xbf16>
    %cst_124 = arith.constant dense<0.000000e+00> : vector<16x128xf32>
    %302 = tpu.matmul %300, %301, %cst_124 {dimension_numbers = #tpu.dot_dimension_numbers<[1], [0], [0], [1], [0, 0, 1, 1], [], []>} : vector<16x16xbf16>, vector<16x128xbf16>, vector<16x128xf32> -> vector<16x128xf32>
    %303 = arith.truncf %302 : vector<16x128xf32> to vector<16x128xbf16>
    %c1_125 = arith.constant 1 : index
    %c2_126 = arith.constant 2 : index
    %c0_127 = arith.constant 0 : index
    %c0_128 = arith.constant 0 : index
    %304 = vector.load %arg5[%c1_125, %c2_126, %c0_127, %c0_128] : memref<2x4x128x128xbf16, #tpu.memory_space<vmem>>, vector<1x1x128x128xbf16>
    %305 = vector.shape_cast %304 : vector<1x1x128x128xbf16> to vector<128x128xbf16>
    %cst_129 = arith.constant dense<0.000000e+00> : vector<16x128xf32>
    %306 = tpu.matmul %303, %305, %cst_129 {dimension_numbers = #tpu.dot_dimension_numbers<[1], [0], [0], [1], [0, 0, 1, 1], [], []>} : vector<16x128xbf16>, vector<128x128xbf16>, vector<16x128xf32> -> vector<16x128xf32>
    %307 = arith.addf %280, %306 : vector<16x128xf32>
    %308 = vector.extract_strided_slice %225 {offsets = [0, 384], sizes = [16, 128], strides = [1, 1]} : vector<16x1536xf32> to vector<16x128xf32>
    %309 = vector.extract_strided_slice %225 {offsets = [0, 896], sizes = [16, 128], strides = [1, 1]} : vector<16x1536xf32> to vector<16x128xf32>
    %310 = vector.extract_strided_slice %225 {offsets = [0, 1408], sizes = [16, 128], strides = [1, 1]} : vector<16x1536xf32> to vector<16x128xf32>
    %311 = arith.truncf %308 : vector<16x128xf32> to vector<16x128xbf16>
    %312 = arith.truncf %309 : vector<16x128xf32> to vector<16x128xbf16>
    %cst_130 = arith.constant dense<0.000000e+00> : vector<16x16xf32>
    %313 = tpu.matmul %311, %312, %cst_130 {dimension_numbers = #tpu.dot_dimension_numbers<[1], [1], [0], [0], [0, 0, 1, 0], [], []>} : vector<16x128xbf16>, vector<16x128xbf16>, vector<16x16xf32> -> vector<16x16xf32>
    %cst_131 = arith.constant 0.353553385 : f32
    %314 = vector.broadcast %cst_131 : f32 to vector<16x16xf32>
    %315 = arith.mulf %313, %314 : vector<16x16xf32>
    %316 = arith.addf %315, %1 : vector<16x16xf32>
    %cst_132 = arith.constant dense<0xFF800000> : vector<16xf32>
    %317 = vector.multi_reduction <maximumf>, %316, %cst_132 [1] : vector<16x16xf32> to vector<16xf32>
    %318 = vector.shape_cast %317 : vector<16xf32> to vector<16x1xf32>
    %319 = vector.broadcast %318 : vector<16x1xf32> to vector<16x16xf32>
    %320 = arith.subf %316, %319 : vector<16x16xf32>
    %321 = math.exp %320 : vector<16x16xf32>
    %cst_133 = arith.constant dense<0.000000e+00> : vector<16xf32>
    %322 = vector.multi_reduction <add>, %321, %cst_133 [1] : vector<16x16xf32> to vector<16xf32>
    %323 = vector.shape_cast %322 : vector<16xf32> to vector<16x1xf32>
    %324 = tpu.reciprocal %323 {approx = true} : vector<16x1xf32> -> vector<16x1xf32>
    %325 = vector.broadcast %324 : vector<16x1xf32> to vector<16x16xf32>
    %326 = arith.mulf %321, %325 : vector<16x16xf32>
    %327 = arith.truncf %326 : vector<16x16xf32> to vector<16x16xbf16>
    %328 = arith.truncf %310 : vector<16x128xf32> to vector<16x128xbf16>
    %cst_134 = arith.constant dense<0.000000e+00> : vector<16x128xf32>
    %329 = tpu.matmul %327, %328, %cst_134 {dimension_numbers = #tpu.dot_dimension_numbers<[1], [0], [0], [1], [0, 0, 1, 1], [], []>} : vector<16x16xbf16>, vector<16x128xbf16>, vector<16x128xf32> -> vector<16x128xf32>
    %330 = arith.truncf %329 : vector<16x128xf32> to vector<16x128xbf16>
    %c1_135 = arith.constant 1 : index
    %c3_136 = arith.constant 3 : index
    %c0_137 = arith.constant 0 : index
    %c0_138 = arith.constant 0 : index
    %331 = vector.load %arg5[%c1_135, %c3_136, %c0_137, %c0_138] : memref<2x4x128x128xbf16, #tpu.memory_space<vmem>>, vector<1x1x128x128xbf16>
    %332 = vector.shape_cast %331 : vector<1x1x128x128xbf16> to vector<128x128xbf16>
    %cst_139 = arith.constant dense<0.000000e+00> : vector<16x128xf32>
    %333 = tpu.matmul %330, %332, %cst_139 {dimension_numbers = #tpu.dot_dimension_numbers<[1], [0], [0], [1], [0, 0, 1, 1], [], []>} : vector<16x128xbf16>, vector<128x128xbf16>, vector<16x128xf32> -> vector<16x128xf32>
    %334 = arith.addf %307, %333 : vector<16x128xf32>
    %335 = arith.addf %195, %334 : vector<16x128xf32>
    %c1_140 = arith.constant 1 : index
    %c0_141 = arith.constant 0 : index
    %c0_142 = arith.constant 0 : index
    %336 = vector.load %arg6[%c1_140, %c0_141, %c0_142] : memref<2x1x128xf32, #tpu.memory_space<vmem>>, vector<1x1x128xf32>
    %337 = vector.shape_cast %336 : vector<1x1x128xf32> to vector<1x128xf32>
    %338 = vector.broadcast %337 : vector<1x128xf32> to vector<16x128xf32>
    %339 = arith.addf %335, %338 : vector<16x128xf32>
    %c1_143 = arith.constant 1 : index
    %c0_144 = arith.constant 0 : index
    %c0_145 = arith.constant 0 : index
    %340 = vector.load %arg7[%c1_143, %c0_144, %c0_145] : memref<2x1x128xf32, #tpu.memory_space<vmem>>, vector<1x1x128xf32>
    %341 = vector.shape_cast %340 : vector<1x1x128xf32> to vector<1x128xf32>
    %c1_146 = arith.constant 1 : index
    %c0_147 = arith.constant 0 : index
    %c0_148 = arith.constant 0 : index
    %342 = vector.load %arg8[%c1_146, %c0_147, %c0_148] : memref<2x1x128xf32, #tpu.memory_space<vmem>>, vector<1x1x128xf32>
    %343 = vector.shape_cast %342 : vector<1x1x128xf32> to vector<1x128xf32>
    %cst_149 = arith.constant dense<0.000000e+00> : vector<16xf32>
    %344 = vector.multi_reduction <add>, %339, %cst_149 [1] : vector<16x128xf32> to vector<16xf32>
    %345 = vector.shape_cast %344 : vector<16xf32> to vector<16x1xf32>
    %cst_150 = arith.constant 3.125000e-02 : f32
    %346 = vector.broadcast %cst_150 : f32 to vector<16x1xf32>
    %347 = arith.mulf %345, %346 : vector<16x1xf32>
    %348 = vector.broadcast %347 : vector<16x1xf32> to vector<16x128xf32>
    %349 = arith.subf %339, %348 : vector<16x128xf32>
    %350 = vector.broadcast %6 : vector<1x128xf32> to vector<16x128xf32>
    %351 = arith.mulf %349, %350 : vector<16x128xf32>
    %352 = arith.mulf %351, %351 : vector<16x128xf32>
    %cst_151 = arith.constant dense<0.000000e+00> : vector<16xf32>
    %353 = vector.multi_reduction <add>, %352, %cst_151 [1] : vector<16x128xf32> to vector<16xf32>
    %354 = vector.shape_cast %353 : vector<16xf32> to vector<16x1xf32>
    %cst_152 = arith.constant 3.125000e-02 : f32
    %355 = vector.broadcast %cst_152 : f32 to vector<16x1xf32>
    %356 = arith.mulf %354, %355 : vector<16x1xf32>
    %cst_153 = arith.constant 9.99999974E-6 : f32
    %357 = vector.broadcast %cst_153 : f32 to vector<16x1xf32>
    %358 = arith.addf %356, %357 : vector<16x1xf32>
    %359 = math.rsqrt %358 : vector<16x1xf32>
    %360 = vector.broadcast %359 : vector<16x1xf32> to vector<16x128xf32>
    %361 = arith.mulf %351, %360 : vector<16x128xf32>
    %362 = vector.broadcast %341 : vector<1x128xf32> to vector<16x128xf32>
    %363 = arith.mulf %361, %362 : vector<16x128xf32>
    %364 = vector.broadcast %343 : vector<1x128xf32> to vector<16x128xf32>
    %365 = arith.addf %363, %364 : vector<16x128xf32>
    %366 = arith.truncf %365 : vector<16x128xf32> to vector<16x128xbf16>
    %c1_154 = arith.constant 1 : index
    %c0_155 = arith.constant 0 : index
    %c0_156 = arith.constant 0 : index
    %367 = vector.load %arg9[%c1_154, %c0_155, %c0_156] : memref<2x128x128xbf16, #tpu.memory_space<vmem>>, vector<1x128x128xbf16>
    %368 = vector.shape_cast %367 : vector<1x128x128xbf16> to vector<128x128xbf16>
    %cst_157 = arith.constant dense<0.000000e+00> : vector<16x128xf32>
    %369 = tpu.matmul %366, %368, %cst_157 {dimension_numbers = #tpu.dot_dimension_numbers<[1], [0], [0], [1], [0, 0, 1, 1], [], []>} : vector<16x128xbf16>, vector<128x128xbf16>, vector<16x128xf32> -> vector<16x128xf32>
    %c1_158 = arith.constant 1 : index
    %c0_159 = arith.constant 0 : index
    %c0_160 = arith.constant 0 : index
    %370 = vector.load %arg10[%c1_158, %c0_159, %c0_160] : memref<2x1x128xf32, #tpu.memory_space<vmem>>, vector<1x1x128xf32>
    %371 = vector.shape_cast %370 : vector<1x1x128xf32> to vector<1x128xf32>
    %372 = vector.broadcast %371 : vector<1x128xf32> to vector<16x128xf32>
    %373 = arith.addf %369, %372 : vector<16x128xf32>
    %cst_161 = arith.constant 0.000000e+00 : f32
    %374 = vector.broadcast %cst_161 : f32 to vector<16x128xf32>
    %375 = arith.maximumf %373, %374 : vector<16x128xf32>
    %376 = arith.truncf %375 : vector<16x128xf32> to vector<16x128xbf16>
    %c1_162 = arith.constant 1 : index
    %c0_163 = arith.constant 0 : index
    %c0_164 = arith.constant 0 : index
    %377 = vector.load %arg11[%c1_162, %c0_163, %c0_164] : memref<2x128x128xbf16, #tpu.memory_space<vmem>>, vector<1x128x128xbf16>
    %378 = vector.shape_cast %377 : vector<1x128x128xbf16> to vector<128x128xbf16>
    %cst_165 = arith.constant dense<0.000000e+00> : vector<16x128xf32>
    %379 = tpu.matmul %376, %378, %cst_165 {dimension_numbers = #tpu.dot_dimension_numbers<[1], [0], [0], [1], [0, 0, 1, 1], [], []>} : vector<16x128xbf16>, vector<128x128xbf16>, vector<16x128xf32> -> vector<16x128xf32>
    %380 = arith.addf %339, %379 : vector<16x128xf32>
    %c1_166 = arith.constant 1 : index
    %c0_167 = arith.constant 0 : index
    %c0_168 = arith.constant 0 : index
    %381 = vector.load %arg12[%c1_166, %c0_167, %c0_168] : memref<2x1x128xf32, #tpu.memory_space<vmem>>, vector<1x1x128xf32>
    %382 = vector.shape_cast %381 : vector<1x1x128xf32> to vector<1x128xf32>
    %383 = vector.broadcast %382 : vector<1x128xf32> to vector<16x128xf32>
    %384 = arith.addf %380, %383 : vector<16x128xf32>
    %c0_169 = arith.constant 0 : index
    %c0_170 = arith.constant 0 : index
    %385 = vector.load %arg13[%c0_169, %c0_170] : memref<1x128xf32, #tpu.memory_space<vmem>>, vector<1x128xf32>
    %c0_171 = arith.constant 0 : index
    %c0_172 = arith.constant 0 : index
    %386 = vector.load %arg14[%c0_171, %c0_172] : memref<1x128xf32, #tpu.memory_space<vmem>>, vector<1x128xf32>
    %cst_173 = arith.constant dense<0.000000e+00> : vector<16xf32>
    %387 = vector.multi_reduction <add>, %384, %cst_173 [1] : vector<16x128xf32> to vector<16xf32>
    %388 = vector.shape_cast %387 : vector<16xf32> to vector<16x1xf32>
    %cst_174 = arith.constant 3.125000e-02 : f32
    %389 = vector.broadcast %cst_174 : f32 to vector<16x1xf32>
    %390 = arith.mulf %388, %389 : vector<16x1xf32>
    %391 = vector.broadcast %390 : vector<16x1xf32> to vector<16x128xf32>
    %392 = arith.subf %384, %391 : vector<16x128xf32>
    %393 = vector.broadcast %6 : vector<1x128xf32> to vector<16x128xf32>
    %394 = arith.mulf %392, %393 : vector<16x128xf32>
    %395 = arith.mulf %394, %394 : vector<16x128xf32>
    %cst_175 = arith.constant dense<0.000000e+00> : vector<16xf32>
    %396 = vector.multi_reduction <add>, %395, %cst_175 [1] : vector<16x128xf32> to vector<16xf32>
    %397 = vector.shape_cast %396 : vector<16xf32> to vector<16x1xf32>
    %cst_176 = arith.constant 3.125000e-02 : f32
    %398 = vector.broadcast %cst_176 : f32 to vector<16x1xf32>
    %399 = arith.mulf %397, %398 : vector<16x1xf32>
    %cst_177 = arith.constant 9.99999974E-6 : f32
    %400 = vector.broadcast %cst_177 : f32 to vector<16x1xf32>
    %401 = arith.addf %399, %400 : vector<16x1xf32>
    %402 = math.rsqrt %401 : vector<16x1xf32>
    %403 = vector.broadcast %402 : vector<16x1xf32> to vector<16x128xf32>
    %404 = arith.mulf %394, %403 : vector<16x128xf32>
    %405 = vector.broadcast %385 : vector<1x128xf32> to vector<16x128xf32>
    %406 = arith.mulf %404, %405 : vector<16x128xf32>
    %407 = vector.broadcast %386 : vector<1x128xf32> to vector<16x128xf32>
    %408 = arith.addf %406, %407 : vector<16x128xf32>
    %409 = arith.truncf %408 : vector<16x128xf32> to vector<16x128xbf16>
    %c0_178 = arith.constant 0 : index
    %c0_179 = arith.constant 0 : index
    %410 = vector.load %arg15[%c0_178, %c0_179] : memref<128x128xbf16, #tpu.memory_space<vmem>>, vector<128x128xbf16>
    %cst_180 = arith.constant dense<0.000000e+00> : vector<16x128xf32>
    %411 = tpu.matmul %409, %410, %cst_180 {dimension_numbers = #tpu.dot_dimension_numbers<[1], [0], [0], [1], [0, 0, 1, 1], [], []>} : vector<16x128xbf16>, vector<128x128xbf16>, vector<16x128xf32> -> vector<16x128xf32>
    %c0_181 = arith.constant 0 : index
    %c0_182 = arith.constant 0 : index
    %412 = vector.load %arg16[%c0_181, %c0_182] : memref<1x128xf32, #tpu.memory_space<vmem>>, vector<1x128xf32>
    %413 = vector.broadcast %412 : vector<1x128xf32> to vector<16x128xf32>
    %414 = arith.addf %411, %413 : vector<16x128xf32>
    %c0_183 = arith.constant 0 : index
    %c0_184 = arith.constant 0 : index
    %415 = vector.load %arg17[%c0_183, %c0_184] : memref<16x128xf32, #tpu.memory_space<vmem>>, vector<16x128xf32>
    tpu.vector_store %arg17[%c0_183, %c0_184], %414 {strides = array<i32>} : memref<16x128xf32, #tpu.memory_space<vmem>>, vector<16x128xf32>,
    return
  }
}

</mosaic_0001>

<llo_original>
// kernel: tpu_custom_call.1
$region0: #{tpu_custom_call.1}
  #allocation0 [shape = 'u32[]', space=smem, size = 0x4, offset = 0x4, fixed_abs, tag = 'smem constant byte address 0x4 - core index']
  #allocation1 [shape = 'u32[72,128]{1,0:T(1,128)}', space=vmem, size = 0x9000, scoped, tag = 'internal scratch']
  %s0 = inlined_call_operand.hbm [shape: f32[16,128], index: 0, kind: input, shape index: {}]
  %s1 = inlined_call_operand.hbm [shape: f32[16,16], index: 1, kind: input, shape index: {}]
  %s2 = inlined_call_operand.hbm [shape: f32[2,1,128], index: 2, kind: input, shape index: {}]
  %s3 = inlined_call_operand.vmem [shape: f32[2,1,128], index: 3, kind: input, shape index: {}]
  %s4 = inlined_call_operand.hbm [shape: bf16[2,128,1536], index: 4, kind: input, shape index: {}]
  %s5 = inlined_call_operand.hbm [shape: bf16[2,4,128,128], index: 5, kind: input, shape index: {}]
  %s6 = inlined_call_operand.vmem [shape: f32[2,1,128], index: 6, kind: input, shape index: {}]
  %s7 = inlined_call_operand.vmem [shape: f32[2,1,128], index: 7, kind: input, shape index: {}]
  %s8 = inlined_call_operand.hbm [shape: f32[2,1,128], index: 8, kind: input, shape index: {}]
  %s9 = inlined_call_operand.hbm [shape: bf16[2,128,128], index: 9, kind: input, shape index: {}]
  %s10 = inlined_call_operand.vmem [shape: f32[2,1,128], index: 10, kind: input, shape index: {}]
  %s11 = inlined_call_operand.hbm [shape: bf16[2,128,128], index: 11, kind: input, shape index: {}]
  %s12 = inlined_call_operand.vmem [shape: f32[2,1,128], index: 12, kind: input, shape index: {}]
  %s13 = inlined_call_operand.vmem [shape: f32[1,128], index: 13, kind: input, shape index: {}]
  %s14 = inlined_call_operand.vmem [shape: f32[1,128], index: 14, kind: input, shape index: {}]
  %s15 = inlined_call_operand.hbm [shape: bf16[128,128], index: 15, kind: input, shape index: {}]
  %s16 = inlined_call_operand.vmem [shape: f32[1,128], index: 16, kind: input, shape index: {}]
  %s17 = inlined_call_operand.hbm [shape: f32[16,128], index: 17, kind: output, shape index: {}]
  %s18 = sld [smem:[#allocation0]]
  $region114: #{tpu_custom_call.1} parent=0
    _
  %s20 = ssub.s32 1, %s18
  %s21 = scalar_select 0, %s20, %s18
  $region1: #{tpu_custom_call.1} parent=0
    #allocation2 [shape = 'u8[8192]{0}', space=vmem, size = 0x2000, scoped, tag = 'input window, operand 0, single buffered']
    #allocation3 [shape = 's32[1]{0}', space=sflag, size = 0x4, scoped, tag = 'scoped memory for tpu_custom_call.1']
    #allocation4 [shape = 's32[1]{0}', space=sflag, size = 0x4, scoped, tag = 'scoped memory for tpu_custom_call.1']
    #allocation5 [shape = 'u8[8192]{0}', space=vmem, size = 0x2000, scoped, tag = 'input window, operand 1, single buffered']
    #allocation6 [shape = 's32[1]{0}', space=sflag, size = 0x4, scoped, tag = 'scoped memory for tpu_custom_call.1']
    #allocation7 [shape = 'u8[1024]{0}', space=vmem, size = 0x400, scoped, tag = 'input window, operand 2, single buffered']
    #allocation8 [shape = 'u8[786432]{0}', space=vmem, size = 0xc0000, scoped, tag = 'input window, operand 4, single buffered']
    #allocation9 [shape = 's32[1]{0}', space=sflag, size = 0x4, scoped, tag = 'scoped memory for tpu_custom_call.1']
    #allocation10 [shape = 'u8[262144]{0}', space=vmem, size = 0x40000, scoped, tag = 'input window, operand 5, single buffered']
    #allocation11 [shape = 'u8[1024]{0}', space=vmem, size = 0x400, scoped, tag = 'input window, operand 8, single buffered']
    #allocation12 [shape = 's32[1]{0}', space=sflag, size = 0x4, scoped, tag = 'scoped memory for tpu_custom_call.1']
    #allocation13 [shape = 'u8[65536]{0}', space=vmem, size = 0x10000, scoped, tag = 'input window, operand 9, single buffered']
    #allocation14 [shape = 'u8[65536]{0}', space=vmem, size = 0x10000, scoped, tag = 'input window, operand 11, single buffered']
    #allocation15 [shape = 's32[1]{0}', space=sflag, size = 0x4, scoped, tag = 'scoped memory for tpu_custom_call.1']
    #allocation16 [shape = 'u8[32768]{0}', space=vmem, size = 0x8000, scoped, tag = 'input window, operand 15, single buffered']
    #allocation17 [shape = 'u8[8192]{0}', space=vmem, size = 0x2000, scoped, tag = 'output window, operand 0, single buffered']
    %22 = vsyncpa [#allocation3], 0
    %23 = vsyncpa [#allocation6], 0
    %24 = vsyncpa [#allocation9], 0
    %25 = vsyncpa [#allocation12], 0
    %26 = vsyncpa [#allocation15], 0
    %27 = vsyncpa [#allocation4], 0
    // Predicated region
    $region2: #{tpu_custom_call.1} parent=1 // pred_check
      _
    $region3: #{tpu_custom_call.1} parent=1 // pred_check_branch
      %29 = sbr.rel (0) target = $region5
    $region4: #{tpu_custom_call.1} parent=1 // pred_region
      %31 = vsyncadd [#allocation3], 0
      %s32 = sshll.u32 %s0, 4
      %s33 = int_to_ptr.hbm [resolvable:$true] %s32
      %s34 = sshll.u32 [#allocation2], 4
      %s35 = int_to_ptr.vmem [resolvable:$true] %s34
      %40 = dma.hbm_to_vmem [thread:$0]  %s33, 256, %s35, [#allocation3], 128, 128, 8
    $region5: #{tpu_custom_call.1} parent=1 // pred_fallthru
      _
    // Predicated region
    $region6: #{tpu_custom_call.1} parent=1 // pred_check
      _
    $region7: #{tpu_custom_call.1} parent=1 // pred_check_branch
      %42 = sbr.rel (0) target = $region9
    $region8: #{tpu_custom_call.1} parent=1 // pred_region
      %44 = vsyncadd [#allocation6], 0
      %s45 = sshll.u32 %s1, 4
      %s46 = int_to_ptr.hbm [resolvable:$true] %s45
      %s47 = sshll.u32 [#allocation5], 4
      %s48 = int_to_ptr.vmem [resolvable:$true] %s47
      %53 = dma.hbm_to_vmem [thread:$0]  %s46, 256, %s48, [#allocation6], 128, 128, 8
    $region9: #{tpu_custom_call.1} parent=1 // pred_fallthru
      _
    // Predicated region
    $region10: #{tpu_custom_call.1} parent=1 // pred_check
      _
    $region11: #{tpu_custom_call.1} parent=1 // pred_check_branch
      %55 = sbr.rel (0) target = $region13
    $region12: #{tpu_custom_call.1} parent=1 // pred_region
      %57 = vsyncadd [#allocation6], 0
      %s58 = sshll.u32 %s2, 4
      %s59 = int_to_ptr.hbm [resolvable:$true] %s58
      %s60 = sshll.u32 [#allocation7], 4
      %s61 = int_to_ptr.vmem [resolvable:$true] %s60
      %66 = dma.hbm_to_vmem [thread:$0]  %s59, 32, %s61, [#allocation6], 16, 16, 1
    $region13: #{tpu_custom_call.1} parent=1 // pred_fallthru
      _
    // Predicated region
    $region14: #{tpu_custom_call.1} parent=1 // pred_check
      _
    $region15: #{tpu_custom_call.1} parent=1 // pred_check_branch
      %68 = sbr.rel (0) target = $region17
    $region16: #{tpu_custom_call.1} parent=1 // pred_region
      _
    $region17: #{tpu_custom_call.1} parent=1 // pred_fallthru
      _
    // Predicated region
    $region18: #{tpu_custom_call.1} parent=1 // pred_check
      _
    $region19: #{tpu_custom_call.1} parent=1 // pred_check_branch
      %70 = sbr.rel (0) target = $region21
    $region20: #{tpu_custom_call.1} parent=1 // pred_region
      %72 = vsyncadd [#allocation9], 0
      %s73 = sshll.u32 %s4, 4
      %s74 = int_to_ptr.hbm [resolvable:$true] %s73
      %s75 = sshll.u32 [#allocation8], 4
      %s76 = int_to_ptr.vmem [resolvable:$true] %s75
      %81 = dma.hbm_to_vmem [thread:$0]  %s74, 24576, %s76, [#allocation9], 768, 768, 48
    $region21: #{tpu_custom_call.1} parent=1 // pred_fallthru
      _
    // Predicated region
    $region22: #{tpu_custom_call.1} parent=1 // pred_check
      _
    $region23: #{tpu_custom_call.1} parent=1 // pred_check_branch
      %83 = sbr.rel (0) target = $region25
    $region24: #{tpu_custom_call.1} parent=1 // pred_region
      %85 = vsyncadd [#allocation9], 0
      %s86 = sshll.u32 %s5, 4
      %s87 = int_to_ptr.hbm [resolvable:$true] %s86
      %s88 = sshll.u32 [#allocation10], 4
      %s89 = int_to_ptr.vmem [resolvable:$true] %s88
      %94 = dma.hbm_to_vmem [thread:$0]  %s87, 8192, %s89, [#allocation9], 64, 64, 4
    $region25: #{tpu_custom_call.1} parent=1 // pred_fallthru
      _
    // Predicated region
    $region26: #{tpu_custom_call.1} parent=1 // pred_check
      _
    $region27: #{tpu_custom_call.1} parent=1 // pred_check_branch
      %96 = sbr.rel (0) target = $region29
    $region28: #{tpu_custom_call.1} parent=1 // pred_region
      _
    $region29: #{tpu_custom_call.1} parent=1 // pred_fallthru
      _
    // Predicated region
    $region30: #{tpu_custom_call.1} parent=1 // pred_check
      _
    $region31: #{tpu_custom_call.1} parent=1 // pred_check_branch
      %98 = sbr.rel (0) target = $region33
    $region32: #{tpu_custom_call.1} parent=1 // pred_region
      _
    $region33: #{tpu_custom_call.1} parent=1 // pred_fallthru
      _
    // Predicated region
    $region34: #{tpu_custom_call.1} parent=1 // pred_check
      _
    $region35: #{tpu_custom_call.1} parent=1 // pred_check_branch
      %100 = sbr.rel (0) target = $region37
    $region36: #{tpu_custom_call.1} parent=1 // pred_region
      %102 = vsyncadd [#allocation12], 0
      %s103 = sshll.u32 %s8, 4
      %s104 = int_to_ptr.hbm [resolvable:$true] %s103
      %s105 = sshll.u32 [#allocation11], 4
      %s106 = int_to_ptr.vmem [resolvable:$true] %s105
      %111 = dma.hbm_to_vmem [thread:$0]  %s104, 32, %s106, [#allocation12], 16, 16, 1
    $region37: #{tpu_custom_call.1} parent=1 // pred_fallthru
      _
    // Predicated region
    $region38: #{tpu_custom_call.1} parent=1 // pred_check
      _
    $region39: #{tpu_custom_call.1} parent=1 // pred_check_branch
      %113 = sbr.rel (0) target = $region41
    $region40: #{tpu_custom_call.1} parent=1 // pred_region
      %115 = vsyncadd [#allocation12], 0
      %s116 = sshll.u32 %s9, 4
      %s117 = int_to_ptr.hbm [resolvable:$true] %s116
      %s118 = sshll.u32 [#allocation13], 4
      %s119 = int_to_ptr.vmem [resolvable:$true] %s118
      %124 = dma.hbm_to_vmem [thread:$0]  %s117, 2048, %s119, [#allocation12], 64, 64, 4
    $region41: #{tpu_custom_call.1} parent=1 // pred_fallthru
      _
    // Predicated region
    $region42: #{tpu_custom_call.1} parent=1 // pred_check
      _
    $region43: #{tpu_custom_call.1} parent=1 // pred_check_branch
      %126 = sbr.rel (0) target = $region45
    $region44: #{tpu_custom_call.1} parent=1 // pred_region
      _
    $region45: #{tpu_custom_call.1} parent=1 // pred_fallthru
      _
    // Predicated region
    $region46: #{tpu_custom_call.1} parent=1 // pred_check
      _
    $region47: #{tpu_custom_call.1} parent=1 // pred_check_branch
      %128 = sbr.rel (0) target = $region49
    $region48: #{tpu_custom_call.1} parent=1 // pred_region
      %130 = vsyncadd [#allocation15], 0
      %s131 = sshll.u32 %s11, 4
      %s132 = int_to_ptr.hbm [resolvable:$true] %s131
      %s133 = sshll.u32 [#allocation14], 4
      %s134 = int_to_ptr.vmem [resolvable:$true] %s133
      %139 = dma.hbm_to_vmem [thread:$0]  %s132, 2048, %s134, [#allocation15], 64, 64, 4
    $region49: #{tpu_custom_call.1} parent=1 // pred_fallthru
      _
    // Predicated region
    $region50: #{tpu_custom_call.1} parent=1 // pred_check
      _
    $region51: #{tpu_custom_call.1} parent=1 // pred_check_branch
      %141 = sbr.rel (0) target = $region53
    $region52: #{tpu_custom_call.1} parent=1 // pred_region
      _
    $region53: #{tpu_custom_call.1} parent=1 // pred_fallthru
      _
    // Predicated region
    $region54: #{tpu_custom_call.1} parent=1 // pred_check
      _
    $region55: #{tpu_custom_call.1} parent=1 // pred_check_branch
      %143 = sbr.rel (0) target = $region57
    $region56: #{tpu_custom_call.1} parent=1 // pred_region
      _
    $region57: #{tpu_custom_call.1} parent=1 // pred_fallthru
      _
    // Predicated region
    $region58: #{tpu_custom_call.1} parent=1 // pred_check
      _
    $region59: #{tpu_custom_call.1} parent=1 // pred_check_branch
      %145 = sbr.rel (0) target = $region61
    $region60: #{tpu_custom_call.1} parent=1 // pred_region
      _
    $region61: #{tpu_custom_call.1} parent=1 // pred_fallthru
      _
    // Predicated region
    $region62: #{tpu_custom_call.1} parent=1 // pred_check
      _
    $region63: #{tpu_custom_call.1} parent=1 // pred_check_branch
      %147 = sbr.rel (0) target = $region65
    $region64: #{tpu_custom_call.1} parent=1 // pred_region
      %149 = vsyncadd [#allocation15], 0
      %s150 = sshll.u32 %s15, 4
      %s151 = int_to_ptr.hbm [resolvable:$true] %s150
      %s152 = sshll.u32 [#allocation16], 4
      %s153 = int_to_ptr.vmem [resolvable:$true] %s152
      %158 = dma.hbm_to_vmem [thread:$0]  %s151, 1024, %s153, [#allocation15], 64, 64, 4
    $region65: #{tpu_custom_call.1} parent=1 // pred_fallthru
      _
    // Predicated region
    $region66: #{tpu_custom_call.1} parent=1 // pred_check
      _
    $region67: #{tpu_custom_call.1} parent=1 // pred_check_branch
      %160 = sbr.rel (0) target = $region69
    $region68: #{tpu_custom_call.1} parent=1 // pred_region
      _
    $region69: #{tpu_custom_call.1} parent=1 // pred_fallthru
      _
    // Predicated region
    $region70: #{tpu_custom_call.1} parent=1 // pred_check
      _
    $region71: #{tpu_custom_call.1} parent=1 // pred_check_branch
      %162 = sbr.rel (0) target = $region73
    $region72: #{tpu_custom_call.1} parent=1 // pred_region
      %164 = dma.done [#allocation3], 256
    $region73: #{tpu_custom_call.1} parent=1 // pred_fallthru
      _
    // Predicated region
    $region74: #{tpu_custom_call.1} parent=1 // pred_check
      _
    $region75: #{tpu_custom_call.1} parent=1 // pred_check_branch
      %166 = sbr.rel (0) target = $region77
    $region76: #{tpu_custom_call.1} parent=1 // pred_region
      %168 = dma.done [#allocation6], 256
    $region77: #{tpu_custom_call.1} parent=1 // pred_fallthru
      _
    // Predicated region
    $region78: #{tpu_custom_call.1} parent=1 // pred_check
      _
    $region79: #{tpu_custom_call.1} parent=1 // pred_check_branch
      %170 = sbr.rel (0) target = $region81
    $region80: #{tpu_custom_call.1} parent=1 // pred_region
      %172 = dma.done [#allocation6], 32
    $region81: #{tpu_custom_call.1} parent=1 // pred_fallthru
      _
    // Predicated region
    $region82: #{tpu_custom_call.1} parent=1 // pred_check
      _
    $region83: #{tpu_custom_call.1} parent=1 // pred_check_branch
      %174 = sbr.rel (0) target = $region85
    $region84: #{tpu_custom_call.1} parent=1 // pred_region
      %176 = dma.done [#allocation9], 24576
    $region85: #{tpu_custom_call.1} parent=1 // pred_fallthru
      _
    // Predicated region
    $region86: #{tpu_custom_call.1} parent=1 // pred_check
      _
    $region87: #{tpu_custom_call.1} parent=1 // pred_check_branch
      %178 = sbr.rel (0) target = $region89
    $region88: #{tpu_custom_call.1} parent=1 // pred_region
      %180 = dma.done [#allocation9], 8192
    $region89: #{tpu_custom_call.1} parent=1 // pred_fallthru
      _
    // Predicated region
    $region90: #{tpu_custom_call.1} parent=1 // pred_check
      _
    $region91: #{tpu_custom_call.1} parent=1 // pred_check_branch
      %182 = sbr.rel (0) target = $region93
    $region92: #{tpu_custom_call.1} parent=1 // pred_region
      %184 = dma.done [#allocation12], 32
    $region93: #{tpu_custom_call.1} parent=1 // pred_fallthru
      _
    // Predicated region
    $region94: #{tpu_custom_call.1} parent=1 // pred_check
      _
    $region95: #{tpu_custom_call.1} parent=1 // pred_check_branch
      %186 = sbr.rel (0) target = $region97
    $region96: #{tpu_custom_call.1} parent=1 // pred_region
      %188 = dma.done [#allocation12], 2048
    $region97: #{tpu_custom_call.1} parent=1 // pred_fallthru
      _
    // Predicated region
    $region98: #{tpu_custom_call.1} parent=1 // pred_check
      _
    $region99: #{tpu_custom_call.1} parent=1 // pred_check_branch
      %190 = sbr.rel (0) target = $region101
    $region100: #{tpu_custom_call.1} parent=1 // pred_region
      %192 = dma.done [#allocation15], 2048
    $region101: #{tpu_custom_call.1} parent=1 // pred_fallthru
      _
    // Predicated region
    $region102: #{tpu_custom_call.1} parent=1 // pred_check
      _
    $region103: #{tpu_custom_call.1} parent=1 // pred_check_branch
      %194 = sbr.rel (0) target = $region105
    $region104: #{tpu_custom_call.1} parent=1 // pred_region
      %196 = dma.done [#allocation15], 1024
    $region105: #{tpu_custom_call.1} parent=1 // pred_fallthru
      _
    %v198 = vld [vmem:[#allocation2] sm:$0xff]
    %v199 = vld [vmem:[#allocation2 + $0x8] sm:$0xff]
    %v200 = vld [vmem:[#allocation5] sm:$0xff]
    %v201 = vld [vmem:[#allocation5 + $0x8] sm:$0xff]
    %v202 = vlaneseq
    %v203 = vand.u32 %v202, 127
    %vm204 = vcmp.lt.s32.totalorder %v203, 32
    %v205 = vsel %vm204, 1, 0
    %v206 = vcvt.s32.f32 %v205
    %v207 = vld [vmem:[#allocation7] sm:$0x1]
    %v208 = vld [vmem:[%s3] sm:$0x1]
    %209 = vadd.xlane.f32.xlu0 %v198
    %v210 = vpop.xlane.xlu0 %209
    %211 = vadd.xlane.f32.xlu0 %v199
    %v212 = vpop.xlane.xlu0 %211
    %v213 = vmul.f32 %v210, 0.03125
    %v214 = vmul.f32 %v212, 0.03125
    %v215 = vsub.f32 %v198, %v213
    %v216 = vsub.f32 %v199, %v214
    %v217 = vmul.f32 %v215, %v206
    %v218 = vmul.f32 %v216, %v206
    %v219 = vmul.f32 %v217, %v217
    %v220 = vmul.f32 %v218, %v218
    %221 = vadd.xlane.f32.xlu0 %v219
    %v222 = vpop.xlane.xlu0 %221
    %223 = vadd.xlane.f32.xlu0 %v220
    %v224 = vpop.xlane.xlu0 %223
    %v225 = vmul.f32 %v222, 0.03125
    %v226 = vmul.f32 %v224, 0.03125
    %v227 = vadd.f32 %v225, 1e-05
    %v228 = vadd.f32 %v226, 1e-05
    %v229 = vrsqrt.pop %v227
    %v230 = vmul.f32 %v229, %v227
    %v231 = vmul.f32 %v230, %v229
    %v232 = vmul.f32 0.5, %v231
    %v233 = vsub.f32 1.5, %v232
    %v234 = vmul.f32 %v229, %v233
    %vm235 = vweird.f32 %v227
    %vm236 = vweird.f32 %v229
    %vm237 = vmor %vm235, %vm236
    %v238 = vsel %vm237, %v229, %v234
    %v239 = vrsqrt.pop %v228
    %v240 = vmul.f32 %v239, %v228
    %v241 = vmul.f32 %v240, %v239
    %v242 = vmul.f32 0.5, %v241
    %v243 = vsub.f32 1.5, %v242
    %v244 = vmul.f32 %v239, %v243
    %vm245 = vweird.f32 %v228
    %vm246 = vweird.f32 %v239
    %vm247 = vmor %vm245, %vm246
    %v248 = vsel %vm247, %v239, %v244
    %v249 = vmul.f32 %v217, %v238
    %v250 = vmul.f32 %v218, %v248
    %v252 = vperm.slane %v207, 0
    %v254 = vmul.f32 %v249, %v252
    %v255 = vmul.f32 %v250, %v252
    %v257 = vperm.slane %v208, 0
    %v259 = vadd.f32 %v254, %v257
    %v260 = vadd.f32 %v255, %v257
    %v261 = vpack.c.bf16 %v260, %v259
    %v262 = vld [vmem:[#allocation8] sm:$0xff]
    %v263 = vld [vmem:[#allocation8 + $0x8] sm:$0xff]
    %v264 = vld [vmem:[#allocation8 + $0x10] sm:$0xff]
    %v265 = vld [vmem:[#allocation8 + $0x18] sm:$0xff]
    %v266 = vld [vmem:[#allocation8 + $0x20] sm:$0xff]
    %v267 = vld [vmem:[#allocation8 + $0x28] sm:$0xff]
    %v268 = vld [vmem:[#allocation8 + $0x30] sm:$0xff]
    %v269 = vld [vmem:[#allocation8 + $0x38] sm:$0xff]
    %v270 = vld [vmem:[#allocation8 + $0x40] sm:$0xff]
    %v271 = vld [vmem:[#allocation8 + $0x48] sm:$0xff]
    %v272 = vld [vmem:[#allocation8 + $0x50] sm:$0xff]
    %v273 = vld [vmem:[#allocation8 + $0x58] sm:$0xff]
    %v274 = vld [vmem:[#allocation8 + $0x60] sm:$0xff]
    %v275 = vld [vmem:[#allocation8 + $0x68] sm:$0xff]
    %v276 = vld [vmem:[#allocation8 + $0x70] sm:$0xff]
    %v277 = vld [vmem:[#allocation8 + $0x78] sm:$0xff]
    %v278 = vld [vmem:[#allocation8 + $0x80] sm:$0xff]
    %v279 = vld [vmem:[#allocation8 + $0x88] sm:$0xff]
    %v280 = vld [vmem:[#allocation8 + $0x90] sm:$0xff]
    %v281 = vld [vmem:[#allocation8 + $0x98] sm:$0xff]
    %v282 = vld [vmem:[#allocation8 + $0xa0] sm:$0xff]
    %v283 = vld [vmem:[#allocation8 + $0xa8] sm:$0xff]
    %v284 = vld [vmem:[#allocation8 + $0xb0] sm:$0xff]
    %v285 = vld [vmem:[#allocation8 + $0xb8] sm:$0xff]
    %v286 = vld [vmem:[#allocation8 + $0xc0] sm:$0xff]
    %v287 = vld [vmem:[#allocation8 + $0xc8] sm:$0xff]
    %v288 = vld [vmem:[#allocation8 + $0xd0] sm:$0xff]
    %v289 = vld [vmem:[#allocation8 + $0xd8] sm:$0xff]
    %v290 = vld [vmem:[#allocation8 + $0xe0] sm:$0xff]
    %v291 = vld [vmem:[#allocation8 + $0xe8] sm:$0xff]
    %v292 = vld [vmem:[#allocation8 + $0xf0] sm:$0xff]
    %v293 = vld [vmem:[#allocation8 + $0xf8] sm:$0xff]
    %v294 = vld [vmem:[#allocation8 + $0x100] sm:$0xff]
    %v295 = vld [vmem:[#allocation8 + $0x108] sm:$0xff]
    %v296 = vld [vmem:[#allocation8 + $0x110] sm:$0xff]
    %v297 = vld [vmem:[#allocation8 + $0x118] sm:$0xff]
    %v298 = vld [vmem:[#allocation8 + $0x120] sm:$0xff]
    %v299 = vld [vmem:[#allocation8 + $0x128] sm:$0xff]
    %v300 = vld [vmem:[#allocation8 + $0x130] sm:$0xff]
    %v301 = vld [vmem:[#allocation8 + $0x138] sm:$0xff]
    %v302 = vld [vmem:[#allocation8 + $0x140] sm:$0xff]
    %v303 = vld [vmem:[#allocation8 + $0x148] sm:$0xff]
    %v304 = vld [vmem:[#allocation8 + $0x150] sm:$0xff]
    %v305 = vld [vmem:[#allocation8 + $0x158] sm:$0xff]
    %v306 = vld [vmem:[#allocation8 + $0x160] sm:$0xff]
    %v307 = vld [vmem:[#allocation8 + $0x168] sm:$0xff]
    %v308 = vld [vmem:[#allocation8 + $0x170] sm:$0xff]
    %v309 = vld [vmem:[#allocation8 + $0x178] sm:$0xff]
    %v310 = vld [vmem:[#allocation8 + $0x180] sm:$0xff]
    %v311 = vld [vmem:[#allocation8 + $0x188] sm:$0xff]
    %v312 = vld [vmem:[#allocation8 + $0x190] sm:$0xff]
    %v313 = vld [vmem:[#allocation8 + $0x198] sm:$0xff]
    %v314 = vld [vmem:[#allocation8 + $0x1a0] sm:$0xff]
    %v315 = vld [vmem:[#allocation8 + $0x1a8] sm:$0xff]
    %v316 = vld [vmem:[#allocation8 + $0x1b0] sm:$0xff]
    %v317 = vld [vmem:[#allocation8 + $0x1b8] sm:$0xff]
    %v318 = vld [vmem:[#allocation8 + $0x1c0] sm:$0xff]
    %v319 = vld [vmem:[#allocation8 + $0x1c8] sm:$0xff]
    %v320 = vld [vmem:[#allocation8 + $0x1d0] sm:$0xff]
    %v321 = vld [vmem:[#allocation8 + $0x1d8] sm:$0xff]
    %v322 = vld [vmem:[#allocation8 + $0x1e0] sm:$0xff]
    %v323 = vld [vmem:[#allocation8 + $0x1e8] sm:$0xff]
    %v324 = vld [vmem:[#allocation8 + $0x1f0] sm:$0xff]
    %v325 = vld [vmem:[#allocation8 + $0x1f8] sm:$0xff]
    %v326 = vld [vmem:[#allocation8 + $0x200] sm:$0xff]
    %v327 = vld [vmem:[#allocation8 + $0x208] sm:$0xff]
    %v328 = vld [vmem:[#allocation8 + $0x210] sm:$0xff]
    %v329 = vld [vmem:[#allocation8 + $0x218] sm:$0xff]
    %v330 = vld [vmem:[#allocation8 + $0x220] sm:$0xff]
    %v331 = vld [vmem:[#allocation8 + $0x228] sm:$0xff]
    %v332 = vld [vmem:[#allocation8 + $0x230] sm:$0xff]
    %v333 = vld [vmem:[#allocation8 + $0x238] sm:$0xff]
    %v334 = vld [vmem:[#allocation8 + $0x240] sm:$0xff]
    %v335 = vld [vmem:[#allocation8 + $0x248] sm:$0xff]
    %v336 = vld [vmem:[#allocation8 + $0x250] sm:$0xff]
    %v337 = vld [vmem:[#allocation8 + $0x258] sm:$0xff]
    %v338 = vld [vmem:[#allocation8 + $0x260] sm:$0xff]
    %v339 = vld [vmem:[#allocation8 + $0x268] sm:$0xff]
    %v340 = vld [vmem:[#allocation8 + $0x270] sm:$0xff]
    %v341 = vld [vmem:[#allocation8 + $0x278] sm:$0xff]
    %v342 = vld [vmem:[#allocation8 + $0x280] sm:$0xff]
    %v343 = vld [vmem:[#allocation8 + $0x288] sm:$0xff]
    %v344 = vld [vmem:[#allocation8 + $0x290] sm:$0xff]
    %v345 = vld [vmem:[#allocation8 + $0x298] sm:$0xff]
    %v346 = vld [vmem:[#allocation8 + $0x2a0] sm:$0xff]
    %v347 = vld [vmem:[#allocation8 + $0x2a8] sm:$0xff]
    %v348 = vld [vmem:[#allocation8 + $0x2b0] sm:$0xff]
    %v349 = vld [vmem:[#allocation8 + $0x2b8] sm:$0xff]
    %v350 = vld [vmem:[#allocation8 + $0x2c0] sm:$0xff]
    %v351 = vld [vmem:[#allocation8 + $0x2c8] sm:$0xff]
    %v352 = vld [vmem:[#allocation8 + $0x2d0] sm:$0xff]
    %v353 = vld [vmem:[#allocation8 + $0x2d8] sm:$0xff]
    %v354 = vld [vmem:[#allocation8 + $0x2e0] sm:$0xff]
    %v355 = vld [vmem:[#allocation8 + $0x2e8] sm:$0xff]
    %v356 = vld [vmem:[#allocation8 + $0x2f0] sm:$0xff]
    %v357 = vld [vmem:[#allocation8 + $0x2f8] sm:$0xff]
    %v454 = vunpack.c.l.b16 %v262
    %v455 = vunpack.c.h.b16 %v262
    %v456 = vunpack.c.l.b16 %v263
    %v457 = vunpack.c.h.b16 %v263
    %v458 = vunpack.c.l.b16 %v264
    %v459 = vunpack.c.h.b16 %v264
    %v460 = vunpack.c.l.b16 %v265
    %v461 = vunpack.c.h.b16 %v265
    %v462 = vunpack.c.l.b16 %v266
    %v463 = vunpack.c.h.b16 %v266
    %v464 = vunpack.c.l.b16 %v267
    %v465 = vunpack.c.h.b16 %v267
    %v466 = vunpack.c.l.b16 %v268
    %v467 = vunpack.c.h.b16 %v268
    %v468 = vunpack.c.l.b16 %v269
    %v469 = vunpack.c.h.b16 %v269
    %v470 = vunpack.c.l.b16 %v270
    %v471 = vunpack.c.h.b16 %v270
    %v472 = vunpack.c.l.b16 %v271
    %v473 = vunpack.c.h.b16 %v271
    %v474 = vunpack.c.l.b16 %v272
    %v475 = vunpack.c.h.b16 %v272
    %v476 = vunpack.c.l.b16 %v273
    %v477 = vunpack.c.h.b16 %v273
    %v478 = vunpack.c.l.b16 %v274
    %v479 = vunpack.c.h.b16 %v274
    %v480 = vunpack.c.l.b16 %v275
    %v481 = vunpack.c.h.b16 %v275
    %v482 = vunpack.c.l.b16 %v276
    %v483 = vunpack.c.h.b16 %v276
    %v484 = vunpack.c.l.b16 %v277
    %v485 = vunpack.c.h.b16 %v277
    %v486 = vunpack.c.l.b16 %v278
    %v487 = vunpack.c.h.b16 %v278
    %v488 = vunpack.c.l.b16 %v279
    %v489 = vunpack.c.h.b16 %v279
    %v490 = vunpack.c.l.b16 %v280
    %v491 = vunpack.c.h.b16 %v280
    %v492 = vunpack.c.l.b16 %v281
    %v493 = vunpack.c.h.b16 %v281
    %v494 = vunpack.c.l.b16 %v282
    %v495 = vunpack.c.h.b16 %v282
    %v496 = vunpack.c.l.b16 %v283
    %v497 = vunpack.c.h.b16 %v283
    %v498 = vunpack.c.l.b16 %v284
    %v499 = vunpack.c.h.b16 %v284
    %v500 = vunpack.c.l.b16 %v285
    %v501 = vunpack.c.h.b16 %v285
    %v502 = vunpack.c.l.b16 %v286
    %v503 = vunpack.c.h.b16 %v286
    %v504 = vunpack.c.l.b16 %v287
    %v505 = vunpack.c.h.b16 %v287
    %v506 = vunpack.c.l.b16 %v288
    %v507 = vunpack.c.h.b16 %v288
    %v508 = vunpack.c.l.b16 %v289
    %v509 = vunpack.c.h.b16 %v289
    %v510 = vunpack.c.l.b16 %v290
    %v511 = vunpack.c.h.b16 %v290
    %v512 = vunpack.c.l.b16 %v291
    %v513 = vunpack.c.h.b16 %v291
    %v514 = vunpack.c.l.b16 %v292
    %v515 = vunpack.c.h.b16 %v292
    %v516 = vunpack.c.l.b16 %v293
    %v517 = vunpack.c.h.b16 %v293
    %v518 = vunpack.c.l.b16 %v294
    %v519 = vunpack.c.h.b16 %v294
    %v520 = vunpack.c.l.b16 %v295
    %v521 = vunpack.c.h.b16 %v295
    %v522 = vunpack.c.l.b16 %v296
    %v523 = vunpack.c.h.b16 %v296
    %v524 = vunpack.c.l.b16 %v297
    %v525 = vunpack.c.h.b16 %v297
    %v526 = vunpack.c.l.b16 %v298
    %v527 = vunpack.c.h.b16 %v298
    %v528 = vunpack.c.l.b16 %v299
    %v529 = vunpack.c.h.b16 %v299
    %v530 = vunpack.c.l.b16 %v300
    %v531 = vunpack.c.h.b16 %v300
    %v532 = vunpack.c.l.b16 %v301
    %v533 = vunpack.c.h.b16 %v301
    %v534 = vunpack.c.l.b16 %v302
    %v535 = vunpack.c.h.b16 %v302
    %v536 = vunpack.c.l.b16 %v303
    %v537 = vunpack.c.h.b16 %v303
    %v538 = vunpack.c.l.b16 %v304
    %v539 = vunpack.c.h.b16 %v304
    %v540 = vunpack.c.l.b16 %v305
    %v541 = vunpack.c.h.b16 %v305
    %v542 = vunpack.c.l.b16 %v306
    %v543 = vunpack.c.h.b16 %v306
    %v544 = vunpack.c.l.b16 %v307
    %v545 = vunpack.c.h.b16 %v307
    %v546 = vunpack.c.l.b16 %v308
    %v547 = vunpack.c.h.b16 %v308
    %v548 = vunpack.c.l.b16 %v309
    %v549 = vunpack.c.h.b16 %v309
    %v550 = vunpack.c.l.b16 %v310
    %v551 = vunpack.c.h.b16 %v310
    %v552 = vunpack.c.l.b16 %v311
    %v553 = vunpack.c.h.b16 %v311
    %v554 = vunpack.c.l.b16 %v312
    %v555 = vunpack.c.h.b16 %v312
    %v556 = vunpack.c.l.b16 %v313
    %v557 = vunpack.c.h.b16 %v313
    %v558 = vunpack.c.l.b16 %v314
    %v559 = vunpack.c.h.b16 %v314
    %v560 = vunpack.c.l.b16 %v315
    %v561 = vunpack.c.h.b16 %v315
    %v562 = vunpack.c.l.b16 %v316
    %v563 = vunpack.c.h.b16 %v316
    %v564 = vunpack.c.l.b16 %v317
    %v565 = vunpack.c.h.b16 %v317
    %v566 = vunpack.c.l.b16 %v318
    %v567 = vunpack.c.h.b16 %v318
    %v568 = vunpack.c.l.b16 %v319
    %v569 = vunpack.c.h.b16 %v319
    %v570 = vunpack.c.l.b16 %v320
    %v571 = vunpack.c.h.b16 %v320
    %v572 = vunpack.c.l.b16 %v321
    %v573 = vunpack.c.h.b16 %v321
    %v574 = vunpack.c.l.b16 %v322
    %v575 = vunpack.c.h.b16 %v322
    %v576 = vunpack.c.l.b16 %v323
    %v577 = vunpack.c.h.b16 %v323
    %v578 = vunpack.c.l.b16 %v324
    %v579 = vunpack.c.h.b16 %v324
    %v580 = vunpack.c.l.b16 %v325
    %v581 = vunpack.c.h.b16 %v325
    %v582 = vunpack.c.l.b16 %v326
    %v583 = vunpack.c.h.b16 %v326
    %v584 = vunpack.c.l.b16 %v327
    %v585 = vunpack.c.h.b16 %v327
    %v586 = vunpack.c.l.b16 %v328
    %v587 = vunpack.c.h.b16 %v328
    %v588 = vunpack.c.l.b16 %v329
    %v589 = vunpack.c.h.b16 %v329
    %v590 = vunpack.c.l.b16 %v330
    %v591 = vunpack.c.h.b16 %v330
    %v592 = vunpack.c.l.b16 %v331
    %v593 = vunpack.c.h.b16 %v331
    %v594 = vunpack.c.l.b16 %v332
    %v595 = vunpack.c.h.b16 %v332
    %v596 = vunpack.c.l.b16 %v333
    %v597 = vunpack.c.h.b16 %v333
    %v598 = vunpack.c.l.b16 %v334
    %v599 = vunpack.c.h.b16 %v334
    %v600 = vunpack.c.l.b16 %v335
    %v601 = vunpack.c.h.b16 %v335
    %v602 = vunpack.c.l.b16 %v336
    %v603 = vunpack.c.h.b16 %v336
    %v604 = vunpack.c.l.b16 %v337
    %v605 = vunpack.c.h.b16 %v337
    %v606 = vunpack.c.l.b16 %v338
    %v607 = vunpack.c.h.b16 %v338
    %v608 = vunpack.c.l.b16 %v339
    %v609 = vunpack.c.h.b16 %v339
    %v610 = vunpack.c.l.b16 %v340
    %v611 = vunpack.c.h.b16 %v340
    %v612 = vunpack.c.l.b16 %v341
    %v613 = vunpack.c.h.b16 %v341
    %v614 = vunpack.c.l.b16 %v342
    %v615 = vunpack.c.h.b16 %v342
    %v616 = vunpack.c.l.b16 %v343
    %v617 = vunpack.c.h.b16 %v343
    %v618 = vunpack.c.l.b16 %v344
    %v619 = vunpack.c.h.b16 %v344
    %v620 = vunpack.c.l.b16 %v345
    %v621 = vunpack.c.h.b16 %v345
    %v622 = vunpack.c.l.b16 %v346
    %v623 = vunpack.c.h.b16 %v346
    %v624 = vunpack.c.l.b16 %v347
    %v625 = vunpack.c.h.b16 %v347
    %v626 = vunpack.c.l.b16 %v348
    %v627 = vunpack.c.h.b16 %v348
    %v628 = vunpack.c.l.b16 %v349
    %v629 = vunpack.c.h.b16 %v349
    %v630 = vunpack.c.l.b16 %v350
    %v631 = vunpack.c.h.b16 %v350
    %v632 = vunpack.c.l.b16 %v351
    %v633 = vunpack.c.h.b16 %v351
    %v634 = vunpack.c.l.b16 %v352
    %v635 = vunpack.c.h.b16 %v352
    %v636 = vunpack.c.l.b16 %v353
    %v637 = vunpack.c.h.b16 %v353
    %v638 = vunpack.c.l.b16 %v354
    %v639 = vunpack.c.h.b16 %v354
    %v640 = vunpack.c.l.b16 %v355
    %v641 = vunpack.c.h.b16 %v355
    %v642 = vunpack.c.l.b16 %v356
    %v643 = vunpack.c.h.b16 %v356
    %v644 = vunpack.c.l.b16 %v357
    %v645 = vunpack.c.h.b16 %v357
    %v646 = vpack.c.b16 %v466, %v454
    %v647 = vpack.c.b16 %v467, %v455
    %v648 = vpack.c.b16 %v468, %v456
    %v649 = vpack.c.b16 %v469, %v457
    %v650 = vpack.c.b16 %v470, %v458
    %v651 = vpack.c.b16 %v471, %v459
    %v652 = vpack.c.b16 %v472, %v460
    %v653 = vpack.c.b16 %v473, %v461
    %v654 = vpack.c.b16 %v474, %v462
    %v655 = vpack.c.b16 %v475, %v463
    %v656 = vpack.c.b16 %v476, %v464
    %v657 = vpack.c.b16 %v477, %v465
    %v658 = vpack.c.b16 %v490, %v478
    %v659 = vpack.c.b16 %v491, %v479
    %v660 = vpack.c.b16 %v492, %v480
    %v661 = vpack.c.b16 %v493, %v481
    %v662 = vpack.c.b16 %v494, %v482
    %v663 = vpack.c.b16 %v495, %v483
    %v664 = vpack.c.b16 %v496, %v484
    %v665 = vpack.c.b16 %v497, %v485
    %v666 = vpack.c.b16 %v498, %v486
    %v667 = vpack.c.b16 %v499, %v487
    %v668 = vpack.c.b16 %v500, %v488
    %v669 = vpack.c.b16 %v501, %v489
    %v670 = vpack.c.b16 %v514, %v502
    %v671 = vpack.c.b16 %v515, %v503
    %v672 = vpack.c.b16 %v516, %v504
    %v673 = vpack.c.b16 %v517, %v505
    %v674 = vpack.c.b16 %v518, %v506
    %v675 = vpack.c.b16 %v519, %v507
    %v676 = vpack.c.b16 %v520, %v508
    %v677 = vpack.c.b16 %v521, %v509
    %v678 = vpack.c.b16 %v522, %v510
    %v679 = vpack.c.b16 %v523, %v511
    %v680 = vpack.c.b16 %v524, %v512
    %v681 = vpack.c.b16 %v525, %v513
    %v682 = vpack.c.b16 %v538, %v526
    %v683 = vpack.c.b16 %v539, %v527
    %v684 = vpack.c.b16 %v540, %v528
    %v685 = vpack.c.b16 %v541, %v529
    %v686 = vpack.c.b16 %v542, %v530
    %v687 = vpack.c.b16 %v543, %v531
    %v688 = vpack.c.b16 %v544, %v532
    %v689 = vpack.c.b16 %v545, %v533
    %v690 = vpack.c.b16 %v546, %v534
    %v691 = vpack.c.b16 %v547, %v535
    %v692 = vpack.c.b16 %v548, %v536
    %v693 = vpack.c.b16 %v549, %v537
    %v694 = vpack.c.b16 %v562, %v550
    %v695 = vpack.c.b16 %v563, %v551
    %v696 = vpack.c.b16 %v564, %v552
    %v697 = vpack.c.b16 %v565, %v553
    %v698 = vpack.c.b16 %v566, %v554
    %v699 = vpack.c.b16 %v567, %v555
    %v700 = vpack.c.b16 %v568, %v556
    %v701 = vpack.c.b16 %v569, %v557
    %v702 = vpack.c.b16 %v570, %v558
    %v703 = vpack.c.b16 %v571, %v559
    %v704 = vpack.c.b16 %v572, %v560
    %v705 = vpack.c.b16 %v573, %v561
    %v706 = vpack.c.b16 %v586, %v574
    %v707 = vpack.c.b16 %v587, %v575
    %v708 = vpack.c.b16 %v588, %v576
    %v709 = vpack.c.b16 %v589, %v577
    %v710 = vpack.c.b16 %v590, %v578
    %v711 = vpack.c.b16 %v591, %v579
    %v712 = vpack.c.b16 %v592, %v580
    %v713 = vpack.c.b16 %v593, %v581
    %v714 = vpack.c.b16 %v594, %v582
    %v715 = vpack.c.b16 %v595, %v583
    %v716 = vpack.c.b16 %v596, %v584
    %v717 = vpack.c.b16 %v597, %v585
    %v718 = vpack.c.b16 %v610, %v598
    %v719 = vpack.c.b16 %v611, %v599
    %v720 = vpack.c.b16 %v612, %v600
    %v721 = vpack.c.b16 %v613, %v601
    %v722 = vpack.c.b16 %v614, %v602
    %v723 = vpack.c.b16 %v615, %v603
    %v724 = vpack.c.b16 %v616, %v604
    %v725 = vpack.c.b16 %v617, %v605
    %v726 = vpack.c.b16 %v618, %v606
    %v727 = vpack.c.b16 %v619, %v607
    %v728 = vpack.c.b16 %v620, %v608
    %v729 = vpack.c.b16 %v621, %v609
    %v730 = vpack.c.b16 %v634, %v622
    %v731 = vpack.c.b16 %v635, %v623
    %v732 = vpack.c.b16 %v636, %v624
    %v733 = vpack.c.b16 %v637, %v625
    %v734 = vpack.c.b16 %v638, %v626
    %v735 = vpack.c.b16 %v639, %v627
    %v736 = vpack.c.b16 %v640, %v628
    %v737 = vpack.c.b16 %v641, %v629
    %v738 = vpack.c.b16 %v642, %v630
    %v739 = vpack.c.b16 %v643, %v631
    %v740 = vpack.c.b16 %v644, %v632
    %v741 = vpack.c.b16 %v645, %v633
    %838 = vmatpush.bf16.msra.mxu0 %v730
    %839 = vmatpush.bf16.msra.mxu0 %v718
    %840 = vmatpush.bf16.msra.mxu0 %v706
    %841 = vmatpush.bf16.msra.mxu0 %v694
    %842 = vmatpush.bf16.msra.mxu0 %v682
    %843 = vmatpush.bf16.msra.mxu0 %v670
    %844 = vmatpush.bf16.msra.mxu0 %v658
    %845 = vmatpush.bf16.msra.mxu0 %v646
    %846 = vmatmul.bf16.gmra.mxu0 %v261
    %v847 = vpop.f32.mrf.mxu0
    %v848 = vadd.f32 0.0, %v847
    %v849 = vpop.f32.mrf.mxu0
    %v850 = vadd.f32 0.0, %v849
    %851 = vdwg.mxu0
    %852 = vmatpush.bf16.msra.mxu0 %v731
    %853 = vmatpush.bf16.msra.mxu0 %v719
    %854 = vmatpush.bf16.msra.mxu0 %v707
    %855 = vmatpush.bf16.msra.mxu0 %v695
    %856 = vmatpush.bf16.msra.mxu0 %v683
    %857 = vmatpush.bf16.msra.mxu0 %v671
    %858 = vmatpush.bf16.msra.mxu0 %v659
    %859 = vmatpush.bf16.msra.mxu0 %v647
    %860 = vmatmul.bf16.gmra.mxu0 %v261
    %v861 = vpop.f32.mrf.mxu0
    %v862 = vadd.f32 0.0, %v861
    %v863 = vpop.f32.mrf.mxu0
    %v864 = vadd.f32 0.0, %v863
    %865 = vdwg.mxu0
    %866 = vmatpush.bf16.msra.mxu0 %v732
    %867 = vmatpush.bf16.msra.mxu0 %v720
    %868 = vmatpush.bf16.msra.mxu0 %v708
    %869 = vmatpush.bf16.msra.mxu0 %v696
    %870 = vmatpush.bf16.msra.mxu0 %v684
    %871 = vmatpush.bf16.msra.mxu0 %v672
    %872 = vmatpush.bf16.msra.mxu0 %v660
    %873 = vmatpush.bf16.msra.mxu0 %v648
    %874 = vmatmul.bf16.gmra.mxu0 %v261
    %v875 = vpop.f32.mrf.mxu0
    %v876 = vadd.f32 0.0, %v875
    %v877 = vpop.f32.mrf.mxu0
    %v878 = vadd.f32 0.0, %v877
    %879 = vdwg.mxu0
    %880 = vmatpush.bf16.msra.mxu0 %v733
    %881 = vmatpush.bf16.msra.mxu0 %v721
    %882 = vmatpush.bf16.msra.mxu0 %v709
    %883 = vmatpush.bf16.msra.mxu0 %v697
    %884 = vmatpush.bf16.msra.mxu0 %v685
    %885 = vmatpush.bf16.msra.mxu0 %v673
    %886 = vmatpush.bf16.msra.mxu0 %v661
    %887 = vmatpush.bf16.msra.mxu0 %v649
    %888 = vmatmul.bf16.gmra.mxu0 %v261
    %v889 = vpop.f32.mrf.mxu0
    %v890 = vadd.f32 0.0, %v889
    %v891 = vpop.f32.mrf.mxu0
    %v892 = vadd.f32 0.0, %v891
    %893 = vdwg.mxu0
    %894 = vmatpush.bf16.msra.mxu0 %v734
    %895 = vmatpush.bf16.msra.mxu0 %v722
    %896 = vmatpush.bf16.msra.mxu0 %v710
    %897 = vmatpush.bf16.msra.mxu0 %v698
    %898 = vmatpush.bf16.msra.mxu0 %v686
    %899 = vmatpush.bf16.msra.mxu0 %v674
    %900 = vmatpush.bf16.msra.mxu0 %v662
    %901 = vmatpush.bf16.msra.mxu0 %v650
    %902 = vmatmul.bf16.gmra.mxu0 %v261
    %v903 = vpop.f32.mrf.mxu0
    %v904 = vadd.f32 0.0, %v903
    %v905 = vpop.f32.mrf.mxu0
    %v906 = vadd.f32 0.0, %v905
    %907 = vdwg.mxu0
    %908 = vmatpush.bf16.msra.mxu0 %v735
    %909 = vmatpush.bf16.msra.mxu0 %v723
    %910 = vmatpush.bf16.msra.mxu0 %v711
    %911 = vmatpush.bf16.msra.mxu0 %v699
    %912 = vmatpush.bf16.msra.mxu0 %v687
    %913 = vmatpush.bf16.msra.mxu0 %v675
    %914 = vmatpush.bf16.msra.mxu0 %v663
    %915 = vmatpush.bf16.msra.mxu0 %v651
    %916 = vmatmul.bf16.gmra.mxu0 %v261
    %v917 = vpop.f32.mrf.mxu0
    %v918 = vadd.f32 0.0, %v917
    %v919 = vpop.f32.mrf.mxu0
    %v920 = vadd.f32 0.0, %v919
    %921 = vdwg.mxu0
    %922 = vmatpush.bf16.msra.mxu0 %v736
    %923 = vmatpush.bf16.msra.mxu0 %v724
    %924 = vmatpush.bf16.msra.mxu0 %v712
    %925 = vmatpush.bf16.msra.mxu0 %v700
    %926 = vmatpush.bf16.msra.mxu0 %v688
    %927 = vmatpush.bf16.msra.mxu0 %v676
    %928 = vmatpush.bf16.msra.mxu0 %v664
    %929 = vmatpush.bf16.msra.mxu0 %v652
    %930 = vmatmul.bf16.gmra.mxu0 %v261
    %v931 = vpop.f32.mrf.mxu0
    %v932 = vadd.f32 0.0, %v931
    %v933 = vpop.f32.mrf.mxu0
    %v934 = vadd.f32 0.0, %v933
    %935 = vdwg.mxu0
    %936 = vmatpush.bf16.msra.mxu0 %v737
    %937 = vmatpush.bf16.msra.mxu0 %v725
    %938 = vmatpush.bf16.msra.mxu0 %v713
    %939 = vmatpush.bf16.msra.mxu0 %v701
    %940 = vmatpush.bf16.msra.mxu0 %v689
    %941 = vmatpush.bf16.msra.mxu0 %v677
    %942 = vmatpush.bf16.msra.mxu0 %v665
    %943 = vmatpush.bf16.msra.mxu0 %v653
    %944 = vmatmul.bf16.gmra.mxu0 %v261
    %v945 = vpop.f32.mrf.mxu0
    %v946 = vadd.f32 0.0, %v945
    %v947 = vpop.f32.mrf.mxu0
    %v948 = vadd.f32 0.0, %v947
    %949 = vdwg.mxu0
    %950 = vmatpush.bf16.msra.mxu0 %v738
    %951 = vmatpush.bf16.msra.mxu0 %v726
    %952 = vmatpush.bf16.msra.mxu0 %v714
    %953 = vmatpush.bf16.msra.mxu0 %v702
    %954 = vmatpush.bf16.msra.mxu0 %v690
    %955 = vmatpush.bf16.msra.mxu0 %v678
    %956 = vmatpush.bf16.msra.mxu0 %v666
    %957 = vmatpush.bf16.msra.mxu0 %v654
    %958 = vmatmul.bf16.gmra.mxu0 %v261
    %v959 = vpop.f32.mrf.mxu0
    %v960 = vadd.f32 0.0, %v959
    %v961 = vpop.f32.mrf.mxu0
    %v962 = vadd.f32 0.0, %v961
    %963 = vdwg.mxu0
    %964 = vmatpush.bf16.msra.mxu0 %v739
    %965 = vmatpush.bf16.msra.mxu0 %v727
    %966 = vmatpush.bf16.msra.mxu0 %v715
    %967 = vmatpush.bf16.msra.mxu0 %v703
    %968 = vmatpush.bf16.msra.mxu0 %v691
    %969 = vmatpush.bf16.msra.mxu0 %v679
    %970 = vmatpush.bf16.msra.mxu0 %v667
    %971 = vmatpush.bf16.msra.mxu0 %v655
    %972 = vmatmul.bf16.gmra.mxu0 %v261
    %v973 = vpop.f32.mrf.mxu0
    %v974 = vadd.f32 0.0, %v973
    %v975 = vpop.f32.mrf.mxu0
    %v976 = vadd.f32 0.0, %v975
    %977 = vdwg.mxu0
    %978 = vmatpush.bf16.msra.mxu0 %v740
    %979 = vmatpush.bf16.msra.mxu0 %v728
    %980 = vmatpush.bf16.msra.mxu0 %v716
    %981 = vmatpush.bf16.msra.mxu0 %v704
    %982 = vmatpush.bf16.msra.mxu0 %v692
    %983 = vmatpush.bf16.msra.mxu0 %v680
    %984 = vmatpush.bf16.msra.mxu0 %v668
    %985 = vmatpush.bf16.msra.mxu0 %v656
    %986 = vmatmul.bf16.gmra.mxu0 %v261
    %v987 = vpop.f32.mrf.mxu0
    %v988 = vadd.f32 0.0, %v987
    %v989 = vpop.f32.mrf.mxu0
    %v990 = vadd.f32 0.0, %v989
    %991 = vdwg.mxu0
    %992 = vmatpush.bf16.msra.mxu0 %v741
    %993 = vmatpush.bf16.msra.mxu0 %v729
    %994 = vmatpush.bf16.msra.mxu0 %v717
    %995 = vmatpush.bf16.msra.mxu0 %v705
    %996 = vmatpush.bf16.msra.mxu0 %v693
    %997 = vmatpush.bf16.msra.mxu0 %v681
    %998 = vmatpush.bf16.msra.mxu0 %v669
    %999 = vmatpush.bf16.msra.mxu0 %v657
    %1000 = vmatmul.bf16.gmra.mxu0 %v261
    %v1001 = vpop.f32.mrf.mxu0
    %v1002 = vadd.f32 0.0, %v1001
    %v1003 = vpop.f32.mrf.mxu0
    %v1004 = vadd.f32 0.0, %v1003
    %1005 = vdwg.mxu0
    %v1006 = vpack.c.bf16 %v850, %v848
    %v1007 = vpack.c.bf16 %v906, %v904
    %1008 = vmatpush.bf16.xpose.msra.mxu0 0
    %1009 = vmatpush.bf16.xpose.msra.mxu0 0
    %1010 = vmatpush.bf16.xpose.msra.mxu0 0
    %1011 = vmatpush.bf16.xpose.msra.mxu0 0
    %1012 = vmatpush.bf16.xpose.msra.mxu0 0
    %1013 = vmatpush.bf16.xpose.msra.mxu0 0
    %1014 = vmatpush.bf16.xpose.msra.mxu0 0
    %1015 = vmatpush.bf16.xpose.msra.mxu0 %v1007
    %1016 = vmatmul.bf16.gmra.mxu0 %v1006
    %v1017 = vpop.f32.mrf.mxu0
    %v1018 = vadd.f32 0.0, %v1017
    %v1019 = vpop.f32.mrf.mxu0
    %v1020 = vadd.f32 0.0, %v1019
    %1021 = vdwg.mxu0
    %v1022 = vmul.f32 %v1018, 0.35355338
    %v1023 = vmul.f32 %v1020, 0.35355338
    %v1024 = vadd.f32 %v1022, %v200
    %v1025 = vadd.f32 %v1023, %v201
    %vm1026 = vcmask 130048
    %v1027 = vsel %vm1026, %v1024, -inf
    %1028 = vmax.xlane.f32.xlu0 %v1027
    %v1029 = vpop.xlane.xlu0 %1028
    %v1030 = vsel %vm1026, %v1025, -inf
    %1031 = vmax.xlane.f32.xlu0 %v1030
    %v1032 = vpop.xlane.xlu0 %1031
    %v1033 = vsub.f32 %v1024, %v1029
    %v1034 = vsub.f32 %v1025, %v1032
    %v1035 = vmul.f32 %v1033, 1.442695
    %v1036 = vpow.pop %v1035
    %v1037 = vmul.f32 %v1034, 1.442695
    %v1038 = vpow.pop %v1037
    %v1039 = vsel %vm1026, %v1036, 0.0
    %1040 = vadd.xlane.f32.xlu0 %v1039
    %v1041 = vpop.xlane.xlu0 %1040
    %v1042 = vsel %vm1026, %v1038, 0.0
    %1043 = vadd.xlane.f32.xlu0 %v1042
    %v1044 = vpop.xlane.xlu0 %1043
    %v1045 = vrcp.pop %v1041
    %v1046 = vrcp.pop %v1044
    %v1047 = vmul.f32 %v1036, %v1045
    %v1048 = vmul.f32 %v1038, %v1046
    %v1049 = vpack.c.bf16 %v1048, %v1047
    %v1050 = vpack.c.bf16 %v962, %v960
    %v1052 = vsel %vm1026, %v1049, 0
    %1054 = vmatpush.bf16.msra.mxu0 0
    %1055 = vmatpush.bf16.msra.mxu0 0
    %1056 = vmatpush.bf16.msra.mxu0 0
    %1057 = vmatpush.bf16.msra.mxu0 0
    %1058 = vmatpush.bf16.msra.mxu0 0
    %1059 = vmatpush.bf16.msra.mxu0 0
    %1060 = vmatpush.bf16.msra.mxu0 0
    %1061 = vmatpush.bf16.msra.mxu0 %v1050
    %1062 = vmatmul.bf16.gmra.mxu0 %v1052
    %v1063 = vpop.f32.mrf.mxu0
    %v1064 = vadd.f32 0.0, %v1063
    %v1065 = vpop.f32.mrf.mxu0
    %v1066 = vadd.f32 0.0, %v1065
    %1067 = vdwg.mxu0
    %v1068 = vpack.c.bf16 %v1066, %v1064
    %v1069 = vld [vmem:[#allocation10] sm:$0xf]
    %v1070 = vld [vmem:[#allocation10 + $0x4] sm:$0xf]
    %v1071 = vld [vmem:[#allocation10 + $0x8] sm:$0xf]
    %v1072 = vld [vmem:[#allocation10 + $0xc] sm:$0xf]
    %v1073 = vld [vmem:[#allocation10 + $0x10] sm:$0xf]
    %v1074 = vld [vmem:[#allocation10 + $0x14] sm:$0xf]
    %v1075 = vld [vmem:[#allocation10 + $0x18] sm:$0xf]
    %v1076 = vld [vmem:[#allocation10 + $0x1c] sm:$0xf]
    %v1077 = vld [vmem:[#allocation10 + $0x20] sm:$0xf]
    %v1078 = vld [vmem:[#allocation10 + $0x24] sm:$0xf]
    %v1079 = vld [vmem:[#allocation10 + $0x28] sm:$0xf]
    %v1080 = vld [vmem:[#allocation10 + $0x2c] sm:$0xf]
    %v1081 = vld [vmem:[#allocation10 + $0x30] sm:$0xf]
    %v1082 = vld [vmem:[#allocation10 + $0x34] sm:$0xf]
    %v1083 = vld [vmem:[#allocation10 + $0x38] sm:$0xf]
    %v1084 = vld [vmem:[#allocation10 + $0x3c] sm:$0xf]
    %v1085 = vpack.c.bf16 %v864, %v862
    %v1086 = vpack.c.bf16 %v920, %v918
    %1087 = vmatpush.bf16.xpose.msra.mxu0 0
    %1088 = vmatpush.bf16.xpose.msra.mxu0 0
    %1089 = vmatpush.bf16.xpose.msra.mxu0 0
    %1090 = vmatpush.bf16.xpose.msra.mxu0 0
    %1091 = vmatpush.bf16.xpose.msra.mxu0 0
    %1092 = vmatpush.bf16.xpose.msra.mxu0 0
    %1093 = vmatpush.bf16.xpose.msra.mxu0 0
    %1094 = vmatpush.bf16.xpose.msra.mxu0 %v1086
    %1095 = vmatmul.bf16.gmra.mxu0 %v1085
    %v1096 = vpop.f32.mrf.mxu0
    %v1097 = vadd.f32 0.0, %v1096
    %v1098 = vpop.f32.mrf.mxu0
    %v1099 = vadd.f32 0.0, %v1098
    %1100 = vdwg.mxu0
    %v1101 = vmul.f32 %v1097, 0.35355338
    %v1102 = vmul.f32 %v1099, 0.35355338
    %v1103 = vadd.f32 %v1101, %v200
    %v1104 = vadd.f32 %v1102, %v201
    %v1105 = vsel %vm1026, %v1103, -inf
    %1106 = vmax.xlane.f32.xlu0 %v1105
    %v1107 = vpop.xlane.xlu0 %1106
    %v1108 = vsel %vm1026, %v1104, -inf
    %1109 = vmax.xlane.f32.xlu0 %v1108
    %v1110 = vpop.xlane.xlu0 %1109
    %v1111 = vsub.f32 %v1103, %v1107
    %v1112 = vsub.f32 %v1104, %v1110
    %v1113 = vmul.f32 %v1111, 1.442695
    %v1114 = vpow.pop %v1113
    %v1115 = vmul.f32 %v1112, 1.442695
    %v1116 = vpow.pop %v1115
    %v1117 = vsel %vm1026, %v1114, 0.0
    %1118 = vadd.xlane.f32.xlu0 %v1117
    %v1119 = vpop.xlane.xlu0 %1118
    %v1120 = vsel %vm1026, %v1116, 0.0
    %1121 = vadd.xlane.f32.xlu0 %v1120
    %v1122 = vpop.xlane.xlu0 %1121
    %v1123 = vrcp.pop %v1119
    %v1124 = vrcp.pop %v1122
    %v1125 = vmul.f32 %v1114, %v1123
    %v1126 = vmul.f32 %v1116, %v1124
    %v1127 = vpack.c.bf16 %v1126, %v1125
    %v1128 = vpack.c.bf16 %v976, %v974
    %v1130 = vsel %vm1026, %v1127, 0
    %1132 = vmatpush.bf16.msra.mxu0 0
    %1133 = vmatpush.bf16.msra.mxu0 0
    %1134 = vmatpush.bf16.msra.mxu0 0
    %1135 = vmatpush.bf16.msra.mxu0 0
    %1136 = vmatpush.bf16.msra.mxu0 0
    %1137 = vmatpush.bf16.msra.mxu0 0
    %1138 = vmatpush.bf16.msra.mxu0 0
    %1139 = vmatpush.bf16.msra.mxu0 %v1128
    %1140 = vmatmul.bf16.gmra.mxu0 %v1130
    %v1141 = vpop.f32.mrf.mxu0
    %v1142 = vadd.f32 0.0, %v1141
    %v1143 = vpop.f32.mrf.mxu0
    %v1144 = vadd.f32 0.0, %v1143
    %1145 = vdwg.mxu0
    %v1146 = vpack.c.bf16 %v1144, %v1142
    %s1147 = scalar_lea.vmem [#allocation10], 64
    %v1148 = vld [vmem:[%s1147] sm:$0xf]
    %v1149 = vld [vmem:[%s1147 + $0x4] sm:$0xf]
    %v1150 = vld [vmem:[%s1147 + $0x8] sm:$0xf]
    %v1151 = vld [vmem:[%s1147 + $0xc] sm:$0xf]
    %v1152 = vld [vmem:[%s1147 + $0x10] sm:$0xf]
    %v1153 = vld [vmem:[%s1147 + $0x14] sm:$0xf]
    %v1154 = vld [vmem:[%s1147 + $0x18] sm:$0xf]
    %v1155 = vld [vmem:[%s1147 + $0x1c] sm:$0xf]
    %v1156 = vld [vmem:[%s1147 + $0x20] sm:$0xf]
    %v1157 = vld [vmem:[%s1147 + $0x24] sm:$0xf]
    %v1158 = vld [vmem:[%s1147 + $0x28] sm:$0xf]
    %v1159 = vld [vmem:[%s1147 + $0x2c] sm:$0xf]
    %v1160 = vld [vmem:[%s1147 + $0x30] sm:$0xf]
    %v1161 = vld [vmem:[%s1147 + $0x34] sm:$0xf]
    %v1162 = vld [vmem:[%s1147 + $0x38] sm:$0xf]
    %v1163 = vld [vmem:[%s1147 + $0x3c] sm:$0xf]
    %v1180 = vunpack.c.l.b16 %v1148
    %v1181 = vunpack.c.l.b16 %v1149
    %v1182 = vunpack.c.l.b16 %v1150
    %v1183 = vunpack.c.l.b16 %v1151
    %v1184 = vunpack.c.l.b16 %v1152
    %v1185 = vunpack.c.l.b16 %v1153
    %v1186 = vunpack.c.l.b16 %v1154
    %v1187 = vunpack.c.l.b16 %v1155
    %v1188 = vunpack.c.l.b16 %v1156
    %v1189 = vunpack.c.l.b16 %v1157
    %v1190 = vunpack.c.l.b16 %v1158
    %v1191 = vunpack.c.l.b16 %v1159
    %v1192 = vunpack.c.l.b16 %v1160
    %v1193 = vunpack.c.l.b16 %v1161
    %v1194 = vunpack.c.l.b16 %v1162
    %v1195 = vunpack.c.l.b16 %v1163
    %v1196 = vpack.c.b16 %v1181, %v1180
    %v1197 = vpack.c.b16 %v1183, %v1182
    %v1198 = vpack.c.b16 %v1185, %v1184
    %v1199 = vpack.c.b16 %v1187, %v1186
    %v1200 = vpack.c.b16 %v1189, %v1188
    %v1201 = vpack.c.b16 %v1191, %v1190
    %v1202 = vpack.c.b16 %v1193, %v1192
    %v1203 = vpack.c.b16 %v1195, %v1194
    %1212 = vmatpush.bf16.msra.mxu0 %v1203
    %1213 = vmatpush.bf16.msra.mxu0 %v1202
    %1214 = vmatpush.bf16.msra.mxu0 %v1201
    %1215 = vmatpush.bf16.msra.mxu0 %v1200
    %1216 = vmatpush.bf16.msra.mxu0 %v1199
    %1217 = vmatpush.bf16.msra.mxu0 %v1198
    %1218 = vmatpush.bf16.msra.mxu0 %v1197
    %1219 = vmatpush.bf16.msra.mxu0 %v1196
    %1220 = vmatmul.bf16.gmra.mxu0 %v1146
    %v1221 = vpop.f32.mrf.mxu0
    %v1222 = vadd.f32 0.0, %v1221
    %v1223 = vpop.f32.mrf.mxu0
    %v1224 = vadd.f32 0.0, %v1223
    %1225 = vdwg.mxu0
    %v1242 = vunpack.c.l.b16 %v1069
    %v1243 = vunpack.c.l.b16 %v1070
    %v1244 = vunpack.c.l.b16 %v1071
    %v1245 = vunpack.c.l.b16 %v1072
    %v1246 = vunpack.c.l.b16 %v1073
    %v1247 = vunpack.c.l.b16 %v1074
    %v1248 = vunpack.c.l.b16 %v1075
    %v1249 = vunpack.c.l.b16 %v1076
    %v1250 = vunpack.c.l.b16 %v1077
    %v1251 = vunpack.c.l.b16 %v1078
    %v1252 = vunpack.c.l.b16 %v1079
    %v1253 = vunpack.c.l.b16 %v1080
    %v1254 = vunpack.c.l.b16 %v1081
    %v1255 = vunpack.c.l.b16 %v1082
    %v1256 = vunpack.c.l.b16 %v1083
    %v1257 = vunpack.c.l.b16 %v1084
    %v1258 = vpack.c.b16 %v1243, %v1242
    %v1259 = vpack.c.b16 %v1245, %v1244
    %v1260 = vpack.c.b16 %v1247, %v1246
    %v1261 = vpack.c.b16 %v1249, %v1248
    %v1262 = vpack.c.b16 %v1251, %v1250
    %v1263 = vpack.c.b16 %v1253, %v1252
    %v1264 = vpack.c.b16 %v1255, %v1254
    %v1265 = vpack.c.b16 %v1257, %v1256
    %1274 = vmatpush.bf16.msra.mxu0 %v1265
    %1275 = vmatpush.bf16.msra.mxu0 %v1264
    %1276 = vmatpush.bf16.msra.mxu0 %v1263
    %1277 = vmatpush.bf16.msra.mxu0 %v1262
    %1278 = vmatpush.bf16.msra.mxu0 %v1261
    %1279 = vmatpush.bf16.msra.mxu0 %v1260
    %1280 = vmatpush.bf16.msra.mxu0 %v1259
    %1281 = vmatpush.bf16.msra.mxu0 %v1258
    %1282 = vmatmul.bf16.gmra.mxu0 %v1068
    %v1283 = vpop.f32.mrf.mxu0
    %v1284 = vadd.f32 %v1222, %v1283
    %v1285 = vpop.f32.mrf.mxu0
    %v1286 = vadd.f32 %v1224, %v1285
    %1287 = vdwg.mxu0
    %v1288 = vpack.c.bf16 %v878, %v876
    %v1289 = vpack.c.bf16 %v934, %v932
    %1290 = vmatpush.bf16.xpose.msra.mxu0 0
    %1291 = vmatpush.bf16.xpose.msra.mxu0 0
    %1292 = vmatpush.bf16.xpose.msra.mxu0 0
    %1293 = vmatpush.bf16.xpose.msra.mxu0 0
    %1294 = vmatpush.bf16.xpose.msra.mxu0 0
    %1295 = vmatpush.bf16.xpose.msra.mxu0 0
    %1296 = vmatpush.bf16.xpose.msra.mxu0 0
    %1297 = vmatpush.bf16.xpose.msra.mxu0 %v1289
    %1298 = vmatmul.bf16.gmra.mxu0 %v1288
    %v1299 = vpop.f32.mrf.mxu0
    %v1300 = vadd.f32 0.0, %v1299
    %v1301 = vpop.f32.mrf.mxu0
    %v1302 = vadd.f32 0.0, %v1301
    %1303 = vdwg.mxu0
    %v1304 = vmul.f32 %v1300, 0.35355338
    %v1305 = vmul.f32 %v1302, 0.35355338
    %v1306 = vadd.f32 %v1304, %v200
    %v1307 = vadd.f32 %v1305, %v201
    %v1308 = vsel %vm1026, %v1306, -inf
    %1309 = vmax.xlane.f32.xlu0 %v1308
    %v1310 = vpop.xlane.xlu0 %1309
    %v1311 = vsel %vm1026, %v1307, -inf
    %1312 = vmax.xlane.f32.xlu0 %v1311
    %v1313 = vpop.xlane.xlu0 %1312
    %v1314 = vsub.f32 %v1306, %v1310
    %v1315 = vsub.f32 %v1307, %v1313
    %v1316 = vmul.f32 %v1314, 1.442695
    %v1317 = vpow.pop %v1316
    %v1318 = vmul.f32 %v1315, 1.442695
    %v1319 = vpow.pop %v1318
    %v1320 = vsel %vm1026, %v1317, 0.0
    %1321 = vadd.xlane.f32.xlu0 %v1320
    %v1322 = vpop.xlane.xlu0 %1321
    %v1323 = vsel %vm1026, %v1319, 0.0
    %1324 = vadd.xlane.f32.xlu0 %v1323
    %v1325 = vpop.xlane.xlu0 %1324
    %v1326 = vrcp.pop %v1322
    %v1327 = vrcp.pop %v1325
    %v1328 = vmul.f32 %v1317, %v1326
    %v1329 = vmul.f32 %v1319, %v1327
    %v1330 = vpack.c.bf16 %v1329, %v1328
    %v1331 = vpack.c.bf16 %v990, %v988
    %v1333 = vsel %vm1026, %v1330, 0
    %1335 = vmatpush.bf16.msra.mxu0 0
    %1336 = vmatpush.bf16.msra.mxu0 0
    %1337 = vmatpush.bf16.msra.mxu0 0
    %1338 = vmatpush.bf16.msra.mxu0 0
    %1339 = vmatpush.bf16.msra.mxu0 0
    %1340 = vmatpush.bf16.msra.mxu0 0
    %1341 = vmatpush.bf16.msra.mxu0 0
    %1342 = vmatpush.bf16.msra.mxu0 %v1331
    %1343 = vmatmul.bf16.gmra.mxu0 %v1333
    %v1344 = vpop.f32.mrf.mxu0
    %v1345 = vadd.f32 0.0, %v1344
    %v1346 = vpop.f32.mrf.mxu0
    %v1347 = vadd.f32 0.0, %v1346
    %1348 = vdwg.mxu0
    %v1349 = vpack.c.bf16 %v1347, %v1345
    %s1350 = scalar_lea.vmem [#allocation10], 128
    %v1351 = vld [vmem:[%s1350] sm:$0xf]
    %v1352 = vld [vmem:[%s1350 + $0x4] sm:$0xf]
    %v1353 = vld [vmem:[%s1350 + $0x8] sm:$0xf]
    %v1354 = vld [vmem:[%s1350 + $0xc] sm:$0xf]
    %v1355 = vld [vmem:[%s1350 + $0x10] sm:$0xf]
    %v1356 = vld [vmem:[%s1350 + $0x14] sm:$0xf]
    %v1357 = vld [vmem:[%s1350 + $0x18] sm:$0xf]
    %v1358 = vld [vmem:[%s1350 + $0x1c] sm:$0xf]
    %v1359 = vld [vmem:[%s1350 + $0x20] sm:$0xf]
    %v1360 = vld [vmem:[%s1350 + $0x24] sm:$0xf]
    %v1361 = vld [vmem:[%s1350 + $0x28] sm:$0xf]
    %v1362 = vld [vmem:[%s1350 + $0x2c] sm:$0xf]
    %v1363 = vld [vmem:[%s1350 + $0x30] sm:$0xf]
    %v1364 = vld [vmem:[%s1350 + $0x34] sm:$0xf]
    %v1365 = vld [vmem:[%s1350 + $0x38] sm:$0xf]
    %v1366 = vld [vmem:[%s1350 + $0x3c] sm:$0xf]
    %v1383 = vunpack.c.l.b16 %v1351
    %v1384 = vunpack.c.l.b16 %v1352
    %v1385 = vunpack.c.l.b16 %v1353
    %v1386 = vunpack.c.l.b16 %v1354
    %v1387 = vunpack.c.l.b16 %v1355
    %v1388 = vunpack.c.l.b16 %v1356
    %v1389 = vunpack.c.l.b16 %v1357
    %v1390 = vunpack.c.l.b16 %v1358
    %v1391 = vunpack.c.l.b16 %v1359
    %v1392 = vunpack.c.l.b16 %v1360
    %v1393 = vunpack.c.l.b16 %v1361
    %v1394 = vunpack.c.l.b16 %v1362
    %v1395 = vunpack.c.l.b16 %v1363
    %v1396 = vunpack.c.l.b16 %v1364
    %v1397 = vunpack.c.l.b16 %v1365
    %v1398 = vunpack.c.l.b16 %v1366
    %v1399 = vpack.c.b16 %v1384, %v1383
    %v1400 = vpack.c.b16 %v1386, %v1385
    %v1401 = vpack.c.b16 %v1388, %v1387
    %v1402 = vpack.c.b16 %v1390, %v1389
    %v1403 = vpack.c.b16 %v1392, %v1391
    %v1404 = vpack.c.b16 %v1394, %v1393
    %v1405 = vpack.c.b16 %v1396, %v1395
    %v1406 = vpack.c.b16 %v1398, %v1397
    %1415 = vmatpush.bf16.msra.mxu0 %v1406
    %1416 = vmatpush.bf16.msra.mxu0 %v1405
    %1417 = vmatpush.bf16.msra.mxu0 %v1404
    %1418 = vmatpush.bf16.msra.mxu0 %v1403
    %1419 = vmatpush.bf16.msra.mxu0 %v1402
    %1420 = vmatpush.bf16.msra.mxu0 %v1401
    %1421 = vmatpush.bf16.msra.mxu0 %v1400
    %1422 = vmatpush.bf16.msra.mxu0 %v1399
    %1423 = vmatmul.bf16.gmra.mxu0 %v1349
    %v1424 = vpop.f32.mrf.mxu0
    %v1425 = vadd.f32 0.0, %v1424
    %v1426 = vpop.f32.mrf.mxu0
    %v1427 = vadd.f32 0.0, %v1426
    %1428 = vdwg.mxu0
    %v1429 = vadd.f32 %v1284, %v1425
    %v1430 = vadd.f32 %v1286, %v1427
    %v1431 = vpack.c.bf16 %v892, %v890
    %v1432 = vpack.c.bf16 %v948, %v946
    %1433 = vmatpush.bf16.xpose.msra.mxu0 0
    %1434 = vmatpush.bf16.xpose.msra.mxu0 0
    %1435 = vmatpush.bf16.xpose.msra.mxu0 0
    %1436 = vmatpush.bf16.xpose.msra.mxu0 0
    %1437 = vmatpush.bf16.xpose.msra.mxu0 0
    %1438 = vmatpush.bf16.xpose.msra.mxu0 0
    %1439 = vmatpush.bf16.xpose.msra.mxu0 0
    %1440 = vmatpush.bf16.xpose.msra.mxu0 %v1432
    %1441 = vmatmul.bf16.gmra.mxu0 %v1431
    %v1442 = vpop.f32.mrf.mxu0
    %v1443 = vadd.f32 0.0, %v1442
    %v1444 = vpop.f32.mrf.mxu0
    %v1445 = vadd.f32 0.0, %v1444
    %1446 = vdwg.mxu0
    %v1447 = vmul.f32 %v1443, 0.35355338
    %v1448 = vmul.f32 %v1445, 0.35355338
    %v1449 = vadd.f32 %v1447, %v200
    %v1450 = vadd.f32 %v1448, %v201
    %v1451 = vsel %vm1026, %v1449, -inf
    %1452 = vmax.xlane.f32.xlu0 %v1451
    %v1453 = vpop.xlane.xlu0 %1452
    %v1454 = vsel %vm1026, %v1450, -inf
    %1455 = vmax.xlane.f32.xlu0 %v1454
    %v1456 = vpop.xlane.xlu0 %1455
    %v1457 = vsub.f32 %v1449, %v1453
    %v1458 = vsub.f32 %v1450, %v1456
    %v1459 = vmul.f32 %v1457, 1.442695
    %v1460 = vpow.pop %v1459
    %v1461 = vmul.f32 %v1458, 1.442695
    %v1462 = vpow.pop %v1461
    %v1463 = vsel %vm1026, %v1460, 0.0
    %1464 = vadd.xlane.f32.xlu0 %v1463
    %v1465 = vpop.xlane.xlu0 %1464
    %v1466 = vsel %vm1026, %v1462, 0.0
    %1467 = vadd.xlane.f32.xlu0 %v1466
    %v1468 = vpop.xlane.xlu0 %1467
    %v1469 = vrcp.pop %v1465
    %v1470 = vrcp.pop %v1468
    %v1471 = vmul.f32 %v1460, %v1469
    %v1472 = vmul.f32 %v1462, %v1470
    %v1473 = vpack.c.bf16 %v1472, %v1471
    %v1474 = vpack.c.bf16 %v1004, %v1002
    %v1476 = vsel %vm1026, %v1473, 0
    %1478 = vmatpush.bf16.msra.mxu0 0
    %1479 = vmatpush.bf16.msra.mxu0 0
    %1480 = vmatpush.bf16.msra.mxu0 0
    %1481 = vmatpush.bf16.msra.mxu0 0
    %1482 = vmatpush.bf16.msra.mxu0 0
    %1483 = vmatpush.bf16.msra.mxu0 0
    %1484 = vmatpush.bf16.msra.mxu0 0
    %1485 = vmatpush.bf16.msra.mxu0 %v1474
    %1486 = vmatmul.bf16.gmra.mxu0 %v1476
    %v1487 = vpop.f32.mrf.mxu0
    %v1488 = vadd.f32 0.0, %v1487
    %v1489 = vpop.f32.mrf.mxu0
    %v1490 = vadd.f32 0.0, %v1489
    %1491 = vdwg.mxu0
    %v1492 = vpack.c.bf16 %v1490, %v1488
    %s1493 = scalar_lea.vmem [#allocation10], 192
    %v1494 = vld [vmem:[%s1493] sm:$0xf]
    %v1495 = vld [vmem:[%s1493 + $0x4] sm:$0xf]
    %v1496 = vld [vmem:[%s1493 + $0x8] sm:$0xf]
    %v1497 = vld [vmem:[%s1493 + $0xc] sm:$0xf]
    %v1498 = vld [vmem:[%s1493 + $0x10] sm:$0xf]
    %v1499 = vld [vmem:[%s1493 + $0x14] sm:$0xf]
    %v1500 = vld [vmem:[%s1493 + $0x18] sm:$0xf]
    %v1501 = vld [vmem:[%s1493 + $0x1c] sm:$0xf]
    %v1502 = vld [vmem:[%s1493 + $0x20] sm:$0xf]
    %v1503 = vld [vmem:[%s1493 + $0x24] sm:$0xf]
    %v1504 = vld [vmem:[%s1493 + $0x28] sm:$0xf]
    %v1505 = vld [vmem:[%s1493 + $0x2c] sm:$0xf]
    %v1506 = vld [vmem:[%s1493 + $0x30] sm:$0xf]
    %v1507 = vld [vmem:[%s1493 + $0x34] sm:$0xf]
    %v1508 = vld [vmem:[%s1493 + $0x38] sm:$0xf]
    %v1509 = vld [vmem:[%s1493 + $0x3c] sm:$0xf]
    %v1526 = vunpack.c.l.b16 %v1494
    %v1527 = vunpack.c.l.b16 %v1495
    %v1528 = vunpack.c.l.b16 %v1496
    %v1529 = vunpack.c.l.b16 %v1497
    %v1530 = vunpack.c.l.b16 %v1498
    %v1531 = vunpack.c.l.b16 %v1499
    %v1532 = vunpack.c.l.b16 %v1500
    %v1533 = vunpack.c.l.b16 %v1501
    %v1534 = vunpack.c.l.b16 %v1502
    %v1535 = vunpack.c.l.b16 %v1503
    %v1536 = vunpack.c.l.b16 %v1504
    %v1537 = vunpack.c.l.b16 %v1505
    %v1538 = vunpack.c.l.b16 %v1506
    %v1539 = vunpack.c.l.b16 %v1507
    %v1540 = vunpack.c.l.b16 %v1508
    %v1541 = vunpack.c.l.b16 %v1509
    %v1542 = vpack.c.b16 %v1527, %v1526
    %v1543 = vpack.c.b16 %v1529, %v1528
    %v1544 = vpack.c.b16 %v1531, %v1530
    %v1545 = vpack.c.b16 %v1533, %v1532
    %v1546 = vpack.c.b16 %v1535, %v1534
    %v1547 = vpack.c.b16 %v1537, %v1536
    %v1548 = vpack.c.b16 %v1539, %v1538
    %v1549 = vpack.c.b16 %v1541, %v1540
    %1558 = vmatpush.bf16.msra.mxu0 %v1549
    %1559 = vmatpush.bf16.msra.mxu0 %v1548
    %1560 = vmatpush.bf16.msra.mxu0 %v1547
    %1561 = vmatpush.bf16.msra.mxu0 %v1546
    %1562 = vmatpush.bf16.msra.mxu0 %v1545
    %1563 = vmatpush.bf16.msra.mxu0 %v1544
    %1564 = vmatpush.bf16.msra.mxu0 %v1543
    %1565 = vmatpush.bf16.msra.mxu0 %v1542
    %1566 = vmatmul.bf16.gmra.mxu0 %v1492
    %v1567 = vpop.f32.mrf.mxu0
    %v1568 = vadd.f32 0.0, %v1567
    %v1569 = vpop.f32.mrf.mxu0
    %v1570 = vadd.f32 0.0, %v1569
    %1571 = vdwg.mxu0
    %v1572 = vadd.f32 %v1429, %v1568
    %v1573 = vadd.f32 %v1430, %v1570
    %v1574 = vadd.f32 %v198, %v1572
    %v1575 = vadd.f32 %v199, %v1573
    %v1576 = vld [vmem:[%s6] sm:$0x1]
    %v1578 = vperm.slane %v1576, 0
    %v1580 = vadd.f32 %v1574, %v1578
    %v1581 = vadd.f32 %v1575, %v1578
    %v1582 = vld [vmem:[%s7] sm:$0x1]
    %v1583 = vld [vmem:[#allocation11] sm:$0x1]
    %1584 = vadd.xlane.f32.xlu0 %v1580
    %v1585 = vpop.xlane.xlu0 %1584
    %1586 = vadd.xlane.f32.xlu0 %v1581
    %v1587 = vpop.xlane.xlu0 %1586
    %v1588 = vmul.f32 %v1585, 0.03125
    %v1589 = vmul.f32 %v1587, 0.03125
    %v1590 = vsub.f32 %v1580, %v1588
    %v1591 = vsub.f32 %v1581, %v1589
    %v1592 = vmul.f32 %v1590, %v206
    %v1593 = vmul.f32 %v1591, %v206
    %v1594 = vmul.f32 %v1592, %v1592
    %v1595 = vmul.f32 %v1593, %v1593
    %1596 = vadd.xlane.f32.xlu0 %v1594
    %v1597 = vpop.xlane.xlu0 %1596
    %1598 = vadd.xlane.f32.xlu0 %v1595
    %v1599 = vpop.xlane.xlu0 %1598
    %v1600 = vmul.f32 %v1597, 0.03125
    %v1601 = vmul.f32 %v1599, 0.03125
    %v1602 = vadd.f32 %v1600, 1e-05
    %v1603 = vadd.f32 %v1601, 1e-05
    %v1604 = vrsqrt.pop %v1602
    %v1605 = vmul.f32 %v1604, %v1602
    %v1606 = vmul.f32 %v1605, %v1604
    %v1607 = vmul.f32 0.5, %v1606
    %v1608 = vsub.f32 1.5, %v1607
    %v1609 = vmul.f32 %v1604, %v1608
    %vm1610 = vweird.f32 %v1602
    %vm1611 = vweird.f32 %v1604
    %vm1612 = vmor %vm1610, %vm1611
    %v1613 = vsel %vm1612, %v1604, %v1609
    %v1614 = vrsqrt.pop %v1603
    %v1615 = vmul.f32 %v1614, %v1603
    %v1616 = vmul.f32 %v1615, %v1614
    %v1617 = vmul.f32 0.5, %v1616
    %v1618 = vsub.f32 1.5, %v1617
    %v1619 = vmul.f32 %v1614, %v1618
    %vm1620 = vweird.f32 %v1603
    %vm1621 = vweird.f32 %v1614
    %vm1622 = vmor %vm1620, %vm1621
    %v1623 = vsel %vm1622, %v1614, %v1619
    %v1624 = vmul.f32 %v1592, %v1613
    %v1625 = vmul.f32 %v1593, %v1623
    %v1627 = vperm.slane %v1582, 0
    %v1629 = vmul.f32 %v1624, %v1627
    %v1630 = vmul.f32 %v1625, %v1627
    %v1632 = vperm.slane %v1583, 0
    %v1634 = vadd.f32 %v1629, %v1632
    %v1635 = vadd.f32 %v1630, %v1632
    %v1636 = vpack.c.bf16 %v1635, %v1634
    %v1637 = vld [vmem:[#allocation13] sm:$0xf]
    %v1638 = vld [vmem:[#allocation13 + $0x4] sm:$0xf]
    %v1639 = vld [vmem:[#allocation13 + $0x8] sm:$0xf]
    %v1640 = vld [vmem:[#allocation13 + $0xc] sm:$0xf]
    %v1641 = vld [vmem:[#allocation13 + $0x10] sm:$0xf]
    %v1642 = vld [vmem:[#allocation13 + $0x14] sm:$0xf]
    %v1643 = vld [vmem:[#allocation13 + $0x18] sm:$0xf]
    %v1644 = vld [vmem:[#allocation13 + $0x1c] sm:$0xf]
    %v1645 = vld [vmem:[#allocation13 + $0x20] sm:$0xf]
    %v1646 = vld [vmem:[#allocation13 + $0x24] sm:$0xf]
    %v1647 = vld [vmem:[#allocation13 + $0x28] sm:$0xf]
    %v1648 = vld [vmem:[#allocation13 + $0x2c] sm:$0xf]
    %v1649 = vld [vmem:[#allocation13 + $0x30] sm:$0xf]
    %v1650 = vld [vmem:[#allocation13 + $0x34] sm:$0xf]
    %v1651 = vld [vmem:[#allocation13 + $0x38] sm:$0xf]
    %v1652 = vld [vmem:[#allocation13 + $0x3c] sm:$0xf]
    %v1653 = vld [vmem:[%s10] sm:$0x1]
    %v1655 = vperm.slane %v1653, 0
    %v1673 = vunpack.c.l.b16 %v1637
    %v1674 = vunpack.c.l.b16 %v1638
    %v1675 = vunpack.c.l.b16 %v1639
    %v1676 = vunpack.c.l.b16 %v1640
    %v1677 = vunpack.c.l.b16 %v1641
    %v1678 = vunpack.c.l.b16 %v1642
    %v1679 = vunpack.c.l.b16 %v1643
    %v1680 = vunpack.c.l.b16 %v1644
    %v1681 = vunpack.c.l.b16 %v1645
    %v1682 = vunpack.c.l.b16 %v1646
    %v1683 = vunpack.c.l.b16 %v1647
    %v1684 = vunpack.c.l.b16 %v1648
    %v1685 = vunpack.c.l.b16 %v1649
    %v1686 = vunpack.c.l.b16 %v1650
    %v1687 = vunpack.c.l.b16 %v1651
    %v1688 = vunpack.c.l.b16 %v1652
    %v1689 = vpack.c.b16 %v1674, %v1673
    %v1690 = vpack.c.b16 %v1676, %v1675
    %v1691 = vpack.c.b16 %v1678, %v1677
    %v1692 = vpack.c.b16 %v1680, %v1679
    %v1693 = vpack.c.b16 %v1682, %v1681
    %v1694 = vpack.c.b16 %v1684, %v1683
    %v1695 = vpack.c.b16 %v1686, %v1685
    %v1696 = vpack.c.b16 %v1688, %v1687
    %1705 = vmatpush.bf16.msra.mxu0 %v1696
    %1706 = vmatpush.bf16.msra.mxu0 %v1695
    %1707 = vmatpush.bf16.msra.mxu0 %v1694
    %1708 = vmatpush.bf16.msra.mxu0 %v1693
    %1709 = vmatpush.bf16.msra.mxu0 %v1692
    %1710 = vmatpush.bf16.msra.mxu0 %v1691
    %1711 = vmatpush.bf16.msra.mxu0 %v1690
    %1712 = vmatpush.bf16.msra.mxu0 %v1689
    %1713 = vmatmul.bf16.gmra.mxu0 %v1636
    %v1714 = vpop.f32.mrf.mxu0
    %v1715 = vadd.f32 %v1655, %v1714
    %v1716 = vpop.f32.mrf.mxu0
    %v1717 = vadd.f32 %v1655, %v1716
    %1718 = vdwg.mxu0
    %v1719 = vmax.f32 %v1715, 0.0
    %v1720 = vmax.f32 %v1717, 0.0
    %v1721 = vpack.c.bf16 %v1720, %v1719
    %v1722 = vld [vmem:[#allocation14] sm:$0xf]
    %v1723 = vld [vmem:[#allocation14 + $0x4] sm:$0xf]
    %v1724 = vld [vmem:[#allocation14 + $0x8] sm:$0xf]
    %v1725 = vld [vmem:[#allocation14 + $0xc] sm:$0xf]
    %v1726 = vld [vmem:[#allocation14 + $0x10] sm:$0xf]
    %v1727 = vld [vmem:[#allocation14 + $0x14] sm:$0xf]
    %v1728 = vld [vmem:[#allocation14 + $0x18] sm:$0xf]
    %v1729 = vld [vmem:[#allocation14 + $0x1c] sm:$0xf]
    %v1730 = vld [vmem:[#allocation14 + $0x20] sm:$0xf]
    %v1731 = vld [vmem:[#allocation14 + $0x24] sm:$0xf]
    %v1732 = vld [vmem:[#allocation14 + $0x28] sm:$0xf]
    %v1733 = vld [vmem:[#allocation14 + $0x2c] sm:$0xf]
    %v1734 = vld [vmem:[#allocation14 + $0x30] sm:$0xf]
    %v1735 = vld [vmem:[#allocation14 + $0x34] sm:$0xf]
    %v1736 = vld [vmem:[#allocation14 + $0x38] sm:$0xf]
    %v1737 = vld [vmem:[#allocation14 + $0x3c] sm:$0xf]
    %v1754 = vunpack.c.l.b16 %v1722
    %v1755 = vunpack.c.l.b16 %v1723
    %v1756 = vunpack.c.l.b16 %v1724
    %v1757 = vunpack.c.l.b16 %v1725
    %v1758 = vunpack.c.l.b16 %v1726
    %v1759 = vunpack.c.l.b16 %v1727
    %v1760 = vunpack.c.l.b16 %v1728
    %v1761 = vunpack.c.l.b16 %v1729
    %v1762 = vunpack.c.l.b16 %v1730
    %v1763 = vunpack.c.l.b16 %v1731
    %v1764 = vunpack.c.l.b16 %v1732
    %v1765 = vunpack.c.l.b16 %v1733
    %v1766 = vunpack.c.l.b16 %v1734
    %v1767 = vunpack.c.l.b16 %v1735
    %v1768 = vunpack.c.l.b16 %v1736
    %v1769 = vunpack.c.l.b16 %v1737
    %v1770 = vpack.c.b16 %v1755, %v1754
    %v1771 = vpack.c.b16 %v1757, %v1756
    %v1772 = vpack.c.b16 %v1759, %v1758
    %v1773 = vpack.c.b16 %v1761, %v1760
    %v1774 = vpack.c.b16 %v1763, %v1762
    %v1775 = vpack.c.b16 %v1765, %v1764
    %v1776 = vpack.c.b16 %v1767, %v1766
    %v1777 = vpack.c.b16 %v1769, %v1768
    %1786 = vmatpush.bf16.msra.mxu0 %v1777
    %1787 = vmatpush.bf16.msra.mxu0 %v1776
    %1788 = vmatpush.bf16.msra.mxu0 %v1775
    %1789 = vmatpush.bf16.msra.mxu0 %v1774
    %1790 = vmatpush.bf16.msra.mxu0 %v1773
    %1791 = vmatpush.bf16.msra.mxu0 %v1772
    %1792 = vmatpush.bf16.msra.mxu0 %v1771
    %1793 = vmatpush.bf16.msra.mxu0 %v1770
    %1794 = vmatmul.bf16.gmra.mxu0 %v1721
    %v1795 = vpop.f32.mrf.mxu0
    %v1796 = vadd.f32 0.0, %v1795
    %v1797 = vpop.f32.mrf.mxu0
    %v1798 = vadd.f32 0.0, %v1797
    %1799 = vdwg.mxu0
    %v1800 = vadd.f32 %v1580, %v1796
    %v1801 = vadd.f32 %v1581, %v1798
    %v1802 = vld [vmem:[%s12] sm:$0x1]
    %v1804 = vperm.slane %v1802, 0
    %v1806 = vadd.f32 %v1800, %v1804
    %v1807 = vadd.f32 %v1801, %v1804
    %s1808 = scalar_lea.vmem [#allocation7], 1
    %v1809 = vld [vmem:[%s1808] sm:$0x1]
    %s1810 = scalar_lea.vmem %s3, 1
    %v1811 = vld [vmem:[%s1810] sm:$0x1]
    %1812 = vadd.xlane.f32.xlu0 %v1806
    %v1813 = vpop.xlane.xlu0 %1812
    %1814 = vadd.xlane.f32.xlu0 %v1807
    %v1815 = vpop.xlane.xlu0 %1814
    %v1816 = vmul.f32 %v1813, 0.03125
    %v1817 = vmul.f32 %v1815, 0.03125
    %v1818 = vsub.f32 %v1806, %v1816
    %v1819 = vsub.f32 %v1807, %v1817
    %v1820 = vmul.f32 %v1818, %v206
    %v1821 = vmul.f32 %v1819, %v206
    %v1822 = vmul.f32 %v1820, %v1820
    %v1823 = vmul.f32 %v1821, %v1821
    %1824 = vadd.xlane.f32.xlu0 %v1822
    %v1825 = vpop.xlane.xlu0 %1824
    %1826 = vadd.xlane.f32.xlu0 %v1823
    %v1827 = vpop.xlane.xlu0 %1826
    %v1828 = vmul.f32 %v1825, 0.03125
    %v1829 = vmul.f32 %v1827, 0.03125
    %v1830 = vadd.f32 %v1828, 1e-05
    %v1831 = vadd.f32 %v1829, 1e-05
    %v1832 = vrsqrt.pop %v1830
    %v1833 = vmul.f32 %v1832, %v1830
    %v1834 = vmul.f32 %v1833, %v1832
    %v1835 = vmul.f32 0.5, %v1834
    %v1836 = vsub.f32 1.5, %v1835
    %v1837 = vmul.f32 %v1832, %v1836
    %vm1838 = vweird.f32 %v1830
    %vm1839 = vweird.f32 %v1832
    %vm1840 = vmor %vm1838, %vm1839
    %v1841 = vsel %vm1840, %v1832, %v1837
    %v1842 = vrsqrt.pop %v1831
    %v1843 = vmul.f32 %v1842, %v1831
    %v1844 = vmul.f32 %v1843, %v1842
    %v1845 = vmul.f32 0.5, %v1844
    %v1846 = vsub.f32 1.5, %v1845
    %v1847 = vmul.f32 %v1842, %v1846
    %vm1848 = vweird.f32 %v1831
    %vm1849 = vweird.f32 %v1842
    %vm1850 = vmor %vm1848, %vm1849
    %v1851 = vsel %vm1850, %v1842, %v1847
    %v1852 = vmul.f32 %v1820, %v1841
    %v1853 = vmul.f32 %v1821, %v1851
    %v1855 = vperm.slane %v1809, 0
    %v1857 = vmul.f32 %v1852, %v1855
    %v1858 = vmul.f32 %v1853, %v1855
    %v1860 = vperm.slane %v1811, 0
    %v1862 = vadd.f32 %v1857, %v1860
    %v1863 = vadd.f32 %v1858, %v1860
    %v1864 = vpack.c.bf16 %v1863, %v1862
    %s1865 = scalar_lea.vmem [#allocation8], 768
    %v1866 = vld [vmem:[%s1865] sm:$0xff]
    %v1867 = vld [vmem:[%s1865 + $0x8] sm:$0xff]
    %v1868 = vld [vmem:[%s1865 + $0x10] sm:$0xff]
    %v1869 = vld [vmem:[%s1865 + $0x18] sm:$0xff]
    %v1870 = vld [vmem:[%s1865 + $0x20] sm:$0xff]
    %v1871 = vld [vmem:[%s1865 + $0x28] sm:$0xff]
    %v1872 = vld [vmem:[%s1865 + $0x30] sm:$0xff]
    %v1873 = vld [vmem:[%s1865 + $0x38] sm:$0xff]
    %v1874 = vld [vmem:[%s1865 + $0x40] sm:$0xff]
    %v1875 = vld [vmem:[%s1865 + $0x48] sm:$0xff]
    %v1876 = vld [vmem:[%s1865 + $0x50] sm:$0xff]
    %v1877 = vld [vmem:[%s1865 + $0x58] sm:$0xff]
    %v1878 = vld [vmem:[%s1865 + $0x60] sm:$0xff]
    %v1879 = vld [vmem:[%s1865 + $0x68] sm:$0xff]
    %v1880 = vld [vmem:[%s1865 + $0x70] sm:$0xff]
    %v1881 = vld [vmem:[%s1865 + $0x78] sm:$0xff]
    %v1882 = vld [vmem:[%s1865 + $0x80] sm:$0xff]
    %v1883 = vld [vmem:[%s1865 + $0x88] sm:$0xff]
    %v1884 = vld [vmem:[%s1865 + $0x90] sm:$0xff]
    %v1885 = vld [vmem:[%s1865 + $0x98] sm:$0xff]
    %v1886 = vld [vmem:[%s1865 + $0xa0] sm:$0xff]
    %v1887 = vld [vmem:[%s1865 + $0xa8] sm:$0xff]
    %v1888 = vld [vmem:[%s1865 + $0xb0] sm:$0xff]
    %v1889 = vld [vmem:[%s1865 + $0xb8] sm:$0xff]
    %v1890 = vld [vmem:[%s1865 + $0xc0] sm:$0xff]
    %v1891 = vld [vmem:[%s1865 + $0xc8] sm:$0xff]
    %v1892 = vld [vmem:[%s1865 + $0xd0] sm:$0xff]
    %v1893 = vld [vmem:[%s1865 + $0xd8] sm:$0xff]
    %v1894 = vld [vmem:[%s1865 + $0xe0] sm:$0xff]
    %v1895 = vld [vmem:[%s1865 + $0xe8] sm:$0xff]
    %v1896 = vld [vmem:[%s1865 + $0xf0] sm:$0xff]
    %v1897 = vld [vmem:[%s1865 + $0xf8] sm:$0xff]
    %v1898 = vld [vmem:[%s1865 + $0x100] sm:$0xff]
    %v1899 = vld [vmem:[%s1865 + $0x108] sm:$0xff]
    %v1900 = vld [vmem:[%s1865 + $0x110] sm:$0xff]
    %v1901 = vld [vmem:[%s1865 + $0x118] sm:$0xff]
    %v1902 = vld [vmem:[%s1865 + $0x120] sm:$0xff]
    %v1903 = vld [vmem:[%s1865 + $0x128] sm:$0xff]
    %v1904 = vld [vmem:[%s1865 + $0x130] sm:$0xff]
    %v1905 = vld [vmem:[%s1865 + $0x138] sm:$0xff]
    %v1906 = vld [vmem:[%s1865 + $0x140] sm:$0xff]
    %v1907 = vld [vmem:[%s1865 + $0x148] sm:$0xff]
    %v1908 = vld [vmem:[%s1865 + $0x150] sm:$0xff]
    %v1909 = vld [vmem:[%s1865 + $0x158] sm:$0xff]
    %v1910 = vld [vmem:[%s1865 + $0x160] sm:$0xff]
    %v1911 = vld [vmem:[%s1865 + $0x168] sm:$0xff]
    %v1912 = vld [vmem:[%s1865 + $0x170] sm:$0xff]
    %v1913 = vld [vmem:[%s1865 + $0x178] sm:$0xff]
    %v1914 = vld [vmem:[%s1865 + $0x180] sm:$0xff]
    %v1915 = vld [vmem:[%s1865 + $0x188] sm:$0xff]
    %v1916 = vld [vmem:[%s1865 + $0x190] sm:$0xff]
    %v1917 = vld [vmem:[%s1865 + $0x198] sm:$0xff]
    %v1918 = vld [vmem:[%s1865 + $0x1a0] sm:$0xff]
    %v1919 = vld [vmem:[%s1865 + $0x1a8] sm:$0xff]
    %v1920 = vld [vmem:[%s1865 + $0x1b0] sm:$0xff]
    %v1921 = vld [vmem:[%s1865 + $0x1b8] sm:$0xff]
    %v1922 = vld [vmem:[%s1865 + $0x1c0] sm:$0xff]
    %v1923 = vld [vmem:[%s1865 + $0x1c8] sm:$0xff]
    %v1924 = vld [vmem:[%s1865 + $0x1d0] sm:$0xff]
    %v1925 = vld [vmem:[%s1865 + $0x1d8] sm:$0xff]
    %v1926 = vld [vmem:[%s1865 + $0x1e0] sm:$0xff]
    %v1927 = vld [vmem:[%s1865 + $0x1e8] sm:$0xff]
    %v1928 = vld [vmem:[%s1865 + $0x1f0] sm:$0xff]
    %v1929 = vld [vmem:[%s1865 + $0x1f8] sm:$0xff]
    %v1930 = vld [vmem:[%s1865 + $0x200] sm:$0xff]
    %v1931 = vld [vmem:[%s1865 + $0x208] sm:$0xff]
    %v1932 = vld [vmem:[%s1865 + $0x210] sm:$0xff]
    %v1933 = vld [vmem:[%s1865 + $0x218] sm:$0xff]
    %v1934 = vld [vmem:[%s1865 + $0x220] sm:$0xff]
    %v1935 = vld [vmem:[%s1865 + $0x228] sm:$0xff]
    %v1936 = vld [vmem:[%s1865 + $0x230] sm:$0xff]
    %v1937 = vld [vmem:[%s1865 + $0x238] sm:$0xff]
    %v1938 = vld [vmem:[%s1865 + $0x240] sm:$0xff]
    %v1939 = vld [vmem:[%s1865 + $0x248] sm:$0xff]
    %v1940 = vld [vmem:[%s1865 + $0x250] sm:$0xff]
    %v1941 = vld [vmem:[%s1865 + $0x258] sm:$0xff]
    %v1942 = vld [vmem:[%s1865 + $0x260] sm:$0xff]
    %v1943 = vld [vmem:[%s1865 + $0x268] sm:$0xff]
    %v1944 = vld [vmem:[%s1865 + $0x270] sm:$0xff]
    %v1945 = vld [vmem:[%s1865 + $0x278] sm:$0xff]
    %v1946 = vld [vmem:[%s1865 + $0x280] sm:$0xff]
    %v1947 = vld [vmem:[%s1865 + $0x288] sm:$0xff]
    %v1948 = vld [vmem:[%s1865 + $0x290] sm:$0xff]
    %v1949 = vld [vmem:[%s1865 + $0x298] sm:$0xff]
    %v1950 = vld [vmem:[%s1865 + $0x2a0] sm:$0xff]
    %v1951 = vld [vmem:[%s1865 + $0x2a8] sm:$0xff]
    %v1952 = vld [vmem:[%s1865 + $0x2b0] sm:$0xff]
    %v1953 = vld [vmem:[%s1865 + $0x2b8] sm:$0xff]
    %v1954 = vld [vmem:[%s1865 + $0x2c0] sm:$0xff]
    %v1955 = vld [vmem:[%s1865 + $0x2c8] sm:$0xff]
    %v1956 = vld [vmem:[%s1865 + $0x2d0] sm:$0xff]
    %v1957 = vld [vmem:[%s1865 + $0x2d8] sm:$0xff]
    %v1958 = vld [vmem:[%s1865 + $0x2e0] sm:$0xff]
    %v1959 = vld [vmem:[%s1865 + $0x2e8] sm:$0xff]
    %v1960 = vld [vmem:[%s1865 + $0x2f0] sm:$0xff]
    %v1961 = vld [vmem:[%s1865 + $0x2f8] sm:$0xff]
    %v2058 = vunpack.c.l.b16 %v1866
    %v2059 = vunpack.c.h.b16 %v1866
    %v2060 = vunpack.c.l.b16 %v1867
    %v2061 = vunpack.c.h.b16 %v1867
    %v2062 = vunpack.c.l.b16 %v1868
    %v2063 = vunpack.c.h.b16 %v1868
    %v2064 = vunpack.c.l.b16 %v1869
    %v2065 = vunpack.c.h.b16 %v1869
    %v2066 = vunpack.c.l.b16 %v1870
    %v2067 = vunpack.c.h.b16 %v1870
    %v2068 = vunpack.c.l.b16 %v1871
    %v2069 = vunpack.c.h.b16 %v1871
    %v2070 = vunpack.c.l.b16 %v1872
    %v2071 = vunpack.c.h.b16 %v1872
    %v2072 = vunpack.c.l.b16 %v1873
    %v2073 = vunpack.c.h.b16 %v1873
    %v2074 = vunpack.c.l.b16 %v1874
    %v2075 = vunpack.c.h.b16 %v1874
    %v2076 = vunpack.c.l.b16 %v1875
    %v2077 = vunpack.c.h.b16 %v1875
    %v2078 = vunpack.c.l.b16 %v1876
    %v2079 = vunpack.c.h.b16 %v1876
    %v2080 = vunpack.c.l.b16 %v1877
    %v2081 = vunpack.c.h.b16 %v1877
    %v2082 = vunpack.c.l.b16 %v1878
    %v2083 = vunpack.c.h.b16 %v1878
    %v2084 = vunpack.c.l.b16 %v1879
    %v2085 = vunpack.c.h.b16 %v1879
    %v2086 = vunpack.c.l.b16 %v1880
    %v2087 = vunpack.c.h.b16 %v1880
    %v2088 = vunpack.c.l.b16 %v1881
    %v2089 = vunpack.c.h.b16 %v1881
    %v2090 = vunpack.c.l.b16 %v1882
    %v2091 = vunpack.c.h.b16 %v1882
    %v2092 = vunpack.c.l.b16 %v1883
    %v2093 = vunpack.c.h.b16 %v1883
    %v2094 = vunpack.c.l.b16 %v1884
    %v2095 = vunpack.c.h.b16 %v1884
    %v2096 = vunpack.c.l.b16 %v1885
    %v2097 = vunpack.c.h.b16 %v1885
    %v2098 = vunpack.c.l.b16 %v1886
    %v2099 = vunpack.c.h.b16 %v1886
    %v2100 = vunpack.c.l.b16 %v1887
    %v2101 = vunpack.c.h.b16 %v1887
    %v2102 = vunpack.c.l.b16 %v1888
    %v2103 = vunpack.c.h.b16 %v1888
    %v2104 = vunpack.c.l.b16 %v1889
    %v2105 = vunpack.c.h.b16 %v1889
    %v2106 = vunpack.c.l.b16 %v1890
    %v2107 = vunpack.c.h.b16 %v1890
    %v2108 = vunpack.c.l.b16 %v1891
    %v2109 = vunpack.c.h.b16 %v1891
    %v2110 = vunpack.c.l.b16 %v1892
    %v2111 = vunpack.c.h.b16 %v1892
    %v2112 = vunpack.c.l.b16 %v1893
    %v2113 = vunpack.c.h.b16 %v1893
    %v2114 = vunpack.c.l.b16 %v1894
    %v2115 = vunpack.c.h.b16 %v1894
    %v2116 = vunpack.c.l.b16 %v1895
    %v2117 = vunpack.c.h.b16 %v1895
    %v2118 = vunpack.c.l.b16 %v1896
    %v2119 = vunpack.c.h.b16 %v1896
    %v2120 = vunpack.c.l.b16 %v1897
    %v2121 = vunpack.c.h.b16 %v1897
    %v2122 = vunpack.c.l.b16 %v1898
    %v2123 = vunpack.c.h.b16 %v1898
    %v2124 = vunpack.c.l.b16 %v1899
    %v2125 = vunpack.c.h.b16 %v1899
    %v2126 = vunpack.c.l.b16 %v1900
    %v2127 = vunpack.c.h.b16 %v1900
    %v2128 = vunpack.c.l.b16 %v1901
    %v2129 = vunpack.c.h.b16 %v1901
    %v2130 = vunpack.c.l.b16 %v1902
    %v2131 = vunpack.c.h.b16 %v1902
    %v2132 = vunpack.c.l.b16 %v1903
    %v2133 = vunpack.c.h.b16 %v1903
    %v2134 = vunpack.c.l.b16 %v1904
    %v2135 = vunpack.c.h.b16 %v1904
    %v2136 = vunpack.c.l.b16 %v1905
    %v2137 = vunpack.c.h.b16 %v1905
    %v2138 = vunpack.c.l.b16 %v1906
    %v2139 = vunpack.c.h.b16 %v1906
    %v2140 = vunpack.c.l.b16 %v1907
    %v2141 = vunpack.c.h.b16 %v1907
    %v2142 = vunpack.c.l.b16 %v1908
    %v2143 = vunpack.c.h.b16 %v1908
    %v2144 = vunpack.c.l.b16 %v1909
    %v2145 = vunpack.c.h.b16 %v1909
    %v2146 = vunpack.c.l.b16 %v1910
    %v2147 = vunpack.c.h.b16 %v1910
    %v2148 = vunpack.c.l.b16 %v1911
    %v2149 = vunpack.c.h.b16 %v1911
    %v2150 = vunpack.c.l.b16 %v1912
    %v2151 = vunpack.c.h.b16 %v1912
    %v2152 = vunpack.c.l.b16 %v1913
    %v2153 = vunpack.c.h.b16 %v1913
    %v2154 = vunpack.c.l.b16 %v1914
    %v2155 = vunpack.c.h.b16 %v1914
    %v2156 = vunpack.c.l.b16 %v1915
    %v2157 = vunpack.c.h.b16 %v1915
    %v2158 = vunpack.c.l.b16 %v1916
    %v2159 = vunpack.c.h.b16 %v1916
    %v2160 = vunpack.c.l.b16 %v1917
    %v2161 = vunpack.c.h.b16 %v1917
    %v2162 = vunpack.c.l.b16 %v1918
    %v2163 = vunpack.c.h.b16 %v1918
    %v2164 = vunpack.c.l.b16 %v1919
    %v2165 = vunpack.c.h.b16 %v1919
    %v2166 = vunpack.c.l.b16 %v1920
    %v2167 = vunpack.c.h.b16 %v1920
    %v2168 = vunpack.c.l.b16 %v1921
    %v2169 = vunpack.c.h.b16 %v1921
    %v2170 = vunpack.c.l.b16 %v1922
    %v2171 = vunpack.c.h.b16 %v1922
    %v2172 = vunpack.c.l.b16 %v1923
    %v2173 = vunpack.c.h.b16 %v1923
    %v2174 = vunpack.c.l.b16 %v1924
    %v2175 = vunpack.c.h.b16 %v1924
    %v2176 = vunpack.c.l.b16 %v1925
    %v2177 = vunpack.c.h.b16 %v1925
    %v2178 = vunpack.c.l.b16 %v1926
    %v2179 = vunpack.c.h.b16 %v1926
    %v2180 = vunpack.c.l.b16 %v1927
    %v2181 = vunpack.c.h.b16 %v1927
    %v2182 = vunpack.c.l.b16 %v1928
    %v2183 = vunpack.c.h.b16 %v1928
    %v2184 = vunpack.c.l.b16 %v1929
    %v2185 = vunpack.c.h.b16 %v1929
    %v2186 = vunpack.c.l.b16 %v1930
    %v2187 = vunpack.c.h.b16 %v1930
    %v2188 = vunpack.c.l.b16 %v1931
    %v2189 = vunpack.c.h.b16 %v1931
    %v2190 = vunpack.c.l.b16 %v1932
    %v2191 = vunpack.c.h.b16 %v1932
    %v2192 = vunpack.c.l.b16 %v1933
    %v2193 = vunpack.c.h.b16 %v1933
    %v2194 = vunpack.c.l.b16 %v1934
    %v2195 = vunpack.c.h.b16 %v1934
    %v2196 = vunpack.c.l.b16 %v1935
    %v2197 = vunpack.c.h.b16 %v1935
    %v2198 = vunpack.c.l.b16 %v1936
    %v2199 = vunpack.c.h.b16 %v1936
    %v2200 = vunpack.c.l.b16 %v1937
    %v2201 = vunpack.c.h.b16 %v1937
    %v2202 = vunpack.c.l.b16 %v1938
    %v2203 = vunpack.c.h.b16 %v1938
    %v2204 = vunpack.c.l.b16 %v1939
    %v2205 = vunpack.c.h.b16 %v1939
    %v2206 = vunpack.c.l.b16 %v1940
    %v2207 = vunpack.c.h.b16 %v1940
    %v2208 = vunpack.c.l.b16 %v1941
    %v2209 = vunpack.c.h.b16 %v1941
    %v2210 = vunpack.c.l.b16 %v1942
    %v2211 = vunpack.c.h.b16 %v1942
    %v2212 = vunpack.c.l.b16 %v1943
    %v2213 = vunpack.c.h.b16 %v1943
    %v2214 = vunpack.c.l.b16 %v1944
    %v2215 = vunpack.c.h.b16 %v1944
    %v2216 = vunpack.c.l.b16 %v1945
    %v2217 = vunpack.c.h.b16 %v1945
    %v2218 = vunpack.c.l.b16 %v1946
    %v2219 = vunpack.c.h.b16 %v1946
    %v2220 = vunpack.c.l.b16 %v1947
    %v2221 = vunpack.c.h.b16 %v1947
    %v2222 = vunpack.c.l.b16 %v1948
    %v2223 = vunpack.c.h.b16 %v1948
    %v2224 = vunpack.c.l.b16 %v1949
    %v2225 = vunpack.c.h.b16 %v1949
    %v2226 = vunpack.c.l.b16 %v1950
    %v2227 = vunpack.c.h.b16 %v1950
    %v2228 = vunpack.c.l.b16 %v1951
    %v2229 = vunpack.c.h.b16 %v1951
    %v2230 = vunpack.c.l.b16 %v1952
    %v2231 = vunpack.c.h.b16 %v1952
    %v2232 = vunpack.c.l.b16 %v1953
    %v2233 = vunpack.c.h.b16 %v1953
    %v2234 = vunpack.c.l.b16 %v1954
    %v2235 = vunpack.c.h.b16 %v1954
    %v2236 = vunpack.c.l.b16 %v1955
    %v2237 = vunpack.c.h.b16 %v1955
    %v2238 = vunpack.c.l.b16 %v1956
    %v2239 = vunpack.c.h.b16 %v1956
    %v2240 = vunpack.c.l.b16 %v1957
    %v2241 = vunpack.c.h.b16 %v1957
    %v2242 = vunpack.c.l.b16 %v1958
    %v2243 = vunpack.c.h.b16 %v1958
    %v2244 = vunpack.c.l.b16 %v1959
    %v2245 = vunpack.c.h.b16 %v1959
    %v2246 = vunpack.c.l.b16 %v1960
    %v2247 = vunpack.c.h.b16 %v1960
    %v2248 = vunpack.c.l.b16 %v1961
    %v2249 = vunpack.c.h.b16 %v1961
    %v2250 = vpack.c.b16 %v2070, %v2058
    %v2251 = vpack.c.b16 %v2071, %v2059
    %v2252 = vpack.c.b16 %v2072, %v2060
    %v2253 = vpack.c.b16 %v2073, %v2061
    %v2254 = vpack.c.b16 %v2074, %v2062
    %v2255 = vpack.c.b16 %v2075, %v2063
    %v2256 = vpack.c.b16 %v2076, %v2064
    %v2257 = vpack.c.b16 %v2077, %v2065
    %v2258 = vpack.c.b16 %v2078, %v2066
    %v2259 = vpack.c.b16 %v2079, %v2067
    %v2260 = vpack.c.b16 %v2080, %v2068
    %v2261 = vpack.c.b16 %v2081, %v2069
    %v2262 = vpack.c.b16 %v2094, %v2082
    %v2263 = vpack.c.b16 %v2095, %v2083
    %v2264 = vpack.c.b16 %v2096, %v2084
    %v2265 = vpack.c.b16 %v2097, %v2085
    %v2266 = vpack.c.b16 %v2098, %v2086
    %v2267 = vpack.c.b16 %v2099, %v2087
    %v2268 = vpack.c.b16 %v2100, %v2088
    %v2269 = vpack.c.b16 %v2101, %v2089
    %v2270 = vpack.c.b16 %v2102, %v2090
    %v2271 = vpack.c.b16 %v2103, %v2091
    %v2272 = vpack.c.b16 %v2104, %v2092
    %v2273 = vpack.c.b16 %v2105, %v2093
    %v2274 = vpack.c.b16 %v2118, %v2106
    %v2275 = vpack.c.b16 %v2119, %v2107
    %v2276 = vpack.c.b16 %v2120, %v2108
    %v2277 = vpack.c.b16 %v2121, %v2109
    %v2278 = vpack.c.b16 %v2122, %v2110
    %v2279 = vpack.c.b16 %v2123, %v2111
    %v2280 = vpack.c.b16 %v2124, %v2112
    %v2281 = vpack.c.b16 %v2125, %v2113
    %v2282 = vpack.c.b16 %v2126, %v2114
    %v2283 = vpack.c.b16 %v2127, %v2115
    %v2284 = vpack.c.b16 %v2128, %v2116
    %v2285 = vpack.c.b16 %v2129, %v2117
    %v2286 = vpack.c.b16 %v2142, %v2130
    %v2287 = vpack.c.b16 %v2143, %v2131
    %v2288 = vpack.c.b16 %v2144, %v2132
    %v2289 = vpack.c.b16 %v2145, %v2133
    %v2290 = vpack.c.b16 %v2146, %v2134
    %v2291 = vpack.c.b16 %v2147, %v2135
    %v2292 = vpack.c.b16 %v2148, %v2136
    %v2293 = vpack.c.b16 %v2149, %v2137
    %v2294 = vpack.c.b16 %v2150, %v2138
    %v2295 = vpack.c.b16 %v2151, %v2139
    %v2296 = vpack.c.b16 %v2152, %v2140
    %v2297 = vpack.c.b16 %v2153, %v2141
    %v2298 = vpack.c.b16 %v2166, %v2154
    %v2299 = vpack.c.b16 %v2167, %v2155
    %v2300 = vpack.c.b16 %v2168, %v2156
    %v2301 = vpack.c.b16 %v2169, %v2157
    %v2302 = vpack.c.b16 %v2170, %v2158
    %v2303 = vpack.c.b16 %v2171, %v2159
    %v2304 = vpack.c.b16 %v2172, %v2160
    %v2305 = vpack.c.b16 %v2173, %v2161
    %v2306 = vpack.c.b16 %v2174, %v2162
    %v2307 = vpack.c.b16 %v2175, %v2163
    %v2308 = vpack.c.b16 %v2176, %v2164
    %v2309 = vpack.c.b16 %v2177, %v2165
    %v2310 = vpack.c.b16 %v2190, %v2178
    %v2311 = vpack.c.b16 %v2191, %v2179
    %v2312 = vpack.c.b16 %v2192, %v2180
    %v2313 = vpack.c.b16 %v2193, %v2181
    %v2314 = vpack.c.b16 %v2194, %v2182
    %v2315 = vpack.c.b16 %v2195, %v2183
    %v2316 = vpack.c.b16 %v2196, %v2184
    %v2317 = vpack.c.b16 %v2197, %v2185
    %v2318 = vpack.c.b16 %v2198, %v2186
    %v2319 = vpack.c.b16 %v2199, %v2187
    %v2320 = vpack.c.b16 %v2200, %v2188
    %v2321 = vpack.c.b16 %v2201, %v2189
    %v2322 = vpack.c.b16 %v2214, %v2202
    %v2323 = vpack.c.b16 %v2215, %v2203
    %v2324 = vpack.c.b16 %v2216, %v2204
    %v2325 = vpack.c.b16 %v2217, %v2205
    %v2326 = vpack.c.b16 %v2218, %v2206
    %v2327 = vpack.c.b16 %v2219, %v2207
    %v2328 = vpack.c.b16 %v2220, %v2208
    %v2329 = vpack.c.b16 %v2221, %v2209
    %v2330 = vpack.c.b16 %v2222, %v2210
    %v2331 = vpack.c.b16 %v2223, %v2211
    %v2332 = vpack.c.b16 %v2224, %v2212
    %v2333 = vpack.c.b16 %v2225, %v2213
    %v2334 = vpack.c.b16 %v2238, %v2226
    %v2335 = vpack.c.b16 %v2239, %v2227
    %v2336 = vpack.c.b16 %v2240, %v2228
    %v2337 = vpack.c.b16 %v2241, %v2229
    %v2338 = vpack.c.b16 %v2242, %v2230
    %v2339 = vpack.c.b16 %v2243, %v2231
    %v2340 = vpack.c.b16 %v2244, %v2232
    %v2341 = vpack.c.b16 %v2245, %v2233
    %v2342 = vpack.c.b16 %v2246, %v2234
    %v2343 = vpack.c.b16 %v2247, %v2235
    %v2344 = vpack.c.b16 %v2248, %v2236
    %v2345 = vpack.c.b16 %v2249, %v2237
    %2442 = vmatpush.bf16.msra.mxu0 %v2334
    %2443 = vmatpush.bf16.msra.mxu0 %v2322
    %2444 = vmatpush.bf16.msra.mxu0 %v2310
    %2445 = vmatpush.bf16.msra.mxu0 %v2298
    %2446 = vmatpush.bf16.msra.mxu0 %v2286
    %2447 = vmatpush.bf16.msra.mxu0 %v2274
    %2448 = vmatpush.bf16.msra.mxu0 %v2262
    %2449 = vmatpush.bf16.msra.mxu0 %v2250
    %2450 = vmatmul.bf16.gmra.mxu0 %v1864
    %v2451 = vpop.f32.mrf.mxu0
    %v2452 = vadd.f32 0.0, %v2451
    %v2453 = vpop.f32.mrf.mxu0
    %v2454 = vadd.f32 0.0, %v2453
    %2455 = vdwg.mxu0
    %2456 = vmatpush.bf16.msra.mxu0 %v2335
    %2457 = vmatpush.bf16.msra.mxu0 %v2323
    %2458 = vmatpush.bf16.msra.mxu0 %v2311
    %2459 = vmatpush.bf16.msra.mxu0 %v2299
    %2460 = vmatpush.bf16.msra.mxu0 %v2287
    %2461 = vmatpush.bf16.msra.mxu0 %v2275
    %2462 = vmatpush.bf16.msra.mxu0 %v2263
    %2463 = vmatpush.bf16.msra.mxu0 %v2251
    %2464 = vmatmul.bf16.gmra.mxu0 %v1864
    %v2465 = vpop.f32.mrf.mxu0
    %v2466 = vadd.f32 0.0, %v2465
    %v2467 = vpop.f32.mrf.mxu0
    %v2468 = vadd.f32 0.0, %v2467
    %2469 = vdwg.mxu0
    %2470 = vmatpush.bf16.msra.mxu0 %v2336
    %2471 = vmatpush.bf16.msra.mxu0 %v2324
    %2472 = vmatpush.bf16.msra.mxu0 %v2312
    %2473 = vmatpush.bf16.msra.mxu0 %v2300
    %2474 = vmatpush.bf16.msra.mxu0 %v2288
    %2475 = vmatpush.bf16.msra.mxu0 %v2276
    %2476 = vmatpush.bf16.msra.mxu0 %v2264
    %2477 = vmatpush.bf16.msra.mxu0 %v2252
    %2478 = vmatmul.bf16.gmra.mxu0 %v1864
    %v2479 = vpop.f32.mrf.mxu0
    %v2480 = vadd.f32 0.0, %v2479
    %v2481 = vpop.f32.mrf.mxu0
    %v2482 = vadd.f32 0.0, %v2481
    %2483 = vdwg.mxu0
    %2484 = vmatpush.bf16.msra.mxu0 %v2337
    %2485 = vmatpush.bf16.msra.mxu0 %v2325
    %2486 = vmatpush.bf16.msra.mxu0 %v2313
    %2487 = vmatpush.bf16.msra.mxu0 %v2301
    %2488 = vmatpush.bf16.msra.mxu0 %v2289
    %2489 = vmatpush.bf16.msra.mxu0 %v2277
    %2490 = vmatpush.bf16.msra.mxu0 %v2265
    %2491 = vmatpush.bf16.msra.mxu0 %v2253
    %2492 = vmatmul.bf16.gmra.mxu0 %v1864
    %v2493 = vpop.f32.mrf.mxu0
    %v2494 = vadd.f32 0.0, %v2493
    %v2495 = vpop.f32.mrf.mxu0
    %v2496 = vadd.f32 0.0, %v2495
    %2497 = vdwg.mxu0
    %2498 = vmatpush.bf16.msra.mxu0 %v2338
    %2499 = vmatpush.bf16.msra.mxu0 %v2326
    %2500 = vmatpush.bf16.msra.mxu0 %v2314
    %2501 = vmatpush.bf16.msra.mxu0 %v2302
    %2502 = vmatpush.bf16.msra.mxu0 %v2290
    %2503 = vmatpush.bf16.msra.mxu0 %v2278
    %2504 = vmatpush.bf16.msra.mxu0 %v2266
    %2505 = vmatpush.bf16.msra.mxu0 %v2254
    %2506 = vmatmul.bf16.gmra.mxu0 %v1864
    %v2507 = vpop.f32.mrf.mxu0
    %v2508 = vadd.f32 0.0, %v2507
    %v2509 = vpop.f32.mrf.mxu0
    %v2510 = vadd.f32 0.0, %v2509
    %2511 = vdwg.mxu0
    %2512 = vmatpush.bf16.msra.mxu0 %v2339
    %2513 = vmatpush.bf16.msra.mxu0 %v2327
    %2514 = vmatpush.bf16.msra.mxu0 %v2315
    %2515 = vmatpush.bf16.msra.mxu0 %v2303
    %2516 = vmatpush.bf16.msra.mxu0 %v2291
    %2517 = vmatpush.bf16.msra.mxu0 %v2279
    %2518 = vmatpush.bf16.msra.mxu0 %v2267
    %2519 = vmatpush.bf16.msra.mxu0 %v2255
    %2520 = vmatmul.bf16.gmra.mxu0 %v1864
    %v2521 = vpop.f32.mrf.mxu0
    %v2522 = vadd.f32 0.0, %v2521
    %v2523 = vpop.f32.mrf.mxu0
    %v2524 = vadd.f32 0.0, %v2523
    %2525 = vdwg.mxu0
    %2526 = vmatpush.bf16.msra.mxu0 %v2340
    %2527 = vmatpush.bf16.msra.mxu0 %v2328
    %2528 = vmatpush.bf16.msra.mxu0 %v2316
    %2529 = vmatpush.bf16.msra.mxu0 %v2304
    %2530 = vmatpush.bf16.msra.mxu0 %v2292
    %2531 = vmatpush.bf16.msra.mxu0 %v2280
    %2532 = vmatpush.bf16.msra.mxu0 %v2268
    %2533 = vmatpush.bf16.msra.mxu0 %v2256
    %2534 = vmatmul.bf16.gmra.mxu0 %v1864
    %v2535 = vpop.f32.mrf.mxu0
    %v2536 = vadd.f32 0.0, %v2535
    %v2537 = vpop.f32.mrf.mxu0
    %v2538 = vadd.f32 0.0, %v2537
    %2539 = vdwg.mxu0
    %2540 = vmatpush.bf16.msra.mxu0 %v2341
    %2541 = vmatpush.bf16.msra.mxu0 %v2329
    %2542 = vmatpush.bf16.msra.mxu0 %v2317
    %2543 = vmatpush.bf16.msra.mxu0 %v2305
    %2544 = vmatpush.bf16.msra.mxu0 %v2293
    %2545 = vmatpush.bf16.msra.mxu0 %v2281
    %2546 = vmatpush.bf16.msra.mxu0 %v2269
    %2547 = vmatpush.bf16.msra.mxu0 %v2257
    %2548 = vmatmul.bf16.gmra.mxu0 %v1864
    %v2549 = vpop.f32.mrf.mxu0
    %v2550 = vadd.f32 0.0, %v2549
    %v2551 = vpop.f32.mrf.mxu0
    %v2552 = vadd.f32 0.0, %v2551
    %2553 = vdwg.mxu0
    %2554 = vmatpush.bf16.msra.mxu0 %v2342
    %2555 = vmatpush.bf16.msra.mxu0 %v2330
    %2556 = vmatpush.bf16.msra.mxu0 %v2318
    %2557 = vmatpush.bf16.msra.mxu0 %v2306
    %2558 = vmatpush.bf16.msra.mxu0 %v2294
    %2559 = vmatpush.bf16.msra.mxu0 %v2282
    %2560 = vmatpush.bf16.msra.mxu0 %v2270
    %2561 = vmatpush.bf16.msra.mxu0 %v2258
    %2562 = vmatmul.bf16.gmra.mxu0 %v1864
    %v2563 = vpop.f32.mrf.mxu0
    %v2564 = vadd.f32 0.0, %v2563
    %v2565 = vpop.f32.mrf.mxu0
    %v2566 = vadd.f32 0.0, %v2565
    %2567 = vdwg.mxu0
    %2568 = vmatpush.bf16.msra.mxu0 %v2343
    %2569 = vmatpush.bf16.msra.mxu0 %v2331
    %2570 = vmatpush.bf16.msra.mxu0 %v2319
    %2571 = vmatpush.bf16.msra.mxu0 %v2307
    %2572 = vmatpush.bf16.msra.mxu0 %v2295
    %2573 = vmatpush.bf16.msra.mxu0 %v2283
    %2574 = vmatpush.bf16.msra.mxu0 %v2271
    %2575 = vmatpush.bf16.msra.mxu0 %v2259
    %2576 = vmatmul.bf16.gmra.mxu0 %v1864
    %v2577 = vpop.f32.mrf.mxu0
    %v2578 = vadd.f32 0.0, %v2577
    %v2579 = vpop.f32.mrf.mxu0
    %v2580 = vadd.f32 0.0, %v2579
    %2581 = vdwg.mxu0
    %2582 = vmatpush.bf16.msra.mxu0 %v2344
    %2583 = vmatpush.bf16.msra.mxu0 %v2332
    %2584 = vmatpush.bf16.msra.mxu0 %v2320
    %2585 = vmatpush.bf16.msra.mxu0 %v2308
    %2586 = vmatpush.bf16.msra.mxu0 %v2296
    %2587 = vmatpush.bf16.msra.mxu0 %v2284
    %2588 = vmatpush.bf16.msra.mxu0 %v2272
    %2589 = vmatpush.bf16.msra.mxu0 %v2260
    %2590 = vmatmul.bf16.gmra.mxu0 %v1864
    %v2591 = vpop.f32.mrf.mxu0
    %v2592 = vadd.f32 0.0, %v2591
    %v2593 = vpop.f32.mrf.mxu0
    %v2594 = vadd.f32 0.0, %v2593
    %2595 = vdwg.mxu0
    %2596 = vmatpush.bf16.msra.mxu0 %v2345
    %2597 = vmatpush.bf16.msra.mxu0 %v2333
    %2598 = vmatpush.bf16.msra.mxu0 %v2321
    %2599 = vmatpush.bf16.msra.mxu0 %v2309
    %2600 = vmatpush.bf16.msra.mxu0 %v2297
    %2601 = vmatpush.bf16.msra.mxu0 %v2285
    %2602 = vmatpush.bf16.msra.mxu0 %v2273
    %2603 = vmatpush.bf16.msra.mxu0 %v2261
    %2604 = vmatmul.bf16.gmra.mxu0 %v1864
    %v2605 = vpop.f32.mrf.mxu0
    %v2606 = vadd.f32 0.0, %v2605
    %v2607 = vpop.f32.mrf.mxu0
    %v2608 = vadd.f32 0.0, %v2607
    %2609 = vdwg.mxu0
    %v2610 = vpack.c.bf16 %v2454, %v2452
    %v2611 = vpack.c.bf16 %v2510, %v2508
    %2612 = vmatpush.bf16.xpose.msra.mxu0 0
    %2613 = vmatpush.bf16.xpose.msra.mxu0 0
    %2614 = vmatpush.bf16.xpose.msra.mxu0 0
    %2615 = vmatpush.bf16.xpose.msra.mxu0 0
    %2616 = vmatpush.bf16.xpose.msra.mxu0 0
    %2617 = vmatpush.bf16.xpose.msra.mxu0 0
    %2618 = vmatpush.bf16.xpose.msra.mxu0 0
    %2619 = vmatpush.bf16.xpose.msra.mxu0 %v2611
    %2620 = vmatmul.bf16.gmra.mxu0 %v2610
    %v2621 = vpop.f32.mrf.mxu0
    %v2622 = vadd.f32 0.0, %v2621
    %v2623 = vpop.f32.mrf.mxu0
    %v2624 = vadd.f32 0.0, %v2623
    %2625 = vdwg.mxu0
    %v2626 = vmul.f32 %v2622, 0.35355338
    %v2627 = vmul.f32 %v2624, 0.35355338
    %v2628 = vadd.f32 %v2626, %v200
    %v2629 = vadd.f32 %v2627, %v201
    %v2630 = vsel %vm1026, %v2628, -inf
    %2631 = vmax.xlane.f32.xlu0 %v2630
    %v2632 = vpop.xlane.xlu0 %2631
    %v2633 = vsel %vm1026, %v2629, -inf
    %2634 = vmax.xlane.f32.xlu0 %v2633
    %v2635 = vpop.xlane.xlu0 %2634
    %v2636 = vsub.f32 %v2628, %v2632
    %v2637 = vsub.f32 %v2629, %v2635
    %v2638 = vmul.f32 %v2636, 1.442695
    %v2639 = vpow.pop %v2638
    %v2640 = vmul.f32 %v2637, 1.442695
    %v2641 = vpow.pop %v2640
    %v2642 = vsel %vm1026, %v2639, 0.0
    %2643 = vadd.xlane.f32.xlu0 %v2642
    %v2644 = vpop.xlane.xlu0 %2643
    %v2645 = vsel %vm1026, %v2641, 0.0
    %2646 = vadd.xlane.f32.xlu0 %v2645
    %v2647 = vpop.xlane.xlu0 %2646
    %v2648 = vrcp.pop %v2644
    %v2649 = vrcp.pop %v2647
    %v2650 = vmul.f32 %v2639, %v2648
    %v2651 = vmul.f32 %v2641, %v2649
    %v2652 = vpack.c.bf16 %v2651, %v2650
    %v2653 = vpack.c.bf16 %v2566, %v2564
    %v2655 = vsel %vm1026, %v2652, 0
    %2657 = vmatpush.bf16.msra.mxu0 0
    %2658 = vmatpush.bf16.msra.mxu0 0
    %2659 = vmatpush.bf16.msra.mxu0 0
    %2660 = vmatpush.bf16.msra.mxu0 0
    %2661 = vmatpush.bf16.msra.mxu0 0
    %2662 = vmatpush.bf16.msra.mxu0 0
    %2663 = vmatpush.bf16.msra.mxu0 0
    %2664 = vmatpush.bf16.msra.mxu0 %v2653
    %2665 = vmatmul.bf16.gmra.mxu0 %v2655
    %v2666 = vpop.f32.mrf.mxu0
    %v2667 = vadd.f32 0.0, %v2666
    %v2668 = vpop.f32.mrf.mxu0
    %v2669 = vadd.f32 0.0, %v2668
    %2670 = vdwg.mxu0
    %v2671 = vpack.c.bf16 %v2669, %v2667
    %s2672 = scalar_lea.vmem [#allocation10], 256
    %v2673 = vld [vmem:[%s2672] sm:$0xf]
    %v2674 = vld [vmem:[%s2672 + $0x4] sm:$0xf]
    %v2675 = vld [vmem:[%s2672 + $0x8] sm:$0xf]
    %v2676 = vld [vmem:[%s2672 + $0xc] sm:$0xf]
    %v2677 = vld [vmem:[%s2672 + $0x10] sm:$0xf]
    %v2678 = vld [vmem:[%s2672 + $0x14] sm:$0xf]
    %v2679 = vld [vmem:[%s2672 + $0x18] sm:$0xf]
    %v2680 = vld [vmem:[%s2672 + $0x1c] sm:$0xf]
    %v2681 = vld [vmem:[%s2672 + $0x20] sm:$0xf]
    %v2682 = vld [vmem:[%s2672 + $0x24] sm:$0xf]
    %v2683 = vld [vmem:[%s2672 + $0x28] sm:$0xf]
    %v2684 = vld [vmem:[%s2672 + $0x2c] sm:$0xf]
    %v2685 = vld [vmem:[%s2672 + $0x30] sm:$0xf]
    %v2686 = vld [vmem:[%s2672 + $0x34] sm:$0xf]
    %v2687 = vld [vmem:[%s2672 + $0x38] sm:$0xf]
    %v2688 = vld [vmem:[%s2672 + $0x3c] sm:$0xf]
    %v2689 = vpack.c.bf16 %v2468, %v2466
    %v2690 = vpack.c.bf16 %v2524, %v2522
    %2691 = vmatpush.bf16.xpose.msra.mxu0 0
    %2692 = vmatpush.bf16.xpose.msra.mxu0 0
    %2693 = vmatpush.bf16.xpose.msra.mxu0 0
    %2694 = vmatpush.bf16.xpose.msra.mxu0 0
    %2695 = vmatpush.bf16.xpose.msra.mxu0 0
    %2696 = vmatpush.bf16.xpose.msra.mxu0 0
    %2697 = vmatpush.bf16.xpose.msra.mxu0 0
    %2698 = vmatpush.bf16.xpose.msra.mxu0 %v2690
    %2699 = vmatmul.bf16.gmra.mxu0 %v2689
    %v2700 = vpop.f32.mrf.mxu0
    %v2701 = vadd.f32 0.0, %v2700
    %v2702 = vpop.f32.mrf.mxu0
    %v2703 = vadd.f32 0.0, %v2702
    %2704 = vdwg.mxu0
    %v2705 = vmul.f32 %v2701, 0.35355338
    %v2706 = vmul.f32 %v2703, 0.35355338
    %v2707 = vadd.f32 %v2705, %v200
    %v2708 = vadd.f32 %v2706, %v201
    %v2709 = vsel %vm1026, %v2707, -inf
    %2710 = vmax.xlane.f32.xlu0 %v2709
    %v2711 = vpop.xlane.xlu0 %2710
    %v2712 = vsel %vm1026, %v2708, -inf
    %2713 = vmax.xlane.f32.xlu0 %v2712
    %v2714 = vpop.xlane.xlu0 %2713
    %v2715 = vsub.f32 %v2707, %v2711
    %v2716 = vsub.f32 %v2708, %v2714
    %v2717 = vmul.f32 %v2715, 1.442695
    %v2718 = vpow.pop %v2717
    %v2719 = vmul.f32 %v2716, 1.442695
    %v2720 = vpow.pop %v2719
    %v2721 = vsel %vm1026, %v2718, 0.0
    %2722 = vadd.xlane.f32.xlu0 %v2721
    %v2723 = vpop.xlane.xlu0 %2722
    %v2724 = vsel %vm1026, %v2720, 0.0
    %2725 = vadd.xlane.f32.xlu0 %v2724
    %v2726 = vpop.xlane.xlu0 %2725
    %v2727 = vrcp.pop %v2723
    %v2728 = vrcp.pop %v2726
    %v2729 = vmul.f32 %v2718, %v2727
    %v2730 = vmul.f32 %v2720, %v2728
    %v2731 = vpack.c.bf16 %v2730, %v2729
    %v2732 = vpack.c.bf16 %v2580, %v2578
    %v2734 = vsel %vm1026, %v2731, 0
    %2736 = vmatpush.bf16.msra.mxu0 0
    %2737 = vmatpush.bf16.msra.mxu0 0
    %2738 = vmatpush.bf16.msra.mxu0 0
    %2739 = vmatpush.bf16.msra.mxu0 0
    %2740 = vmatpush.bf16.msra.mxu0 0
    %2741 = vmatpush.bf16.msra.mxu0 0
    %2742 = vmatpush.bf16.msra.mxu0 0
    %2743 = vmatpush.bf16.msra.mxu0 %v2732
    %2744 = vmatmul.bf16.gmra.mxu0 %v2734
    %v2745 = vpop.f32.mrf.mxu0
    %v2746 = vadd.f32 0.0, %v2745
    %v2747 = vpop.f32.mrf.mxu0
    %v2748 = vadd.f32 0.0, %v2747
    %2749 = vdwg.mxu0
    %v2750 = vpack.c.bf16 %v2748, %v2746
    %s2751 = scalar_lea.vmem [#allocation10], 320
    %v2752 = vld [vmem:[%s2751] sm:$0xf]
    %v2753 = vld [vmem:[%s2751 + $0x4] sm:$0xf]
    %v2754 = vld [vmem:[%s2751 + $0x8] sm:$0xf]
    %v2755 = vld [vmem:[%s2751 + $0xc] sm:$0xf]
    %v2756 = vld [vmem:[%s2751 + $0x10] sm:$0xf]
    %v2757 = vld [vmem:[%s2751 + $0x14] sm:$0xf]
    %v2758 = vld [vmem:[%s2751 + $0x18] sm:$0xf]
    %v2759 = vld [vmem:[%s2751 + $0x1c] sm:$0xf]
    %v2760 = vld [vmem:[%s2751 + $0x20] sm:$0xf]
    %v2761 = vld [vmem:[%s2751 + $0x24] sm:$0xf]
    %v2762 = vld [vmem:[%s2751 + $0x28] sm:$0xf]
    %v2763 = vld [vmem:[%s2751 + $0x2c] sm:$0xf]
    %v2764 = vld [vmem:[%s2751 + $0x30] sm:$0xf]
    %v2765 = vld [vmem:[%s2751 + $0x34] sm:$0xf]
    %v2766 = vld [vmem:[%s2751 + $0x38] sm:$0xf]
    %v2767 = vld [vmem:[%s2751 + $0x3c] sm:$0xf]
    %v2784 = vunpack.c.l.b16 %v2752
    %v2785 = vunpack.c.l.b16 %v2753
    %v2786 = vunpack.c.l.b16 %v2754
    %v2787 = vunpack.c.l.b16 %v2755
    %v2788 = vunpack.c.l.b16 %v2756
    %v2789 = vunpack.c.l.b16 %v2757
    %v2790 = vunpack.c.l.b16 %v2758
    %v2791 = vunpack.c.l.b16 %v2759
    %v2792 = vunpack.c.l.b16 %v2760
    %v2793 = vunpack.c.l.b16 %v2761
    %v2794 = vunpack.c.l.b16 %v2762
    %v2795 = vunpack.c.l.b16 %v2763
    %v2796 = vunpack.c.l.b16 %v2764
    %v2797 = vunpack.c.l.b16 %v2765
    %v2798 = vunpack.c.l.b16 %v2766
    %v2799 = vunpack.c.l.b16 %v2767
    %v2800 = vpack.c.b16 %v2785, %v2784
    %v2801 = vpack.c.b16 %v2787, %v2786
    %v2802 = vpack.c.b16 %v2789, %v2788
    %v2803 = vpack.c.b16 %v2791, %v2790
    %v2804 = vpack.c.b16 %v2793, %v2792
    %v2805 = vpack.c.b16 %v2795, %v2794
    %v2806 = vpack.c.b16 %v2797, %v2796
    %v2807 = vpack.c.b16 %v2799, %v2798
    %2816 = vmatpush.bf16.msra.mxu0 %v2807
    %2817 = vmatpush.bf16.msra.mxu0 %v2806
    %2818 = vmatpush.bf16.msra.mxu0 %v2805
    %2819 = vmatpush.bf16.msra.mxu0 %v2804
    %2820 = vmatpush.bf16.msra.mxu0 %v2803
    %2821 = vmatpush.bf16.msra.mxu0 %v2802
    %2822 = vmatpush.bf16.msra.mxu0 %v2801
    %2823 = vmatpush.bf16.msra.mxu0 %v2800
    %2824 = vmatmul.bf16.gmra.mxu0 %v2750
    %v2825 = vpop.f32.mrf.mxu0
    %v2826 = vadd.f32 0.0, %v2825
    %v2827 = vpop.f32.mrf.mxu0
    %v2828 = vadd.f32 0.0, %v2827
    %2829 = vdwg.mxu0
    %v2846 = vunpack.c.l.b16 %v2673
    %v2847 = vunpack.c.l.b16 %v2674
    %v2848 = vunpack.c.l.b16 %v2675
    %v2849 = vunpack.c.l.b16 %v2676
    %v2850 = vunpack.c.l.b16 %v2677
    %v2851 = vunpack.c.l.b16 %v2678
    %v2852 = vunpack.c.l.b16 %v2679
    %v2853 = vunpack.c.l.b16 %v2680
    %v2854 = vunpack.c.l.b16 %v2681
    %v2855 = vunpack.c.l.b16 %v2682
    %v2856 = vunpack.c.l.b16 %v2683
    %v2857 = vunpack.c.l.b16 %v2684
    %v2858 = vunpack.c.l.b16 %v2685
    %v2859 = vunpack.c.l.b16 %v2686
    %v2860 = vunpack.c.l.b16 %v2687
    %v2861 = vunpack.c.l.b16 %v2688
    %v2862 = vpack.c.b16 %v2847, %v2846
    %v2863 = vpack.c.b16 %v2849, %v2848
    %v2864 = vpack.c.b16 %v2851, %v2850
    %v2865 = vpack.c.b16 %v2853, %v2852
    %v2866 = vpack.c.b16 %v2855, %v2854
    %v2867 = vpack.c.b16 %v2857, %v2856
    %v2868 = vpack.c.b16 %v2859, %v2858
    %v2869 = vpack.c.b16 %v2861, %v2860
    %2878 = vmatpush.bf16.msra.mxu0 %v2869
    %2879 = vmatpush.bf16.msra.mxu0 %v2868
    %2880 = vmatpush.bf16.msra.mxu0 %v2867
    %2881 = vmatpush.bf16.msra.mxu0 %v2866
    %2882 = vmatpush.bf16.msra.mxu0 %v2865
    %2883 = vmatpush.bf16.msra.mxu0 %v2864
    %2884 = vmatpush.bf16.msra.mxu0 %v2863
    %2885 = vmatpush.bf16.msra.mxu0 %v2862
    %2886 = vmatmul.bf16.gmra.mxu0 %v2671
    %v2887 = vpop.f32.mrf.mxu0
    %v2888 = vadd.f32 %v2826, %v2887
    %v2889 = vpop.f32.mrf.mxu0
    %v2890 = vadd.f32 %v2828, %v2889
    %2891 = vdwg.mxu0
    %v2892 = vpack.c.bf16 %v2482, %v2480
    %v2893 = vpack.c.bf16 %v2538, %v2536
    %2894 = vmatpush.bf16.xpose.msra.mxu0 0
    %2895 = vmatpush.bf16.xpose.msra.mxu0 0
    %2896 = vmatpush.bf16.xpose.msra.mxu0 0
    %2897 = vmatpush.bf16.xpose.msra.mxu0 0
    %2898 = vmatpush.bf16.xpose.msra.mxu0 0
    %2899 = vmatpush.bf16.xpose.msra.mxu0 0
    %2900 = vmatpush.bf16.xpose.msra.mxu0 0
    %2901 = vmatpush.bf16.xpose.msra.mxu0 %v2893
    %2902 = vmatmul.bf16.gmra.mxu0 %v2892
    %v2903 = vpop.f32.mrf.mxu0
    %v2904 = vadd.f32 0.0, %v2903
    %v2905 = vpop.f32.mrf.mxu0
    %v2906 = vadd.f32 0.0, %v2905
    %2907 = vdwg.mxu0
    %v2908 = vmul.f32 %v2904, 0.35355338
    %v2909 = vmul.f32 %v2906, 0.35355338
    %v2910 = vadd.f32 %v2908, %v200
    %v2911 = vadd.f32 %v2909, %v201
    %v2912 = vsel %vm1026, %v2910, -inf
    %2913 = vmax.xlane.f32.xlu0 %v2912
    %v2914 = vpop.xlane.xlu0 %2913
    %v2915 = vsel %vm1026, %v2911, -inf
    %2916 = vmax.xlane.f32.xlu0 %v2915
    %v2917 = vpop.xlane.xlu0 %2916
    %v2918 = vsub.f32 %v2910, %v2914
    %v2919 = vsub.f32 %v2911, %v2917
    %v2920 = vmul.f32 %v2918, 1.442695
    %v2921 = vpow.pop %v2920
    %v2922 = vmul.f32 %v2919, 1.442695
    %v2923 = vpow.pop %v2922
    %v2924 = vsel %vm1026, %v2921, 0.0
    %2925 = vadd.xlane.f32.xlu0 %v2924
    %v2926 = vpop.xlane.xlu0 %2925
    %v2927 = vsel %vm1026, %v2923, 0.0
    %2928 = vadd.xlane.f32.xlu0 %v2927
    %v2929 = vpop.xlane.xlu0 %2928
    %v2930 = vrcp.pop %v2926
    %v2931 = vrcp.pop %v2929
    %v2932 = vmul.f32 %v2921, %v2930
    %v2933 = vmul.f32 %v2923, %v2931
    %v2934 = vpack.c.bf16 %v2933, %v2932
    %v2935 = vpack.c.bf16 %v2594, %v2592
    %v2937 = vsel %vm1026, %v2934, 0
    %2939 = vmatpush.bf16.msra.mxu0 0
    %2940 = vmatpush.bf16.msra.mxu0 0
    %2941 = vmatpush.bf16.msra.mxu0 0
    %2942 = vmatpush.bf16.msra.mxu0 0
    %2943 = vmatpush.bf16.msra.mxu0 0
    %2944 = vmatpush.bf16.msra.mxu0 0
    %2945 = vmatpush.bf16.msra.mxu0 0
    %2946 = vmatpush.bf16.msra.mxu0 %v2935
    %2947 = vmatmul.bf16.gmra.mxu0 %v2937
    %v2948 = vpop.f32.mrf.mxu0
    %v2949 = vadd.f32 0.0, %v2948
    %v2950 = vpop.f32.mrf.mxu0
    %v2951 = vadd.f32 0.0, %v2950
    %2952 = vdwg.mxu0
    %v2953 = vpack.c.bf16 %v2951, %v2949
    %s2954 = scalar_lea.vmem [#allocation10], 384
    %v2955 = vld [vmem:[%s2954] sm:$0xf]
    %v2956 = vld [vmem:[%s2954 + $0x4] sm:$0xf]
    %v2957 = vld [vmem:[%s2954 + $0x8] sm:$0xf]
    %v2958 = vld [vmem:[%s2954 + $0xc] sm:$0xf]
    %v2959 = vld [vmem:[%s2954 + $0x10] sm:$0xf]
    %v2960 = vld [vmem:[%s2954 + $0x14] sm:$0xf]
    %v2961 = vld [vmem:[%s2954 + $0x18] sm:$0xf]
    %v2962 = vld [vmem:[%s2954 + $0x1c] sm:$0xf]
    %v2963 = vld [vmem:[%s2954 + $0x20] sm:$0xf]
    %v2964 = vld [vmem:[%s2954 + $0x24] sm:$0xf]
    %v2965 = vld [vmem:[%s2954 + $0x28] sm:$0xf]
    %v2966 = vld [vmem:[%s2954 + $0x2c] sm:$0xf]
    %v2967 = vld [vmem:[%s2954 + $0x30] sm:$0xf]
    %v2968 = vld [vmem:[%s2954 + $0x34] sm:$0xf]
    %v2969 = vld [vmem:[%s2954 + $0x38] sm:$0xf]
    %v2970 = vld [vmem:[%s2954 + $0x3c] sm:$0xf]
    %v2987 = vunpack.c.l.b16 %v2955
    %v2988 = vunpack.c.l.b16 %v2956
    %v2989 = vunpack.c.l.b16 %v2957
    %v2990 = vunpack.c.l.b16 %v2958
    %v2991 = vunpack.c.l.b16 %v2959
    %v2992 = vunpack.c.l.b16 %v2960
    %v2993 = vunpack.c.l.b16 %v2961
    %v2994 = vunpack.c.l.b16 %v2962
    %v2995 = vunpack.c.l.b16 %v2963
    %v2996 = vunpack.c.l.b16 %v2964
    %v2997 = vunpack.c.l.b16 %v2965
    %v2998 = vunpack.c.l.b16 %v2966
    %v2999 = vunpack.c.l.b16 %v2967
    %v3000 = vunpack.c.l.b16 %v2968
    %v3001 = vunpack.c.l.b16 %v2969
    %v3002 = vunpack.c.l.b16 %v2970
    %v3003 = vpack.c.b16 %v2988, %v2987
    %v3004 = vpack.c.b16 %v2990, %v2989
    %v3005 = vpack.c.b16 %v2992, %v2991
    %v3006 = vpack.c.b16 %v2994, %v2993
    %v3007 = vpack.c.b16 %v2996, %v2995
    %v3008 = vpack.c.b16 %v2998, %v2997
    %v3009 = vpack.c.b16 %v3000, %v2999
    %v3010 = vpack.c.b16 %v3002, %v3001
    %3019 = vmatpush.bf16.msra.mxu0 %v3010
    %3020 = vmatpush.bf16.msra.mxu0 %v3009
    %3021 = vmatpush.bf16.msra.mxu0 %v3008
    %3022 = vmatpush.bf16.msra.mxu0 %v3007
    %3023 = vmatpush.bf16.msra.mxu0 %v3006
    %3024 = vmatpush.bf16.msra.mxu0 %v3005
    %3025 = vmatpush.bf16.msra.mxu0 %v3004
    %3026 = vmatpush.bf16.msra.mxu0 %v3003
    %3027 = vmatmul.bf16.gmra.mxu0 %v2953
    %v3028 = vpop.f32.mrf.mxu0
    %v3029 = vadd.f32 0.0, %v3028
    %v3030 = vpop.f32.mrf.mxu0
    %v3031 = vadd.f32 0.0, %v3030
    %3032 = vdwg.mxu0
    %v3033 = vadd.f32 %v2888, %v3029
    %v3034 = vadd.f32 %v2890, %v3031
    %v3035 = vpack.c.bf16 %v2496, %v2494
    %v3036 = vpack.c.bf16 %v2552, %v2550
    %3037 = vmatpush.bf16.xpose.msra.mxu0 0
    %3038 = vmatpush.bf16.xpose.msra.mxu0 0
    %3039 = vmatpush.bf16.xpose.msra.mxu0 0
    %3040 = vmatpush.bf16.xpose.msra.mxu0 0
    %3041 = vmatpush.bf16.xpose.msra.mxu0 0
    %3042 = vmatpush.bf16.xpose.msra.mxu0 0
    %3043 = vmatpush.bf16.xpose.msra.mxu0 0
    %3044 = vmatpush.bf16.xpose.msra.mxu0 %v3036
    %3045 = vmatmul.bf16.gmra.mxu0 %v3035
    %v3046 = vpop.f32.mrf.mxu0
    %v3047 = vadd.f32 0.0, %v3046
    %v3048 = vpop.f32.mrf.mxu0
    %v3049 = vadd.f32 0.0, %v3048
    %3050 = vdwg.mxu0
    %v3051 = vmul.f32 %v3047, 0.35355338
    %v3052 = vmul.f32 %v3049, 0.35355338
    %v3053 = vadd.f32 %v3051, %v200
    %v3054 = vadd.f32 %v3052, %v201
    %v3055 = vsel %vm1026, %v3053, -inf
    %3056 = vmax.xlane.f32.xlu0 %v3055
    %v3057 = vpop.xlane.xlu0 %3056
    %v3058 = vsel %vm1026, %v3054, -inf
    %3059 = vmax.xlane.f32.xlu0 %v3058
    %v3060 = vpop.xlane.xlu0 %3059
    %v3061 = vsub.f32 %v3053, %v3057
    %v3062 = vsub.f32 %v3054, %v3060
    %v3063 = vmul.f32 %v3061, 1.442695
    %v3064 = vpow.pop %v3063
    %v3065 = vmul.f32 %v3062, 1.442695
    %v3066 = vpow.pop %v3065
    %v3067 = vsel %vm1026, %v3064, 0.0
    %3068 = vadd.xlane.f32.xlu0 %v3067
    %v3069 = vpop.xlane.xlu0 %3068
    %v3070 = vsel %vm1026, %v3066, 0.0
    %3071 = vadd.xlane.f32.xlu0 %v3070
    %v3072 = vpop.xlane.xlu0 %3071
    %v3073 = vrcp.pop %v3069
    %v3074 = vrcp.pop %v3072
    %v3075 = vmul.f32 %v3064, %v3073
    %v3076 = vmul.f32 %v3066, %v3074
    %v3077 = vpack.c.bf16 %v3076, %v3075
    %v3078 = vpack.c.bf16 %v2608, %v2606
    %v3080 = vsel %vm1026, %v3077, 0
    %3082 = vmatpush.bf16.msra.mxu0 0
    %3083 = vmatpush.bf16.msra.mxu0 0
    %3084 = vmatpush.bf16.msra.mxu0 0
    %3085 = vmatpush.bf16.msra.mxu0 0
    %3086 = vmatpush.bf16.msra.mxu0 0
    %3087 = vmatpush.bf16.msra.mxu0 0
    %3088 = vmatpush.bf16.msra.mxu0 0
    %3089 = vmatpush.bf16.msra.mxu0 %v3078
    %3090 = vmatmul.bf16.gmra.mxu0 %v3080
    %v3091 = vpop.f32.mrf.mxu0
    %v3092 = vadd.f32 0.0, %v3091
    %v3093 = vpop.f32.mrf.mxu0
    %v3094 = vadd.f32 0.0, %v3093
    %3095 = vdwg.mxu0
    %v3096 = vpack.c.bf16 %v3094, %v3092
    %s3097 = scalar_lea.vmem [#allocation10], 448
    %v3098 = vld [vmem:[%s3097] sm:$0xf]
    %v3099 = vld [vmem:[%s3097 + $0x4] sm:$0xf]
    %v3100 = vld [vmem:[%s3097 + $0x8] sm:$0xf]
    %v3101 = vld [vmem:[%s3097 + $0xc] sm:$0xf]
    %v3102 = vld [vmem:[%s3097 + $0x10] sm:$0xf]
    %v3103 = vld [vmem:[%s3097 + $0x14] sm:$0xf]
    %v3104 = vld [vmem:[%s3097 + $0x18] sm:$0xf]
    %v3105 = vld [vmem:[%s3097 + $0x1c] sm:$0xf]
    %v3106 = vld [vmem:[%s3097 + $0x20] sm:$0xf]
    %v3107 = vld [vmem:[%s3097 + $0x24] sm:$0xf]
    %v3108 = vld [vmem:[%s3097 + $0x28] sm:$0xf]
    %v3109 = vld [vmem:[%s3097 + $0x2c] sm:$0xf]
    %v3110 = vld [vmem:[%s3097 + $0x30] sm:$0xf]
    %v3111 = vld [vmem:[%s3097 + $0x34] sm:$0xf]
    %v3112 = vld [vmem:[%s3097 + $0x38] sm:$0xf]
    %v3113 = vld [vmem:[%s3097 + $0x3c] sm:$0xf]
    %v3130 = vunpack.c.l.b16 %v3098
    %v3131 = vunpack.c.l.b16 %v3099
    %v3132 = vunpack.c.l.b16 %v3100
    %v3133 = vunpack.c.l.b16 %v3101
    %v3134 = vunpack.c.l.b16 %v3102
    %v3135 = vunpack.c.l.b16 %v3103
    %v3136 = vunpack.c.l.b16 %v3104
    %v3137 = vunpack.c.l.b16 %v3105
    %v3138 = vunpack.c.l.b16 %v3106
    %v3139 = vunpack.c.l.b16 %v3107
    %v3140 = vunpack.c.l.b16 %v3108
    %v3141 = vunpack.c.l.b16 %v3109
    %v3142 = vunpack.c.l.b16 %v3110
    %v3143 = vunpack.c.l.b16 %v3111
    %v3144 = vunpack.c.l.b16 %v3112
    %v3145 = vunpack.c.l.b16 %v3113
    %v3146 = vpack.c.b16 %v3131, %v3130
    %v3147 = vpack.c.b16 %v3133, %v3132
    %v3148 = vpack.c.b16 %v3135, %v3134
    %v3149 = vpack.c.b16 %v3137, %v3136
    %v3150 = vpack.c.b16 %v3139, %v3138
    %v3151 = vpack.c.b16 %v3141, %v3140
    %v3152 = vpack.c.b16 %v3143, %v3142
    %v3153 = vpack.c.b16 %v3145, %v3144
    %3162 = vmatpush.bf16.msra.mxu0 %v3153
    %3163 = vmatpush.bf16.msra.mxu0 %v3152
    %3164 = vmatpush.bf16.msra.mxu0 %v3151
    %3165 = vmatpush.bf16.msra.mxu0 %v3150
    %3166 = vmatpush.bf16.msra.mxu0 %v3149
    %3167 = vmatpush.bf16.msra.mxu0 %v3148
    %3168 = vmatpush.bf16.msra.mxu0 %v3147
    %3169 = vmatpush.bf16.msra.mxu0 %v3146
    %3170 = vmatmul.bf16.gmra.mxu0 %v3096
    %v3171 = vpop.f32.mrf.mxu0
    %v3172 = vadd.f32 0.0, %v3171
    %v3173 = vpop.f32.mrf.mxu0
    %v3174 = vadd.f32 0.0, %v3173
    %3175 = vdwg.mxu0
    %v3176 = vadd.f32 %v3033, %v3172
    %v3177 = vadd.f32 %v3034, %v3174
    %v3178 = vadd.f32 %v1806, %v3176
    %v3179 = vadd.f32 %v1807, %v3177
    %s3180 = scalar_lea.vmem %s6, 1
    %v3181 = vld [vmem:[%s3180] sm:$0x1]
    %v3183 = vperm.slane %v3181, 0
    %v3185 = vadd.f32 %v3178, %v3183
    %v3186 = vadd.f32 %v3179, %v3183
    %s3187 = scalar_lea.vmem %s7, 1
    %v3188 = vld [vmem:[%s3187] sm:$0x1]
    %s3189 = scalar_lea.vmem [#allocation11], 1
    %v3190 = vld [vmem:[%s3189] sm:$0x1]
    %3191 = vadd.xlane.f32.xlu0 %v3185
    %v3192 = vpop.xlane.xlu0 %3191
    %3193 = vadd.xlane.f32.xlu0 %v3186
    %v3194 = vpop.xlane.xlu0 %3193
    %v3195 = vmul.f32 %v3192, 0.03125
    %v3196 = vmul.f32 %v3194, 0.03125
    %v3197 = vsub.f32 %v3185, %v3195
    %v3198 = vsub.f32 %v3186, %v3196
    %v3199 = vmul.f32 %v3197, %v206
    %v3200 = vmul.f32 %v3198, %v206
    %v3201 = vmul.f32 %v3199, %v3199
    %v3202 = vmul.f32 %v3200, %v3200
    %3203 = vadd.xlane.f32.xlu0 %v3201
    %v3204 = vpop.xlane.xlu0 %3203
    %3205 = vadd.xlane.f32.xlu0 %v3202
    %v3206 = vpop.xlane.xlu0 %3205
    %v3207 = vmul.f32 %v3204, 0.03125
    %v3208 = vmul.f32 %v3206, 0.03125
    %v3209 = vadd.f32 %v3207, 1e-05
    %v3210 = vadd.f32 %v3208, 1e-05
    %v3211 = vrsqrt.pop %v3209
    %v3212 = vmul.f32 %v3211, %v3209
    %v3213 = vmul.f32 %v3212, %v3211
    %v3214 = vmul.f32 0.5, %v3213
    %v3215 = vsub.f32 1.5, %v3214
    %v3216 = vmul.f32 %v3211, %v3215
    %vm3217 = vweird.f32 %v3209
    %vm3218 = vweird.f32 %v3211
    %vm3219 = vmor %vm3217, %vm3218
    %v3220 = vsel %vm3219, %v3211, %v3216
    %v3221 = vrsqrt.pop %v3210
    %v3222 = vmul.f32 %v3221, %v3210
    %v3223 = vmul.f32 %v3222, %v3221
    %v3224 = vmul.f32 0.5, %v3223
    %v3225 = vsub.f32 1.5, %v3224
    %v3226 = vmul.f32 %v3221, %v3225
    %vm3227 = vweird.f32 %v3210
    %vm3228 = vweird.f32 %v3221
    %vm3229 = vmor %vm3227, %vm3228
    %v3230 = vsel %vm3229, %v3221, %v3226
    %v3231 = vmul.f32 %v3199, %v3220
    %v3232 = vmul.f32 %v3200, %v3230
    %v3234 = vperm.slane %v3188, 0
    %v3236 = vmul.f32 %v3231, %v3234
    %v3237 = vmul.f32 %v3232, %v3234
    %v3239 = vperm.slane %v3190, 0
    %v3241 = vadd.f32 %v3236, %v3239
    %v3242 = vadd.f32 %v3237, %v3239
    %v3243 = vpack.c.bf16 %v3242, %v3241
    %s3244 = scalar_lea.vmem [#allocation13], 64
    %v3245 = vld [vmem:[%s3244] sm:$0xf]
    %v3246 = vld [vmem:[%s3244 + $0x4] sm:$0xf]
    %v3247 = vld [vmem:[%s3244 + $0x8] sm:$0xf]
    %v3248 = vld [vmem:[%s3244 + $0xc] sm:$0xf]
    %v3249 = vld [vmem:[%s3244 + $0x10] sm:$0xf]
    %v3250 = vld [vmem:[%s3244 + $0x14] sm:$0xf]
    %v3251 = vld [vmem:[%s3244 + $0x18] sm:$0xf]
    %v3252 = vld [vmem:[%s3244 + $0x1c] sm:$0xf]
    %v3253 = vld [vmem:[%s3244 + $0x20] sm:$0xf]
    %v3254 = vld [vmem:[%s3244 + $0x24] sm:$0xf]
    %v3255 = vld [vmem:[%s3244 + $0x28] sm:$0xf]
    %v3256 = vld [vmem:[%s3244 + $0x2c] sm:$0xf]
    %v3257 = vld [vmem:[%s3244 + $0x30] sm:$0xf]
    %v3258 = vld [vmem:[%s3244 + $0x34] sm:$0xf]
    %v3259 = vld [vmem:[%s3244 + $0x38] sm:$0xf]
    %v3260 = vld [vmem:[%s3244 + $0x3c] sm:$0xf]
    %s3261 = scalar_lea.vmem %s10, 1
    %v3262 = vld [vmem:[%s3261] sm:$0x1]
    %v3264 = vperm.slane %v3262, 0
    %v3282 = vunpack.c.l.b16 %v3245
    %v3283 = vunpack.c.l.b16 %v3246
    %v3284 = vunpack.c.l.b16 %v3247
    %v3285 = vunpack.c.l.b16 %v3248
    %v3286 = vunpack.c.l.b16 %v3249
    %v3287 = vunpack.c.l.b16 %v3250
    %v3288 = vunpack.c.l.b16 %v3251
    %v3289 = vunpack.c.l.b16 %v3252
    %v3290 = vunpack.c.l.b16 %v3253
    %v3291 = vunpack.c.l.b16 %v3254
    %v3292 = vunpack.c.l.b16 %v3255
    %v3293 = vunpack.c.l.b16 %v3256
    %v3294 = vunpack.c.l.b16 %v3257
    %v3295 = vunpack.c.l.b16 %v3258
    %v3296 = vunpack.c.l.b16 %v3259
    %v3297 = vunpack.c.l.b16 %v3260
    %v3298 = vpack.c.b16 %v3283, %v3282
    %v3299 = vpack.c.b16 %v3285, %v3284
    %v3300 = vpack.c.b16 %v3287, %v3286
    %v3301 = vpack.c.b16 %v3289, %v3288
    %v3302 = vpack.c.b16 %v3291, %v3290
    %v3303 = vpack.c.b16 %v3293, %v3292
    %v3304 = vpack.c.b16 %v3295, %v3294
    %v3305 = vpack.c.b16 %v3297, %v3296
    %3314 = vmatpush.bf16.msra.mxu0 %v3305
    %3315 = vmatpush.bf16.msra.mxu0 %v3304
    %3316 = vmatpush.bf16.msra.mxu0 %v3303
    %3317 = vmatpush.bf16.msra.mxu0 %v3302
    %3318 = vmatpush.bf16.msra.mxu0 %v3301
    %3319 = vmatpush.bf16.msra.mxu0 %v3300
    %3320 = vmatpush.bf16.msra.mxu0 %v3299
    %3321 = vmatpush.bf16.msra.mxu0 %v3298
    %3322 = vmatmul.bf16.gmra.mxu0 %v3243
    %v3323 = vpop.f32.mrf.mxu0
    %v3324 = vadd.f32 %v3264, %v3323
    %v3325 = vpop.f32.mrf.mxu0
    %v3326 = vadd.f32 %v3264, %v3325
    %3327 = vdwg.mxu0
    %v3328 = vmax.f32 %v3324, 0.0
    %v3329 = vmax.f32 %v3326, 0.0
    %v3330 = vpack.c.bf16 %v3329, %v3328
    %s3331 = scalar_lea.vmem [#allocation14], 64
    %v3332 = vld [vmem:[%s3331] sm:$0xf]
    %v3333 = vld [vmem:[%s3331 + $0x4] sm:$0xf]
    %v3334 = vld [vmem:[%s3331 + $0x8] sm:$0xf]
    %v3335 = vld [vmem:[%s3331 + $0xc] sm:$0xf]
    %v3336 = vld [vmem:[%s3331 + $0x10] sm:$0xf]
    %v3337 = vld [vmem:[%s3331 + $0x14] sm:$0xf]
    %v3338 = vld [vmem:[%s3331 + $0x18] sm:$0xf]
    %v3339 = vld [vmem:[%s3331 + $0x1c] sm:$0xf]
    %v3340 = vld [vmem:[%s3331 + $0x20] sm:$0xf]
    %v3341 = vld [vmem:[%s3331 + $0x24] sm:$0xf]
    %v3342 = vld [vmem:[%s3331 + $0x28] sm:$0xf]
    %v3343 = vld [vmem:[%s3331 + $0x2c] sm:$0xf]
    %v3344 = vld [vmem:[%s3331 + $0x30] sm:$0xf]
    %v3345 = vld [vmem:[%s3331 + $0x34] sm:$0xf]
    %v3346 = vld [vmem:[%s3331 + $0x38] sm:$0xf]
    %v3347 = vld [vmem:[%s3331 + $0x3c] sm:$0xf]
    %v3364 = vunpack.c.l.b16 %v3332
    %v3365 = vunpack.c.l.b16 %v3333
    %v3366 = vunpack.c.l.b16 %v3334
    %v3367 = vunpack.c.l.b16 %v3335
    %v3368 = vunpack.c.l.b16 %v3336
    %v3369 = vunpack.c.l.b16 %v3337
    %v3370 = vunpack.c.l.b16 %v3338
    %v3371 = vunpack.c.l.b16 %v3339
    %v3372 = vunpack.c.l.b16 %v3340
    %v3373 = vunpack.c.l.b16 %v3341
    %v3374 = vunpack.c.l.b16 %v3342
    %v3375 = vunpack.c.l.b16 %v3343
    %v3376 = vunpack.c.l.b16 %v3344
    %v3377 = vunpack.c.l.b16 %v3345
    %v3378 = vunpack.c.l.b16 %v3346
    %v3379 = vunpack.c.l.b16 %v3347
    %v3380 = vpack.c.b16 %v3365, %v3364
    %v3381 = vpack.c.b16 %v3367, %v3366
    %v3382 = vpack.c.b16 %v3369, %v3368
    %v3383 = vpack.c.b16 %v3371, %v3370
    %v3384 = vpack.c.b16 %v3373, %v3372
    %v3385 = vpack.c.b16 %v3375, %v3374
    %v3386 = vpack.c.b16 %v3377, %v3376
    %v3387 = vpack.c.b16 %v3379, %v3378
    %3396 = vmatpush.bf16.msra.mxu0 %v3387
    %3397 = vmatpush.bf16.msra.mxu0 %v3386
    %3398 = vmatpush.bf16.msra.mxu0 %v3385
    %3399 = vmatpush.bf16.msra.mxu0 %v3384
    %3400 = vmatpush.bf16.msra.mxu0 %v3383
    %3401 = vmatpush.bf16.msra.mxu0 %v3382
    %3402 = vmatpush.bf16.msra.mxu0 %v3381
    %3403 = vmatpush.bf16.msra.mxu0 %v3380
    %3404 = vmatmul.bf16.gmra.mxu0 %v3330
    %v3405 = vpop.f32.mrf.mxu0
    %v3406 = vadd.f32 0.0, %v3405
    %v3407 = vpop.f32.mrf.mxu0
    %v3408 = vadd.f32 0.0, %v3407
    %3409 = vdwg.mxu0
    %v3410 = vadd.f32 %v3185, %v3406
    %v3411 = vadd.f32 %v3186, %v3408
    %s3412 = scalar_lea.vmem %s12, 1
    %v3413 = vld [vmem:[%s3412] sm:$0x1]
    %v3415 = vperm.slane %v3413, 0
    %v3417 = vadd.f32 %v3410, %v3415
    %v3418 = vadd.f32 %v3411, %v3415
    %v3419 = vld [vmem:[%s13] sm:$0x1]
    %v3420 = vld [vmem:[%s14] sm:$0x1]
    %3421 = vadd.xlane.f32.xlu0 %v3417
    %v3422 = vpop.xlane.xlu0 %3421
    %3423 = vadd.xlane.f32.xlu0 %v3418
    %v3424 = vpop.xlane.xlu0 %3423
    %v3425 = vmul.f32 %v3422, 0.03125
    %v3426 = vmul.f32 %v3424, 0.03125
    %v3427 = vsub.f32 %v3417, %v3425
    %v3428 = vsub.f32 %v3418, %v3426
    %v3429 = vmul.f32 %v3427, %v206
    %v3430 = vmul.f32 %v3428, %v206
    %v3431 = vmul.f32 %v3429, %v3429
    %v3432 = vmul.f32 %v3430, %v3430
    %3433 = vadd.xlane.f32.xlu0 %v3431
    %v3434 = vpop.xlane.xlu0 %3433
    %3435 = vadd.xlane.f32.xlu0 %v3432
    %v3436 = vpop.xlane.xlu0 %3435
    %v3437 = vmul.f32 %v3434, 0.03125
    %v3438 = vmul.f32 %v3436, 0.03125
    %v3439 = vadd.f32 %v3437, 1e-05
    %v3440 = vadd.f32 %v3438, 1e-05
    %v3441 = vrsqrt.pop %v3439
    %v3442 = vmul.f32 %v3441, %v3439
    %v3443 = vmul.f32 %v3442, %v3441
    %v3444 = vmul.f32 0.5, %v3443
    %v3445 = vsub.f32 1.5, %v3444
    %v3446 = vmul.f32 %v3441, %v3445
    %vm3447 = vweird.f32 %v3439
    %vm3448 = vweird.f32 %v3441
    %vm3449 = vmor %vm3447, %vm3448
    %v3450 = vsel %vm3449, %v3441, %v3446
    %v3451 = vrsqrt.pop %v3440
    %v3452 = vmul.f32 %v3451, %v3440
    %v3453 = vmul.f32 %v3452, %v3451
    %v3454 = vmul.f32 0.5, %v3453
    %v3455 = vsub.f32 1.5, %v3454
    %v3456 = vmul.f32 %v3451, %v3455
    %vm3457 = vweird.f32 %v3440
    %vm3458 = vweird.f32 %v3451
    %vm3459 = vmor %vm3457, %vm3458
    %v3460 = vsel %vm3459, %v3451, %v3456
    %v3461 = vmul.f32 %v3429, %v3450
    %v3462 = vmul.f32 %v3430, %v3460
    %v3464 = vperm.slane %v3419, 0
    %v3466 = vmul.f32 %v3461, %v3464
    %v3467 = vmul.f32 %v3462, %v3464
    %v3469 = vperm.slane %v3420, 0
    %v3471 = vadd.f32 %v3466, %v3469
    %v3472 = vadd.f32 %v3467, %v3469
    %v3473 = vpack.c.bf16 %v3472, %v3471
    %v3474 = vld [vmem:[#allocation16] sm:$0xf]
    %v3475 = vld [vmem:[#allocation16 + $0x4] sm:$0xf]
    %v3476 = vld [vmem:[#allocation16 + $0x8] sm:$0xf]
    %v3477 = vld [vmem:[#allocation16 + $0xc] sm:$0xf]
    %v3478 = vld [vmem:[#allocation16 + $0x10] sm:$0xf]
    %v3479 = vld [vmem:[#allocation16 + $0x14] sm:$0xf]
    %v3480 = vld [vmem:[#allocation16 + $0x18] sm:$0xf]
    %v3481 = vld [vmem:[#allocation16 + $0x1c] sm:$0xf]
    %v3482 = vld [vmem:[#allocation16 + $0x20] sm:$0xf]
    %v3483 = vld [vmem:[#allocation16 + $0x24] sm:$0xf]
    %v3484 = vld [vmem:[#allocation16 + $0x28] sm:$0xf]
    %v3485 = vld [vmem:[#allocation16 + $0x2c] sm:$0xf]
    %v3486 = vld [vmem:[#allocation16 + $0x30] sm:$0xf]
    %v3487 = vld [vmem:[#allocation16 + $0x34] sm:$0xf]
    %v3488 = vld [vmem:[#allocation16 + $0x38] sm:$0xf]
    %v3489 = vld [vmem:[#allocation16 + $0x3c] sm:$0xf]
    %v3490 = vld [vmem:[%s16] sm:$0x1]
    %v3492 = vperm.slane %v3490, 0
    %v3510 = vunpack.c.l.b16 %v3474
    %v3511 = vunpack.c.l.b16 %v3475
    %v3512 = vunpack.c.l.b16 %v3476
    %v3513 = vunpack.c.l.b16 %v3477
    %v3514 = vunpack.c.l.b16 %v3478
    %v3515 = vunpack.c.l.b16 %v3479
    %v3516 = vunpack.c.l.b16 %v3480
    %v3517 = vunpack.c.l.b16 %v3481
    %v3518 = vunpack.c.l.b16 %v3482
    %v3519 = vunpack.c.l.b16 %v3483
    %v3520 = vunpack.c.l.b16 %v3484
    %v3521 = vunpack.c.l.b16 %v3485
    %v3522 = vunpack.c.l.b16 %v3486
    %v3523 = vunpack.c.l.b16 %v3487
    %v3524 = vunpack.c.l.b16 %v3488
    %v3525 = vunpack.c.l.b16 %v3489
    %v3526 = vpack.c.b16 %v3511, %v3510
    %v3527 = vpack.c.b16 %v3513, %v3512
    %v3528 = vpack.c.b16 %v3515, %v3514
    %v3529 = vpack.c.b16 %v3517, %v3516
    %v3530 = vpack.c.b16 %v3519, %v3518
    %v3531 = vpack.c.b16 %v3521, %v3520
    %v3532 = vpack.c.b16 %v3523, %v3522
    %v3533 = vpack.c.b16 %v3525, %v3524
    %3542 = vmatpush.bf16.msra.mxu0 %v3533
    %3543 = vmatpush.bf16.msra.mxu0 %v3532
    %3544 = vmatpush.bf16.msra.mxu0 %v3531
    %3545 = vmatpush.bf16.msra.mxu0 %v3530
    %3546 = vmatpush.bf16.msra.mxu0 %v3529
    %3547 = vmatpush.bf16.msra.mxu0 %v3528
    %3548 = vmatpush.bf16.msra.mxu0 %v3527
    %3549 = vmatpush.bf16.msra.mxu0 %v3526
    %3550 = vmatmul.bf16.gmra.mxu0 %v3473
    %v3551 = vpop.f32.mrf.mxu0
    %v3552 = vadd.f32 %v3492, %v3551
    %v3553 = vpop.f32.mrf.mxu0
    %v3554 = vadd.f32 %v3492, %v3553
    %3555 = vdwg.mxu0
    %3556 = vst [vmem:[#allocation17] sm:$0xff] %v3552
    %3557 = vst [vmem:[#allocation17 + $0x8] sm:$0xff] %v3554
    // Predicated region
    $region106: #{tpu_custom_call.1} parent=1 // pred_check
      _
    $region107: #{tpu_custom_call.1} parent=1 // pred_check_branch
      %3559 = sbr.rel (0) target = $region109
    $region108: #{tpu_custom_call.1} parent=1 // pred_region
      %3561 = vsyncadd [#allocation4], 0
      %s3562 = sshll.u32 [#allocation17], 4
      %s3563 = int_to_ptr.vmem [resolvable:$true] %s3562
      %s3564 = sshll.u32 %s17, 4
      %s3565 = int_to_ptr.hbm [resolvable:$true] %s3564
      %3570 = dma.vmem_to_hbm [thread:$0]  %s3563, 256, %s3565, [#allocation4], 128, 128, 8
    $region109: #{tpu_custom_call.1} parent=1 // pred_fallthru
      _
    // Predicated region
    $region110: #{tpu_custom_call.1} parent=1 // pred_check
      _
    $region111: #{tpu_custom_call.1} parent=1 // pred_check_branch
      %3572 = sbr.rel (0) target = $region113
    $region112: #{tpu_custom_call.1} parent=1 // pred_region
      %3574 = dma.done [#allocation4], 256
    $region113: #{tpu_custom_call.1} parent=1 // pred_fallthru
      _
    %3575 = vsyncpa [#allocation3], 1
    %3576 = vsyncpa [#allocation6], 1
    %3577 = vsyncpa [#allocation9], 1
    %3578 = vsyncpa [#allocation12], 1
    %3579 = vsyncpa [#allocation15], 1
    %3580 = vsyncpa [#allocation4], 1

</llo_original>
